<compile_context>
chip_gen: v7x
topology: tpu7x:2x2x1
jax: 0.10.0
libtpu: 0.0.40
codegen_flags: <defaults>
</compile_context>

<pallas_src>
import jax
import jax.numpy as jnp
from jax.experimental import pallas as pl
from jax.experimental.pallas import tpu as pltpu


def _make_kernel(*, H, W, Cin, Hd, Cout, k, stride, p, nb,
                 expand, use_se, use_hs, identity, Ho, Wo):
    """Build the Pallas kernel body with all configuration baked in statically."""

    def act(v):
        if use_hs:  # h_swish: x * relu6(x + 3) / 6
            return v * (jnp.clip(v + 3.0, 0.0, 6.0) * (1.0 / 6.0))
        return jnp.maximum(v, 0.0)

    def kernel(*refs):
        it = iter(refs)
        x_ref = next(it)
        if expand:
            w1_ref, b1_ref = next(it), next(it)
        dw_ref, b2_ref = next(it), next(it)
        if use_se:
            f1_ref, fb1_ref, f2_ref, fb2_ref = next(it), next(it), next(it), next(it)
        w3_ref, b3_ref = next(it), next(it)
        out_ref = next(it)
        pad_ref = next(it)  # VMEM scratch: zero-padded (H+2p, W+2p, Hd) feature map

        # Zero the padded scratch once per grid step; only the border must stay zero,
        # the interior is fully overwritten for every image below.
        pad_ref[...] = jnp.zeros_like(pad_ref)

        for b in range(nb):  # static unroll over the packed batch images
            x = x_ref[b].astype(jnp.float32)          # (H, W, Cin), channels in lanes
            xm = x.reshape(H * W, Cin)

            # ---- 1x1 expand conv (+ folded BN) + activation ----
            if expand:
                y = jnp.dot(xm, w1_ref[...],
                            preferred_element_type=jnp.float32) + b1_ref[...]
                y = act(y)                            # (H*W, Hd)
            else:
                y = xm                                # Cin == Hd in this branch

            # ---- depthwise kxk conv (+ folded BN), via zero-padded VMEM scratch ----
            pad_ref[p:p + H, p:p + W, :] = y.reshape(H, W, Hd)
            acc = jnp.zeros((Ho, Wo, Hd), jnp.float32)
            for i in range(k):
                for j in range(k):
                    if stride == 1:
                        tap = pad_ref[i:i + Ho, j:j + Wo, :]
                    else:
                        tap = pad_ref[pl.ds(i, Ho, stride=stride),
                                      pl.ds(j, Wo, stride=stride), :]
                    acc = acc + tap * dw_ref[i * k + j][None, None, :]
            z = acc.reshape(Ho * Wo, Hd) + b2_ref[...]  # (Ho*Wo, Hd)

            # ---- Squeeze-and-Excite (optional) ----
            def se(v):
                pooled = jnp.mean(v, axis=0, keepdims=True)              # (1, Hd)
                h1 = jnp.maximum(
                    jnp.dot(pooled, f1_ref[...],
                            preferred_element_type=jnp.float32) + fb1_ref[...], 0.0)
                h2 = jnp.dot(h1, f2_ref[...],
                             preferred_element_type=jnp.float32) + fb2_ref[...]
                gate = jnp.clip(h2 + 3.0, 0.0, 6.0) * (1.0 / 6.0)        # h_sigmoid
                return v * gate

            # Order of SE vs activation differs between the two module branches.
            if expand:
                if use_se:
                    z = se(z)
                z = act(z)
            else:
                z = act(z)
                if use_se:
                    z = se(z)

            # ---- 1x1 project conv (+ folded BN) + optional residual ----
            o = jnp.dot(z, w3_ref[...],
                        preferred_element_type=jnp.float32) + b3_ref[...]
            if identity:
                o = o + xm
            out_ref[b] = o.reshape(Ho, Wo, Cout).astype(out_ref.dtype)

    return kernel


def mobilenet_block(x_nchw, params, *, kernel_size, stride, use_se, use_hs):
    """MobileNet_Block forward. Input/output are NCHW (PyTorch layout)."""
    N, Cin, H, W = x_nchw.shape
    k = kernel_size
    p = (k - 1) // 2
    expand = "w1t" in params
    Hd = params["dw"].shape[1]
    Cout = params["w3t"].shape[1]
    Ho = (H + 2 * p - k) // stride + 1
    Wo = (W + 2 * p - k) // stride + 1
    identity = (stride == 1 and Cin == Cout)

    # Pack several batch images per grid step so each step moves a decent block
    # (per-step pipeline overhead ~0.35us dominates tiny blocks).
    bytes_per_img = H * W * max(Cin, Hd, Cout) * 4
    nb = max(1, min(N, (512 * 1024) // max(1, bytes_per_img)))
    while N % nb:
        nb -= 1

    # Lane-dense, channels-last layout for the kernel.
    x = jnp.transpose(x_nchw, (0, 2, 3, 1))          # (N, H, W, Cin)

    inputs = [x]
    in_specs = [pl.BlockSpec((nb, H, W, Cin), lambda n: (n, 0, 0, 0))]

    def add_full(name):
        arr = params[name]
        inputs.append(arr)
        in_specs.append(pl.BlockSpec(arr.shape, lambda n, _nd=arr.ndim: (0,) * _nd))

    if expand:
        add_full("w1t"); add_full("b1")
    add_full("dw"); add_full("b2")
    if use_se:
        add_full("f1t"); add_full("fb1"); add_full("f2t"); add_full("fb2")
    add_full("w3t"); add_full("b3")

    kernel = _make_kernel(H=H, W=W, Cin=Cin, Hd=Hd, Cout=Cout, k=k, stride=stride,
                          p=p, nb=nb, expand=expand, use_se=use_se, use_hs=use_hs,
                          identity=identity, Ho=Ho, Wo=Wo)

    flops = int(2 * N * ((H * W * Cin * Hd if expand else 0)
                         + Ho * Wo * k * k * Hd
                         + Ho * Wo * Hd * Cout))
    bytes_accessed = int(4 * (N * H * W * Cin + N * Ho * Wo * Cout)
                         + sum(int(a.size) * 4 for a in inputs[1:]))

    out_nhwc = pl.pallas_call(
        kernel,
        out_shape=jax.ShapeDtypeStruct((N, Ho, Wo, Cout), x_nchw.dtype),
        grid_spec=pltpu.PrefetchScalarGridSpec(
            num_scalar_prefetch=0,
            grid=(N // nb,),
            in_specs=in_specs,
            out_specs=pl.BlockSpec((nb, Ho, Wo, Cout), lambda n: (n, 0, 0, 0)),
            scratch_shapes=[pltpu.VMEM((H + 2 * p, W + 2 * p, Hd), jnp.float32)],
        ),
        compiler_params=pltpu.CompilerParams(dimension_semantics=("parallel",)),
        cost_estimate=pl.CostEstimate(flops=flops, transcendentals=0,
                                      bytes_accessed=bytes_accessed),
    )(*inputs)

    return jnp.transpose(out_nhwc, (0, 3, 1, 2))     # back to NCHW


# ----------------------------------------------------------------------------
# Pure-JAX reference mirroring the PyTorch forward (NCHW, eval-mode BN).
# ----------------------------------------------------------------------------
def mobilenet_block_reference(x, tp, *, kernel_size, stride, use_se, use_hs):
    eps = 1e-5
    k = kernel_size
    p = (k - 1) // 2
    dn = ("NCHW", "OIHW", "NCHW")
    prec = jax.lax.Precision.HIGHEST

    def bn(v, g, b, m, var):
        s = g / jnp.sqrt(var + eps)
        return v * s[None, :, None, None] + (b - m * s)[None, :, None, None]

    def activ(v):
        return v * jnp.clip(v + 3.0, 0.0, 6.0) / 6.0 if use_hs else jnp.maximum(v, 0.0)

    expand = "w_pw1" in tp
    hidden = tp["w_dw"].shape[0]

    y = x
    if expand:
        y = jax.lax.conv_general_dilated(x, tp["w_pw1"], (1, 1), "VALID",
                                         dimension_numbers=dn, precision=prec)
        y = activ(bn(y, *tp["bn1"]))
    z = jax.lax.conv_general_dilated(y, tp["w_dw"], (stride, stride),
                                     [(p, p), (p, p)], dimension_numbers=dn,
                                     feature_group_count=hidden, precision=prec)
    z = bn(z, *tp["bn2"])

    def se(v):
        g = jnp.mean(v, axis=(2, 3))                                      # (N, C)
        g = jnp.maximum(jnp.matmul(g, tp["fc1_w"].T, precision=prec) + tp["fc1_b"], 0.0)
        g = jnp.matmul(g, tp["fc2_w"].T, precision=prec) + tp["fc2_b"]
        g = jnp.clip(g + 3.0, 0.0, 6.0) / 6.0
        return v * g[:, :, None, None]

    if expand:
        if use_se:
            z = se(z)
        z = activ(z)
    else:
        z = activ(z)
        if use_se:
            z = se(z)

    o = jax.lax.conv_general_dilated(z, tp["w_pw2"], (1, 1), "VALID",
                                     dimension_numbers=dn, precision=prec)
    o = bn(o, *tp["bn3"])
    if stride == 1 and x.shape[1] == o.shape[1]:
        o = o + x
    return o


def make_params(key, inp, oup, hidden_dim, kernel_size, use_se, se_reduction=4):
    """Create PyTorch-style params and the folded/transposed params for the kernel."""
    k = kernel_size
    expand = inp != hidden_dim
    keys = iter(jax.random.split(key, 24))
    eps = 1e-5

    def bn_params(c):
        g = 1.0 + 0.1 * jax.random.normal(next(keys), (c,), jnp.float32)
        b = 0.1 * jax.random.normal(next(keys), (c,), jnp.float32)
        m = 0.05 * jax.random.normal(next(keys), (c,), jnp.float32)
        v = 1.0 + 0.1 * jnp.abs(jax.random.normal(next(keys), (c,), jnp.float32))
        return (g, b, m, v)

    def fold(g, b, m, v):
        s = g / jnp.sqrt(v + eps)
        return s, b - m * s

    torch_p, kern_p = {}, {}

    if expand:
        w_pw1 = 0.3 * jax.random.normal(next(keys), (hidden_dim, inp, 1, 1), jnp.float32)
        bn1 = bn_params(hidden_dim)
        torch_p["w_pw1"], torch_p["bn1"] = w_pw1, bn1
        s1, t1 = fold(*bn1)
        kern_p["w1t"] = (w_pw1[:, :, 0, 0] * s1[:, None]).T        # (Cin, Hd)
        kern_p["b1"] = t1[None, :]                                 # (1, Hd)

    w_dw = 0.3 * jax.random.normal(next(keys), (hidden_dim, 1, k, k), jnp.float32)
    bn2 = bn_params(hidden_dim)
    torch_p["w_dw"], torch_p["bn2"] = w_dw, bn2
    s2, t2 = fold(*bn2)
    kern_p["dw"] = jnp.transpose(w_dw[:, 0] * s2[:, None, None],
                                 (1, 2, 0)).reshape(k * k, hidden_dim)  # (k*k, Hd)
    kern_p["b2"] = t2[None, :]

    if use_se:
        c_se = hidden_dim // se_reduction
        fc1_w = 0.3 * jax.random.normal(next(keys), (c_se, hidden_dim), jnp.float32)
        fc1_b = 0.1 * jax.random.normal(next(keys), (c_se,), jnp.float32)
        fc2_w = 0.3 * jax.random.normal(next(keys), (hidden_dim, c_se), jnp.float32)
        fc2_b = 0.1 * jax.random.normal(next(keys), (hidden_dim,), jnp.float32)
        torch_p.update(fc1_w=fc1_w, fc1_b=fc1_b, fc2_w=fc2_w, fc2_b=fc2_b)
        kern_p["f1t"], kern_p["fb1"] = fc1_w.T, fc1_b[None, :]
        kern_p["f2t"], kern_p["fb2"] = fc2_w.T, fc2_b[None, :]

    w_pw2 = 0.3 * jax.random.normal(next(keys), (oup, hidden_dim, 1, 1), jnp.float32)
    bn3 = bn_params(oup)
    torch_p["w_pw2"], torch_p["bn3"] = w_pw2, bn3
    s3, t3 = fold(*bn3)
    kern_p["w3t"] = (w_pw2[:, :, 0, 0] * s3[:, None]).T            # (Hd, Cout)
    kern_p["b3"] = t3[None, :]

    return torch_p, kern_p


if __name__ == "__main__":
    key = jax.random.PRNGKey(0)
    kx, kp = jax.random.split(key)

    # MobileNet_Block(inp=4, oup=4, hidden_dim=8, kernel_size=3, stride=1,
    #                 use_se=True, use_hs=True)  -> exercises the full expand path,
    # SE layer, h_swish and the identity residual.
    N, C, H, W = 2, 4, 16, 16
    hidden, ks, stride, use_se, use_hs = 8, 3, 1, True, True

    x = jax.random.normal(kx, (N, C, H, W), jnp.float32)
    torch_p, kern_p = make_params(kp, inp=C, oup=C, hidden_dim=hidden,
                                  kernel_size=ks, use_se=use_se)

    out = mobilenet_block(x, kern_p, kernel_size=ks, stride=stride,
                          use_se=use_se, use_hs=use_hs)
    out = jax.block_until_ready(out)

    ref = mobilenet_block_reference(x, torch_p, kernel_size=ks, stride=stride,
                                    use_se=use_se, use_hs=use_hs)
    assert out.shape == ref.shape == (N, C, H, W)
    max_err = float(jnp.max(jnp.abs(out - ref)))
    assert jnp.allclose(out, ref, rtol=2e-3, atol=2e-3), f"mismatch, max abs err={max_err}"

    print("KERNEL_OK")
</pallas_src>

<mosaic_0001>
module attributes {stable_mosaic.version = 11 : i64} {
  func.func @kernel(%arg0: i32, %arg1: memref<2x16x16x4xf32, #tpu.memory_space<vmem>>, %arg2: memref<4x8xf32, #tpu.memory_space<vmem>>, %arg3: memref<1x8xf32, #tpu.memory_space<vmem>>, %arg4: memref<9x8xf32, #tpu.memory_space<vmem>>, %arg5: memref<1x8xf32, #tpu.memory_space<vmem>>, %arg6: memref<8x2xf32, #tpu.memory_space<vmem>>, %arg7: memref<1x2xf32, #tpu.memory_space<vmem>>, %arg8: memref<2x8xf32, #tpu.memory_space<vmem>>, %arg9: memref<1x8xf32, #tpu.memory_space<vmem>>, %arg10: memref<8x4xf32, #tpu.memory_space<vmem>>, %arg11: memref<1x4xf32, #tpu.memory_space<vmem>>, %arg12: memref<2x16x16x4xf32, #tpu.memory_space<vmem>>, %arg13: memref<18x18x8xf32, #tpu.memory_space<vmem>>) attributes {dimension_semantics = [#tpu.dimension_semantics<parallel>], iteration_bounds = array<i64: 1>, scalar_prefetch = 0 : i64, scratch_operands = 1 : i64, tpu.core_type = #tpu.core_type<tc>, window_params = [{transform_indices = @transform_0, window_bounds = array<i64: 2, 16, 16, 4>}, {pipeline_mode = #tpu.pipeline_mode<synchronous>, transform_indices = @transform_1, window_bounds = array<i64: 4, 8>}, {pipeline_mode = #tpu.pipeline_mode<synchronous>, transform_indices = @transform_2, window_bounds = array<i64: 1, 8>}, {pipeline_mode = #tpu.pipeline_mode<synchronous>, transform_indices = @transform_3, window_bounds = array<i64: 9, 8>}, {pipeline_mode = #tpu.pipeline_mode<synchronous>, transform_indices = @transform_4, window_bounds = array<i64: 1, 8>}, {pipeline_mode = #tpu.pipeline_mode<synchronous>, transform_indices = @transform_5, window_bounds = array<i64: 8, 2>}, {pipeline_mode = #tpu.pipeline_mode<synchronous>, transform_indices = @transform_6, window_bounds = array<i64: 1, 2>}, {pipeline_mode = #tpu.pipeline_mode<synchronous>, transform_indices = @transform_7, window_bounds = array<i64: 2, 8>}, {pipeline_mode = #tpu.pipeline_mode<synchronous>, transform_indices = @transform_8, window_bounds = array<i64: 1, 8>}, {pipeline_mode = #tpu.pipeline_mode<synchronous>, transform_indices = @transform_9, window_bounds = array<i64: 8, 4>}, {pipeline_mode = #tpu.pipeline_mode<synchronous>, transform_indices = @transform_10, window_bounds = array<i64: 1, 4>}, {transform_indices = @transform_11, window_bounds = array<i64: 2, 16, 16, 4>}]} {
    %cst = arith.constant 0.000000e+00 : f32
    %0 = vector.broadcast %cst : f32 to vector<18x18x8xf32>
    %c0 = arith.constant 0 : index
    %c0_0 = arith.constant 0 : index
    %c0_1 = arith.constant 0 : index
    %1 = vector.load %arg13[%c0, %c0_0, %c0_1] : memref<18x18x8xf32, #tpu.memory_space<vmem>>, vector<18x18x8xf32>
    tpu.vector_store %arg13[%c0, %c0_0, %c0_1], %0 {strides = array<i32>} : memref<18x18x8xf32, #tpu.memory_space<vmem>>, vector<18x18x8xf32>,
    %c0_2 = arith.constant 0 : index
    %c0_3 = arith.constant 0 : index
    %c0_4 = arith.constant 0 : index
    %c0_5 = arith.constant 0 : index
    %2 = vector.load %arg1[%c0_2, %c0_3, %c0_4, %c0_5] : memref<2x16x16x4xf32, #tpu.memory_space<vmem>>, vector<1x16x16x4xf32>
    %3 = vector.shape_cast %2 : vector<1x16x16x4xf32> to vector<16x16x4xf32>
    %4 = vector.shape_cast %3 : vector<16x16x4xf32> to vector<256x4xf32>
    %c0_6 = arith.constant 0 : index
    %c0_7 = arith.constant 0 : index
    %5 = vector.load %arg2[%c0_6, %c0_7] : memref<4x8xf32, #tpu.memory_space<vmem>>, vector<4x8xf32>
    %cst_8 = arith.constant dense<0.000000e+00> : vector<256x8xf32>
    %6 = tpu.matmul %4, %5, %cst_8 {dimension_numbers = #tpu.dot_dimension_numbers<[1], [0], [0], [1], [0, 0, 1, 1], [], []>} : vector<256x4xf32>, vector<4x8xf32>, vector<256x8xf32> -> vector<256x8xf32>
    %c0_9 = arith.constant 0 : index
    %c0_10 = arith.constant 0 : index
    %7 = vector.load %arg3[%c0_9, %c0_10] : memref<1x8xf32, #tpu.memory_space<vmem>>, vector<1x8xf32>
    %8 = vector.broadcast %7 : vector<1x8xf32> to vector<256x8xf32>
    %9 = arith.addf %6, %8 : vector<256x8xf32>
    %cst_11 = arith.constant 3.000000e+00 : f32
    %10 = vector.broadcast %cst_11 : f32 to vector<256x8xf32>
    %11 = arith.addf %9, %10 : vector<256x8xf32>
    %cst_12 = arith.constant 0.000000e+00 : f32
    %cst_13 = arith.constant 6.000000e+00 : f32
    %12 = vector.broadcast %cst_12 : f32 to vector<256x8xf32>
    %13 = arith.maximumf %12, %11 : vector<256x8xf32>
    %14 = vector.broadcast %cst_13 : f32 to vector<256x8xf32>
    %15 = arith.minimumf %14, %13 : vector<256x8xf32>
    %cst_14 = arith.constant 0.166666672 : f32
    %16 = vector.broadcast %cst_14 : f32 to vector<256x8xf32>
    %17 = arith.mulf %15, %16 : vector<256x8xf32>
    %18 = arith.mulf %9, %17 : vector<256x8xf32>
    %19 = vector.shape_cast %18 : vector<256x8xf32> to vector<16x16x8xf32>
    %c1 = arith.constant 1 : index
    %c1_15 = arith.constant 1 : index
    %c0_16 = arith.constant 0 : index
    %20 = vector.load %arg13[%c1, %c1_15, %c0_16] : memref<18x18x8xf32, #tpu.memory_space<vmem>>, vector<16x16x8xf32>
    tpu.vector_store %arg13[%c1, %c1_15, %c0_16], %19 {strides = array<i32>} : memref<18x18x8xf32, #tpu.memory_space<vmem>>, vector<16x16x8xf32>,
    %cst_17 = arith.constant 0.000000e+00 : f32
    %21 = vector.broadcast %cst_17 : f32 to vector<16x16x8xf32>
    %c0_18 = arith.constant 0 : index
    %c0_19 = arith.constant 0 : index
    %c0_20 = arith.constant 0 : index
    %22 = vector.load %arg13[%c0_18, %c0_19, %c0_20] : memref<18x18x8xf32, #tpu.memory_space<vmem>>, vector<16x16x8xf32>
    %c0_21 = arith.constant 0 : index
    %c0_22 = arith.constant 0 : index
    %23 = vector.load %arg4[%c0_21, %c0_22] : memref<9x8xf32, #tpu.memory_space<vmem>>, vector<1x8xf32>
    %24 = vector.shape_cast %23 : vector<1x8xf32> to vector<8xf32>
    %25 = vector.shape_cast %24 : vector<8xf32> to vector<1x1x8xf32>
    %26 = vector.broadcast %25 : vector<1x1x8xf32> to vector<16x16x8xf32>
    %27 = arith.mulf %22, %26 : vector<16x16x8xf32>
    %28 = arith.addf %21, %27 : vector<16x16x8xf32>
    %c0_23 = arith.constant 0 : index
    %c1_24 = arith.constant 1 : index
    %c0_25 = arith.constant 0 : index
    %29 = vector.load %arg13[%c0_23, %c1_24, %c0_25] : memref<18x18x8xf32, #tpu.memory_space<vmem>>, vector<16x16x8xf32>
    %c1_26 = arith.constant 1 : index
    %c0_27 = arith.constant 0 : index
    %30 = vector.load %arg4[%c1_26, %c0_27] : memref<9x8xf32, #tpu.memory_space<vmem>>, vector<1x8xf32>
    %31 = vector.shape_cast %30 : vector<1x8xf32> to vector<8xf32>
    %32 = vector.shape_cast %31 : vector<8xf32> to vector<1x1x8xf32>
    %33 = vector.broadcast %32 : vector<1x1x8xf32> to vector<16x16x8xf32>
    %34 = arith.mulf %29, %33 : vector<16x16x8xf32>
    %35 = arith.addf %28, %34 : vector<16x16x8xf32>
    %c0_28 = arith.constant 0 : index
    %c2 = arith.constant 2 : index
    %c0_29 = arith.constant 0 : index
    %36 = vector.load %arg13[%c0_28, %c2, %c0_29] : memref<18x18x8xf32, #tpu.memory_space<vmem>>, vector<16x16x8xf32>
    %c2_30 = arith.constant 2 : index
    %c0_31 = arith.constant 0 : index
    %37 = vector.load %arg4[%c2_30, %c0_31] : memref<9x8xf32, #tpu.memory_space<vmem>>, vector<1x8xf32>
    %38 = vector.shape_cast %37 : vector<1x8xf32> to vector<8xf32>
    %39 = vector.shape_cast %38 : vector<8xf32> to vector<1x1x8xf32>
    %40 = vector.broadcast %39 : vector<1x1x8xf32> to vector<16x16x8xf32>
    %41 = arith.mulf %36, %40 : vector<16x16x8xf32>
    %42 = arith.addf %35, %41 : vector<16x16x8xf32>
    %c1_32 = arith.constant 1 : index
    %c0_33 = arith.constant 0 : index
    %c0_34 = arith.constant 0 : index
    %43 = vector.load %arg13[%c1_32, %c0_33, %c0_34] : memref<18x18x8xf32, #tpu.memory_space<vmem>>, vector<16x16x8xf32>
    %c3 = arith.constant 3 : index
    %c0_35 = arith.constant 0 : index
    %44 = vector.load %arg4[%c3, %c0_35] : memref<9x8xf32, #tpu.memory_space<vmem>>, vector<1x8xf32>
    %45 = vector.shape_cast %44 : vector<1x8xf32> to vector<8xf32>
    %46 = vector.shape_cast %45 : vector<8xf32> to vector<1x1x8xf32>
    %47 = vector.broadcast %46 : vector<1x1x8xf32> to vector<16x16x8xf32>
    %48 = arith.mulf %43, %47 : vector<16x16x8xf32>
    %49 = arith.addf %42, %48 : vector<16x16x8xf32>
    %c1_36 = arith.constant 1 : index
    %c1_37 = arith.constant 1 : index
    %c0_38 = arith.constant 0 : index
    %50 = vector.load %arg13[%c1_36, %c1_37, %c0_38] : memref<18x18x8xf32, #tpu.memory_space<vmem>>, vector<16x16x8xf32>
    %c4 = arith.constant 4 : index
    %c0_39 = arith.constant 0 : index
    %51 = vector.load %arg4[%c4, %c0_39] : memref<9x8xf32, #tpu.memory_space<vmem>>, vector<1x8xf32>
    %52 = vector.shape_cast %51 : vector<1x8xf32> to vector<8xf32>
    %53 = vector.shape_cast %52 : vector<8xf32> to vector<1x1x8xf32>
    %54 = vector.broadcast %53 : vector<1x1x8xf32> to vector<16x16x8xf32>
    %55 = arith.mulf %50, %54 : vector<16x16x8xf32>
    %56 = arith.addf %49, %55 : vector<16x16x8xf32>
    %c1_40 = arith.constant 1 : index
    %c2_41 = arith.constant 2 : index
    %c0_42 = arith.constant 0 : index
    %57 = vector.load %arg13[%c1_40, %c2_41, %c0_42] : memref<18x18x8xf32, #tpu.memory_space<vmem>>, vector<16x16x8xf32>
    %c5 = arith.constant 5 : index
    %c0_43 = arith.constant 0 : index
    %58 = vector.load %arg4[%c5, %c0_43] : memref<9x8xf32, #tpu.memory_space<vmem>>, vector<1x8xf32>
    %59 = vector.shape_cast %58 : vector<1x8xf32> to vector<8xf32>
    %60 = vector.shape_cast %59 : vector<8xf32> to vector<1x1x8xf32>
    %61 = vector.broadcast %60 : vector<1x1x8xf32> to vector<16x16x8xf32>
    %62 = arith.mulf %57, %61 : vector<16x16x8xf32>
    %63 = arith.addf %56, %62 : vector<16x16x8xf32>
    %c2_44 = arith.constant 2 : index
    %c0_45 = arith.constant 0 : index
    %c0_46 = arith.constant 0 : index
    %64 = vector.load %arg13[%c2_44, %c0_45, %c0_46] : memref<18x18x8xf32, #tpu.memory_space<vmem>>, vector<16x16x8xf32>
    %c6 = arith.constant 6 : index
    %c0_47 = arith.constant 0 : index
    %65 = vector.load %arg4[%c6, %c0_47] : memref<9x8xf32, #tpu.memory_space<vmem>>, vector<1x8xf32>
    %66 = vector.shape_cast %65 : vector<1x8xf32> to vector<8xf32>
    %67 = vector.shape_cast %66 : vector<8xf32> to vector<1x1x8xf32>
    %68 = vector.broadcast %67 : vector<1x1x8xf32> to vector<16x16x8xf32>
    %69 = arith.mulf %64, %68 : vector<16x16x8xf32>
    %70 = arith.addf %63, %69 : vector<16x16x8xf32>
    %c2_48 = arith.constant 2 : index
    %c1_49 = arith.constant 1 : index
    %c0_50 = arith.constant 0 : index
    %71 = vector.load %arg13[%c2_48, %c1_49, %c0_50] : memref<18x18x8xf32, #tpu.memory_space<vmem>>, vector<16x16x8xf32>
    %c7 = arith.constant 7 : index
    %c0_51 = arith.constant 0 : index
    %72 = vector.load %arg4[%c7, %c0_51] : memref<9x8xf32, #tpu.memory_space<vmem>>, vector<1x8xf32>
    %73 = vector.shape_cast %72 : vector<1x8xf32> to vector<8xf32>
    %74 = vector.shape_cast %73 : vector<8xf32> to vector<1x1x8xf32>
    %75 = vector.broadcast %74 : vector<1x1x8xf32> to vector<16x16x8xf32>
    %76 = arith.mulf %71, %75 : vector<16x16x8xf32>
    %77 = arith.addf %70, %76 : vector<16x16x8xf32>
    %c2_52 = arith.constant 2 : index
    %c2_53 = arith.constant 2 : index
    %c0_54 = arith.constant 0 : index
    %78 = vector.load %arg13[%c2_52, %c2_53, %c0_54] : memref<18x18x8xf32, #tpu.memory_space<vmem>>, vector<16x16x8xf32>
    %c8 = arith.constant 8 : index
    %c0_55 = arith.constant 0 : index
    %79 = vector.load %arg4[%c8, %c0_55] : memref<9x8xf32, #tpu.memory_space<vmem>>, vector<1x8xf32>
    %80 = vector.shape_cast %79 : vector<1x8xf32> to vector<8xf32>
    %81 = vector.shape_cast %80 : vector<8xf32> to vector<1x1x8xf32>
    %82 = vector.broadcast %81 : vector<1x1x8xf32> to vector<16x16x8xf32>
    %83 = arith.mulf %78, %82 : vector<16x16x8xf32>
    %84 = arith.addf %77, %83 : vector<16x16x8xf32>
    %85 = vector.shape_cast %84 : vector<16x16x8xf32> to vector<256x8xf32>
    %c0_56 = arith.constant 0 : index
    %c0_57 = arith.constant 0 : index
    %86 = vector.load %arg5[%c0_56, %c0_57] : memref<1x8xf32, #tpu.memory_space<vmem>>, vector<1x8xf32>
    %87 = vector.broadcast %86 : vector<1x8xf32> to vector<256x8xf32>
    %88 = arith.addf %85, %87 : vector<256x8xf32>
    %cst_58 = arith.constant dense<0.000000e+00> : vector<8xf32>
    %89 = vector.multi_reduction <add>, %88, %cst_58 [0] : vector<256x8xf32> to vector<8xf32>
    %90 = vector.shape_cast %89 : vector<8xf32> to vector<1x8xf32>
    %cst_59 = arith.constant 2.560000e+02 : f32
    %91 = vector.broadcast %cst_59 : f32 to vector<1x8xf32>
    %92 = arith.divf %90, %91 : vector<1x8xf32>
    %c0_60 = arith.constant 0 : index
    %c0_61 = arith.constant 0 : index
    %93 = vector.load %arg6[%c0_60, %c0_61] : memref<8x2xf32, #tpu.memory_space<vmem>>, vector<8x2xf32>
    %cst_62 = arith.constant dense<0.000000e+00> : vector<1x2xf32>
    %94 = tpu.matmul %92, %93, %cst_62 {dimension_numbers = #tpu.dot_dimension_numbers<[1], [0], [0], [1], [0, 0, 1, 1], [], []>} : vector<1x8xf32>, vector<8x2xf32>, vector<1x2xf32> -> vector<1x2xf32>
    %c0_63 = arith.constant 0 : index
    %c0_64 = arith.constant 0 : index
    %95 = vector.load %arg7[%c0_63, %c0_64] : memref<1x2xf32, #tpu.memory_space<vmem>>, vector<1x2xf32>
    %96 = arith.addf %94, %95 : vector<1x2xf32>
    %cst_65 = arith.constant 0.000000e+00 : f32
    %97 = vector.broadcast %cst_65 : f32 to vector<1x2xf32>
    %98 = arith.maximumf %96, %97 : vector<1x2xf32>
    %c0_66 = arith.constant 0 : index
    %c0_67 = arith.constant 0 : index
    %99 = vector.load %arg8[%c0_66, %c0_67] : memref<2x8xf32, #tpu.memory_space<vmem>>, vector<2x8xf32>
    %cst_68 = arith.constant dense<0.000000e+00> : vector<1x8xf32>
    %100 = tpu.matmul %98, %99, %cst_68 {dimension_numbers = #tpu.dot_dimension_numbers<[1], [0], [0], [1], [0, 0, 1, 1], [], []>} : vector<1x2xf32>, vector<2x8xf32>, vector<1x8xf32> -> vector<1x8xf32>
    %c0_69 = arith.constant 0 : index
    %c0_70 = arith.constant 0 : index
    %101 = vector.load %arg9[%c0_69, %c0_70] : memref<1x8xf32, #tpu.memory_space<vmem>>, vector<1x8xf32>
    %102 = arith.addf %100, %101 : vector<1x8xf32>
    %cst_71 = arith.constant 3.000000e+00 : f32
    %103 = vector.broadcast %cst_71 : f32 to vector<1x8xf32>
    %104 = arith.addf %102, %103 : vector<1x8xf32>
    %cst_72 = arith.constant 0.000000e+00 : f32
    %cst_73 = arith.constant 6.000000e+00 : f32
    %105 = vector.broadcast %cst_72 : f32 to vector<1x8xf32>
    %106 = arith.maximumf %105, %104 : vector<1x8xf32>
    %107 = vector.broadcast %cst_73 : f32 to vector<1x8xf32>
    %108 = arith.minimumf %107, %106 : vector<1x8xf32>
    %cst_74 = arith.constant 0.166666672 : f32
    %109 = vector.broadcast %cst_74 : f32 to vector<1x8xf32>
    %110 = arith.mulf %108, %109 : vector<1x8xf32>
    %111 = vector.broadcast %110 : vector<1x8xf32> to vector<256x8xf32>
    %112 = arith.mulf %88, %111 : vector<256x8xf32>
    %cst_75 = arith.constant 3.000000e+00 : f32
    %113 = vector.broadcast %cst_75 : f32 to vector<256x8xf32>
    %114 = arith.addf %112, %113 : vector<256x8xf32>
    %cst_76 = arith.constant 0.000000e+00 : f32
    %cst_77 = arith.constant 6.000000e+00 : f32
    %115 = vector.broadcast %cst_76 : f32 to vector<256x8xf32>
    %116 = arith.maximumf %115, %114 : vector<256x8xf32>
    %117 = vector.broadcast %cst_77 : f32 to vector<256x8xf32>
    %118 = arith.minimumf %117, %116 : vector<256x8xf32>
    %cst_78 = arith.constant 0.166666672 : f32
    %119 = vector.broadcast %cst_78 : f32 to vector<256x8xf32>
    %120 = arith.mulf %118, %119 : vector<256x8xf32>
    %121 = arith.mulf %112, %120 : vector<256x8xf32>
    %c0_79 = arith.constant 0 : index
    %c0_80 = arith.constant 0 : index
    %122 = vector.load %arg10[%c0_79, %c0_80] : memref<8x4xf32, #tpu.memory_space<vmem>>, vector<8x4xf32>
    %cst_81 = arith.constant dense<0.000000e+00> : vector<256x4xf32>
    %123 = tpu.matmul %121, %122, %cst_81 {dimension_numbers = #tpu.dot_dimension_numbers<[1], [0], [0], [1], [0, 0, 1, 1], [], []>} : vector<256x8xf32>, vector<8x4xf32>, vector<256x4xf32> -> vector<256x4xf32>
    %c0_82 = arith.constant 0 : index
    %c0_83 = arith.constant 0 : index
    %124 = vector.load %arg11[%c0_82, %c0_83] : memref<1x4xf32, #tpu.memory_space<vmem>>, vector<1x4xf32>
    %125 = vector.broadcast %124 : vector<1x4xf32> to vector<256x4xf32>
    %126 = arith.addf %123, %125 : vector<256x4xf32>
    %127 = arith.addf %126, %4 : vector<256x4xf32>
    %128 = vector.shape_cast %127 : vector<256x4xf32> to vector<16x16x4xf32>
    %c0_84 = arith.constant 0 : index
    %c0_85 = arith.constant 0 : index
    %c0_86 = arith.constant 0 : index
    %c0_87 = arith.constant 0 : index
    %129 = vector.load %arg12[%c0_84, %c0_85, %c0_86, %c0_87] : memref<2x16x16x4xf32, #tpu.memory_space<vmem>>, vector<1x16x16x4xf32>
    %130 = vector.shape_cast %129 : vector<1x16x16x4xf32> to vector<16x16x4xf32>
    %131 = vector.shape_cast %128 : vector<16x16x4xf32> to vector<1x16x16x4xf32>
    tpu.vector_store %arg12[%c0_84, %c0_85, %c0_86, %c0_87], %131 {strides = array<i32>} : memref<2x16x16x4xf32, #tpu.memory_space<vmem>>, vector<1x16x16x4xf32>,
    %c1_88 = arith.constant 1 : index
    %c0_89 = arith.constant 0 : index
    %c0_90 = arith.constant 0 : index
    %c0_91 = arith.constant 0 : index
    %132 = vector.load %arg1[%c1_88, %c0_89, %c0_90, %c0_91] : memref<2x16x16x4xf32, #tpu.memory_space<vmem>>, vector<1x16x16x4xf32>
    %133 = vector.shape_cast %132 : vector<1x16x16x4xf32> to vector<16x16x4xf32>
    %134 = vector.shape_cast %133 : vector<16x16x4xf32> to vector<256x4xf32>
    %c0_92 = arith.constant 0 : index
    %c0_93 = arith.constant 0 : index
    %135 = vector.load %arg2[%c0_92, %c0_93] : memref<4x8xf32, #tpu.memory_space<vmem>>, vector<4x8xf32>
    %cst_94 = arith.constant dense<0.000000e+00> : vector<256x8xf32>
    %136 = tpu.matmul %134, %135, %cst_94 {dimension_numbers = #tpu.dot_dimension_numbers<[1], [0], [0], [1], [0, 0, 1, 1], [], []>} : vector<256x4xf32>, vector<4x8xf32>, vector<256x8xf32> -> vector<256x8xf32>
    %c0_95 = arith.constant 0 : index
    %c0_96 = arith.constant 0 : index
    %137 = vector.load %arg3[%c0_95, %c0_96] : memref<1x8xf32, #tpu.memory_space<vmem>>, vector<1x8xf32>
    %138 = vector.broadcast %137 : vector<1x8xf32> to vector<256x8xf32>
    %139 = arith.addf %136, %138 : vector<256x8xf32>
    %cst_97 = arith.constant 3.000000e+00 : f32
    %140 = vector.broadcast %cst_97 : f32 to vector<256x8xf32>
    %141 = arith.addf %139, %140 : vector<256x8xf32>
    %cst_98 = arith.constant 0.000000e+00 : f32
    %cst_99 = arith.constant 6.000000e+00 : f32
    %142 = vector.broadcast %cst_98 : f32 to vector<256x8xf32>
    %143 = arith.maximumf %142, %141 : vector<256x8xf32>
    %144 = vector.broadcast %cst_99 : f32 to vector<256x8xf32>
    %145 = arith.minimumf %144, %143 : vector<256x8xf32>
    %cst_100 = arith.constant 0.166666672 : f32
    %146 = vector.broadcast %cst_100 : f32 to vector<256x8xf32>
    %147 = arith.mulf %145, %146 : vector<256x8xf32>
    %148 = arith.mulf %139, %147 : vector<256x8xf32>
    %149 = vector.shape_cast %148 : vector<256x8xf32> to vector<16x16x8xf32>
    %c1_101 = arith.constant 1 : index
    %c1_102 = arith.constant 1 : index
    %c0_103 = arith.constant 0 : index
    %150 = vector.load %arg13[%c1_101, %c1_102, %c0_103] : memref<18x18x8xf32, #tpu.memory_space<vmem>>, vector<16x16x8xf32>
    tpu.vector_store %arg13[%c1_101, %c1_102, %c0_103], %149 {strides = array<i32>} : memref<18x18x8xf32, #tpu.memory_space<vmem>>, vector<16x16x8xf32>,
    %cst_104 = arith.constant 0.000000e+00 : f32
    %151 = vector.broadcast %cst_104 : f32 to vector<16x16x8xf32>
    %c0_105 = arith.constant 0 : index
    %c0_106 = arith.constant 0 : index
    %c0_107 = arith.constant 0 : index
    %152 = vector.load %arg13[%c0_105, %c0_106, %c0_107] : memref<18x18x8xf32, #tpu.memory_space<vmem>>, vector<16x16x8xf32>
    %c0_108 = arith.constant 0 : index
    %c0_109 = arith.constant 0 : index
    %153 = vector.load %arg4[%c0_108, %c0_109] : memref<9x8xf32, #tpu.memory_space<vmem>>, vector<1x8xf32>
    %154 = vector.shape_cast %153 : vector<1x8xf32> to vector<8xf32>
    %155 = vector.shape_cast %154 : vector<8xf32> to vector<1x1x8xf32>
    %156 = vector.broadcast %155 : vector<1x1x8xf32> to vector<16x16x8xf32>
    %157 = arith.mulf %152, %156 : vector<16x16x8xf32>
    %158 = arith.addf %151, %157 : vector<16x16x8xf32>
    %c0_110 = arith.constant 0 : index
    %c1_111 = arith.constant 1 : index
    %c0_112 = arith.constant 0 : index
    %159 = vector.load %arg13[%c0_110, %c1_111, %c0_112] : memref<18x18x8xf32, #tpu.memory_space<vmem>>, vector<16x16x8xf32>
    %c1_113 = arith.constant 1 : index
    %c0_114 = arith.constant 0 : index
    %160 = vector.load %arg4[%c1_113, %c0_114] : memref<9x8xf32, #tpu.memory_space<vmem>>, vector<1x8xf32>
    %161 = vector.shape_cast %160 : vector<1x8xf32> to vector<8xf32>
    %162 = vector.shape_cast %161 : vector<8xf32> to vector<1x1x8xf32>
    %163 = vector.broadcast %162 : vector<1x1x8xf32> to vector<16x16x8xf32>
    %164 = arith.mulf %159, %163 : vector<16x16x8xf32>
    %165 = arith.addf %158, %164 : vector<16x16x8xf32>
    %c0_115 = arith.constant 0 : index
    %c2_116 = arith.constant 2 : index
    %c0_117 = arith.constant 0 : index
    %166 = vector.load %arg13[%c0_115, %c2_116, %c0_117] : memref<18x18x8xf32, #tpu.memory_space<vmem>>, vector<16x16x8xf32>
    %c2_118 = arith.constant 2 : index
    %c0_119 = arith.constant 0 : index
    %167 = vector.load %arg4[%c2_118, %c0_119] : memref<9x8xf32, #tpu.memory_space<vmem>>, vector<1x8xf32>
    %168 = vector.shape_cast %167 : vector<1x8xf32> to vector<8xf32>
    %169 = vector.shape_cast %168 : vector<8xf32> to vector<1x1x8xf32>
    %170 = vector.broadcast %169 : vector<1x1x8xf32> to vector<16x16x8xf32>
    %171 = arith.mulf %166, %170 : vector<16x16x8xf32>
    %172 = arith.addf %165, %171 : vector<16x16x8xf32>
    %c1_120 = arith.constant 1 : index
    %c0_121 = arith.constant 0 : index
    %c0_122 = arith.constant 0 : index
    %173 = vector.load %arg13[%c1_120, %c0_121, %c0_122] : memref<18x18x8xf32, #tpu.memory_space<vmem>>, vector<16x16x8xf32>
    %c3_123 = arith.constant 3 : index
    %c0_124 = arith.constant 0 : index
    %174 = vector.load %arg4[%c3_123, %c0_124] : memref<9x8xf32, #tpu.memory_space<vmem>>, vector<1x8xf32>
    %175 = vector.shape_cast %174 : vector<1x8xf32> to vector<8xf32>
    %176 = vector.shape_cast %175 : vector<8xf32> to vector<1x1x8xf32>
    %177 = vector.broadcast %176 : vector<1x1x8xf32> to vector<16x16x8xf32>
    %178 = arith.mulf %173, %177 : vector<16x16x8xf32>
    %179 = arith.addf %172, %178 : vector<16x16x8xf32>
    %c1_125 = arith.constant 1 : index
    %c1_126 = arith.constant 1 : index
    %c0_127 = arith.constant 0 : index
    %180 = vector.load %arg13[%c1_125, %c1_126, %c0_127] : memref<18x18x8xf32, #tpu.memory_space<vmem>>, vector<16x16x8xf32>
    %c4_128 = arith.constant 4 : index
    %c0_129 = arith.constant 0 : index
    %181 = vector.load %arg4[%c4_128, %c0_129] : memref<9x8xf32, #tpu.memory_space<vmem>>, vector<1x8xf32>
    %182 = vector.shape_cast %181 : vector<1x8xf32> to vector<8xf32>
    %183 = vector.shape_cast %182 : vector<8xf32> to vector<1x1x8xf32>
    %184 = vector.broadcast %183 : vector<1x1x8xf32> to vector<16x16x8xf32>
    %185 = arith.mulf %180, %184 : vector<16x16x8xf32>
    %186 = arith.addf %179, %185 : vector<16x16x8xf32>
    %c1_130 = arith.constant 1 : index
    %c2_131 = arith.constant 2 : index
    %c0_132 = arith.constant 0 : index
    %187 = vector.load %arg13[%c1_130, %c2_131, %c0_132] : memref<18x18x8xf32, #tpu.memory_space<vmem>>, vector<16x16x8xf32>
    %c5_133 = arith.constant 5 : index
    %c0_134 = arith.constant 0 : index
    %188 = vector.load %arg4[%c5_133, %c0_134] : memref<9x8xf32, #tpu.memory_space<vmem>>, vector<1x8xf32>
    %189 = vector.shape_cast %188 : vector<1x8xf32> to vector<8xf32>
    %190 = vector.shape_cast %189 : vector<8xf32> to vector<1x1x8xf32>
    %191 = vector.broadcast %190 : vector<1x1x8xf32> to vector<16x16x8xf32>
    %192 = arith.mulf %187, %191 : vector<16x16x8xf32>
    %193 = arith.addf %186, %192 : vector<16x16x8xf32>
    %c2_135 = arith.constant 2 : index
    %c0_136 = arith.constant 0 : index
    %c0_137 = arith.constant 0 : index
    %194 = vector.load %arg13[%c2_135, %c0_136, %c0_137] : memref<18x18x8xf32, #tpu.memory_space<vmem>>, vector<16x16x8xf32>
    %c6_138 = arith.constant 6 : index
    %c0_139 = arith.constant 0 : index
    %195 = vector.load %arg4[%c6_138, %c0_139] : memref<9x8xf32, #tpu.memory_space<vmem>>, vector<1x8xf32>
    %196 = vector.shape_cast %195 : vector<1x8xf32> to vector<8xf32>
    %197 = vector.shape_cast %196 : vector<8xf32> to vector<1x1x8xf32>
    %198 = vector.broadcast %197 : vector<1x1x8xf32> to vector<16x16x8xf32>
    %199 = arith.mulf %194, %198 : vector<16x16x8xf32>
    %200 = arith.addf %193, %199 : vector<16x16x8xf32>
    %c2_140 = arith.constant 2 : index
    %c1_141 = arith.constant 1 : index
    %c0_142 = arith.constant 0 : index
    %201 = vector.load %arg13[%c2_140, %c1_141, %c0_142] : memref<18x18x8xf32, #tpu.memory_space<vmem>>, vector<16x16x8xf32>
    %c7_143 = arith.constant 7 : index
    %c0_144 = arith.constant 0 : index
    %202 = vector.load %arg4[%c7_143, %c0_144] : memref<9x8xf32, #tpu.memory_space<vmem>>, vector<1x8xf32>
    %203 = vector.shape_cast %202 : vector<1x8xf32> to vector<8xf32>
    %204 = vector.shape_cast %203 : vector<8xf32> to vector<1x1x8xf32>
    %205 = vector.broadcast %204 : vector<1x1x8xf32> to vector<16x16x8xf32>
    %206 = arith.mulf %201, %205 : vector<16x16x8xf32>
    %207 = arith.addf %200, %206 : vector<16x16x8xf32>
    %c2_145 = arith.constant 2 : index
    %c2_146 = arith.constant 2 : index
    %c0_147 = arith.constant 0 : index
    %208 = vector.load %arg13[%c2_145, %c2_146, %c0_147] : memref<18x18x8xf32, #tpu.memory_space<vmem>>, vector<16x16x8xf32>
    %c8_148 = arith.constant 8 : index
    %c0_149 = arith.constant 0 : index
    %209 = vector.load %arg4[%c8_148, %c0_149] : memref<9x8xf32, #tpu.memory_space<vmem>>, vector<1x8xf32>
    %210 = vector.shape_cast %209 : vector<1x8xf32> to vector<8xf32>
    %211 = vector.shape_cast %210 : vector<8xf32> to vector<1x1x8xf32>
    %212 = vector.broadcast %211 : vector<1x1x8xf32> to vector<16x16x8xf32>
    %213 = arith.mulf %208, %212 : vector<16x16x8xf32>
    %214 = arith.addf %207, %213 : vector<16x16x8xf32>
    %215 = vector.shape_cast %214 : vector<16x16x8xf32> to vector<256x8xf32>
    %c0_150 = arith.constant 0 : index
    %c0_151 = arith.constant 0 : index
    %216 = vector.load %arg5[%c0_150, %c0_151] : memref<1x8xf32, #tpu.memory_space<vmem>>, vector<1x8xf32>
    %217 = vector.broadcast %216 : vector<1x8xf32> to vector<256x8xf32>
    %218 = arith.addf %215, %217 : vector<256x8xf32>
    %cst_152 = arith.constant dense<0.000000e+00> : vector<8xf32>
    %219 = vector.multi_reduction <add>, %218, %cst_152 [0] : vector<256x8xf32> to vector<8xf32>
    %220 = vector.shape_cast %219 : vector<8xf32> to vector<1x8xf32>
    %cst_153 = arith.constant 2.560000e+02 : f32
    %221 = vector.broadcast %cst_153 : f32 to vector<1x8xf32>
    %222 = arith.divf %220, %221 : vector<1x8xf32>
    %c0_154 = arith.constant 0 : index
    %c0_155 = arith.constant 0 : index
    %223 = vector.load %arg6[%c0_154, %c0_155] : memref<8x2xf32, #tpu.memory_space<vmem>>, vector<8x2xf32>
    %cst_156 = arith.constant dense<0.000000e+00> : vector<1x2xf32>
    %224 = tpu.matmul %222, %223, %cst_156 {dimension_numbers = #tpu.dot_dimension_numbers<[1], [0], [0], [1], [0, 0, 1, 1], [], []>} : vector<1x8xf32>, vector<8x2xf32>, vector<1x2xf32> -> vector<1x2xf32>
    %c0_157 = arith.constant 0 : index
    %c0_158 = arith.constant 0 : index
    %225 = vector.load %arg7[%c0_157, %c0_158] : memref<1x2xf32, #tpu.memory_space<vmem>>, vector<1x2xf32>
    %226 = arith.addf %224, %225 : vector<1x2xf32>
    %cst_159 = arith.constant 0.000000e+00 : f32
    %227 = vector.broadcast %cst_159 : f32 to vector<1x2xf32>
    %228 = arith.maximumf %226, %227 : vector<1x2xf32>
    %c0_160 = arith.constant 0 : index
    %c0_161 = arith.constant 0 : index
    %229 = vector.load %arg8[%c0_160, %c0_161] : memref<2x8xf32, #tpu.memory_space<vmem>>, vector<2x8xf32>
    %cst_162 = arith.constant dense<0.000000e+00> : vector<1x8xf32>
    %230 = tpu.matmul %228, %229, %cst_162 {dimension_numbers = #tpu.dot_dimension_numbers<[1], [0], [0], [1], [0, 0, 1, 1], [], []>} : vector<1x2xf32>, vector<2x8xf32>, vector<1x8xf32> -> vector<1x8xf32>
    %c0_163 = arith.constant 0 : index
    %c0_164 = arith.constant 0 : index
    %231 = vector.load %arg9[%c0_163, %c0_164] : memref<1x8xf32, #tpu.memory_space<vmem>>, vector<1x8xf32>
    %232 = arith.addf %230, %231 : vector<1x8xf32>
    %cst_165 = arith.constant 3.000000e+00 : f32
    %233 = vector.broadcast %cst_165 : f32 to vector<1x8xf32>
    %234 = arith.addf %232, %233 : vector<1x8xf32>
    %cst_166 = arith.constant 0.000000e+00 : f32
    %cst_167 = arith.constant 6.000000e+00 : f32
    %235 = vector.broadcast %cst_166 : f32 to vector<1x8xf32>
    %236 = arith.maximumf %235, %234 : vector<1x8xf32>
    %237 = vector.broadcast %cst_167 : f32 to vector<1x8xf32>
    %238 = arith.minimumf %237, %236 : vector<1x8xf32>
    %cst_168 = arith.constant 0.166666672 : f32
    %239 = vector.broadcast %cst_168 : f32 to vector<1x8xf32>
    %240 = arith.mulf %238, %239 : vector<1x8xf32>
    %241 = vector.broadcast %240 : vector<1x8xf32> to vector<256x8xf32>
    %242 = arith.mulf %218, %241 : vector<256x8xf32>
    %cst_169 = arith.constant 3.000000e+00 : f32
    %243 = vector.broadcast %cst_169 : f32 to vector<256x8xf32>
    %244 = arith.addf %242, %243 : vector<256x8xf32>
    %cst_170 = arith.constant 0.000000e+00 : f32
    %cst_171 = arith.constant 6.000000e+00 : f32
    %245 = vector.broadcast %cst_170 : f32 to vector<256x8xf32>
    %246 = arith.maximumf %245, %244 : vector<256x8xf32>
    %247 = vector.broadcast %cst_171 : f32 to vector<256x8xf32>
    %248 = arith.minimumf %247, %246 : vector<256x8xf32>
    %cst_172 = arith.constant 0.166666672 : f32
    %249 = vector.broadcast %cst_172 : f32 to vector<256x8xf32>
    %250 = arith.mulf %248, %249 : vector<256x8xf32>
    %251 = arith.mulf %242, %250 : vector<256x8xf32>
    %c0_173 = arith.constant 0 : index
    %c0_174 = arith.constant 0 : index
    %252 = vector.load %arg10[%c0_173, %c0_174] : memref<8x4xf32, #tpu.memory_space<vmem>>, vector<8x4xf32>
    %cst_175 = arith.constant dense<0.000000e+00> : vector<256x4xf32>
    %253 = tpu.matmul %251, %252, %cst_175 {dimension_numbers = #tpu.dot_dimension_numbers<[1], [0], [0], [1], [0, 0, 1, 1], [], []>} : vector<256x8xf32>, vector<8x4xf32>, vector<256x4xf32> -> vector<256x4xf32>
    %c0_176 = arith.constant 0 : index
    %c0_177 = arith.constant 0 : index
    %254 = vector.load %arg11[%c0_176, %c0_177] : memref<1x4xf32, #tpu.memory_space<vmem>>, vector<1x4xf32>
    %255 = vector.broadcast %254 : vector<1x4xf32> to vector<256x4xf32>
    %256 = arith.addf %253, %255 : vector<256x4xf32>
    %257 = arith.addf %256, %134 : vector<256x4xf32>
    %258 = vector.shape_cast %257 : vector<256x4xf32> to vector<16x16x4xf32>
    %c1_178 = arith.constant 1 : index
    %c0_179 = arith.constant 0 : index
    %c0_180 = arith.constant 0 : index
    %c0_181 = arith.constant 0 : index
    %259 = vector.load %arg12[%c1_178, %c0_179, %c0_180, %c0_181] : memref<2x16x16x4xf32, #tpu.memory_space<vmem>>, vector<1x16x16x4xf32>
    %260 = vector.shape_cast %259 : vector<1x16x16x4xf32> to vector<16x16x4xf32>
    %261 = vector.shape_cast %258 : vector<16x16x4xf32> to vector<1x16x16x4xf32>
    tpu.vector_store %arg12[%c1_178, %c0_179, %c0_180, %c0_181], %261 {strides = array<i32>} : memref<2x16x16x4xf32, #tpu.memory_space<vmem>>, vector<1x16x16x4xf32>,
    return
  }
  func.func @transform_0(%arg0: i32) -> (i32, i32, i32, i32) {
    %c0_i32 = arith.constant 0 : i32
    %c0_i32_0 = arith.constant 0 : i32
    %c0_i32_1 = arith.constant 0 : i32
    %c0_i32_2 = arith.constant 0 : i32
    return %arg0, %c0_i32, %c0_i32_0, %c0_i32_1 : i32, i32, i32, i32
  }
  func.func @transform_1(%arg0: i32) -> (i32, i32) {
    %c0_i32 = arith.constant 0 : i32
    %c0_i32_0 = arith.constant 0 : i32
    %c0_i32_1 = arith.constant 0 : i32
    return %c0_i32, %c0_i32_0 : i32, i32
  }
  func.func @transform_2(%arg0: i32) -> (i32, i32) {
    %c0_i32 = arith.constant 0 : i32
    %c0_i32_0 = arith.constant 0 : i32
    %c0_i32_1 = arith.constant 0 : i32
    return %c0_i32, %c0_i32_0 : i32, i32
  }
  func.func @transform_3(%arg0: i32) -> (i32, i32) {
    %c0_i32 = arith.constant 0 : i32
    %c0_i32_0 = arith.constant 0 : i32
    %c0_i32_1 = arith.constant 0 : i32
    return %c0_i32, %c0_i32_0 : i32, i32
  }
  func.func @transform_4(%arg0: i32) -> (i32, i32) {
    %c0_i32 = arith.constant 0 : i32
    %c0_i32_0 = arith.constant 0 : i32
    %c0_i32_1 = arith.constant 0 : i32
    return %c0_i32, %c0_i32_0 : i32, i32
  }
  func.func @transform_5(%arg0: i32) -> (i32, i32) {
    %c0_i32 = arith.constant 0 : i32
    %c0_i32_0 = arith.constant 0 : i32
    %c0_i32_1 = arith.constant 0 : i32
    return %c0_i32, %c0_i32_0 : i32, i32
  }
  func.func @transform_6(%arg0: i32) -> (i32, i32) {
    %c0_i32 = arith.constant 0 : i32
    %c0_i32_0 = arith.constant 0 : i32
    %c0_i32_1 = arith.constant 0 : i32
    return %c0_i32, %c0_i32_0 : i32, i32
  }
  func.func @transform_7(%arg0: i32) -> (i32, i32) {
    %c0_i32 = arith.constant 0 : i32
    %c0_i32_0 = arith.constant 0 : i32
    %c0_i32_1 = arith.constant 0 : i32
    return %c0_i32, %c0_i32_0 : i32, i32
  }
  func.func @transform_8(%arg0: i32) -> (i32, i32) {
    %c0_i32 = arith.constant 0 : i32
    %c0_i32_0 = arith.constant 0 : i32
    %c0_i32_1 = arith.constant 0 : i32
    return %c0_i32, %c0_i32_0 : i32, i32
  }
  func.func @transform_9(%arg0: i32) -> (i32, i32) {
    %c0_i32 = arith.constant 0 : i32
    %c0_i32_0 = arith.constant 0 : i32
    %c0_i32_1 = arith.constant 0 : i32
    return %c0_i32, %c0_i32_0 : i32, i32
  }
  func.func @transform_10(%arg0: i32) -> (i32, i32) {
    %c0_i32 = arith.constant 0 : i32
    %c0_i32_0 = arith.constant 0 : i32
    %c0_i32_1 = arith.constant 0 : i32
    return %c0_i32, %c0_i32_0 : i32, i32
  }
  func.func @transform_11(%arg0: i32) -> (i32, i32, i32, i32) {
    %c0_i32 = arith.constant 0 : i32
    %c0_i32_0 = arith.constant 0 : i32
    %c0_i32_1 = arith.constant 0 : i32
    %c0_i32_2 = arith.constant 0 : i32
    return %arg0, %c0_i32, %c0_i32_0, %c0_i32_1 : i32, i32, i32, i32
  }
}

</mosaic_0001>

<llo_original>
// kernel: tpu_custom_call.1
$region0: #{tpu_custom_call.1}
  #allocation0 [shape = 'u32[]', space=smem, size = 0x4, offset = 0x4, fixed_abs, tag = 'smem constant byte address 0x4 - core index']
  #allocation1 [shape = 'u32[144,128]{1,0:T(1,128)}', space=vmem, size = 0x12000, scoped, tag = 'internal scratch']
  #allocation2 [shape = 'f32[18,18,8]{2,1,0:T(8,128)}', space=vmem, size = 0x36000, scoped, tag = 'scratch operand']
  %s0 = inlined_call_operand.vmem [shape: f32[2,16,16,4], index: 0, kind: input, shape index: {}]
  %s1 = inlined_call_operand.vmem [shape: f32[4,8], index: 1, kind: input, shape index: {}]
  %s2 = inlined_call_operand.vmem [shape: f32[1,8], index: 2, kind: input, shape index: {}]
  %s3 = inlined_call_operand.vmem [shape: f32[9,8], index: 3, kind: input, shape index: {}]
  %s4 = inlined_call_operand.vmem [shape: f32[1,8], index: 4, kind: input, shape index: {}]
  %s5 = inlined_call_operand.vmem [shape: f32[8,2], index: 5, kind: input, shape index: {}]
  %s6 = inlined_call_operand.vmem [shape: f32[1,2], index: 6, kind: input, shape index: {}]
  %s7 = inlined_call_operand.vmem [shape: f32[2,8], index: 7, kind: input, shape index: {}]
  %s8 = inlined_call_operand.vmem [shape: f32[1,8], index: 8, kind: input, shape index: {}]
  %s9 = inlined_call_operand.vmem [shape: f32[8,4], index: 9, kind: input, shape index: {}]
  %s10 = inlined_call_operand.vmem [shape: f32[1,4], index: 10, kind: input, shape index: {}]
  %s11 = inlined_call_operand.vmem [shape: f32[2,16,16,4], index: 11, kind: output, shape index: {}]
  %s12 = sld [smem:[#allocation0]]
  $region54: #{tpu_custom_call.1} parent=0
    _
  %s14 = ssub.s32 1, %s12
  %s15 = scalar_select 0, %s14, %s12
  // Predicated region
  $region2: #{tpu_custom_call.1} parent=0 // pred_check
    _
  $region3: #{tpu_custom_call.1} parent=0 // pred_check_branch
    %17 = sbr.rel (0) target = $region5
  $region4: #{tpu_custom_call.1} parent=0 // pred_region
    _
  $region5: #{tpu_custom_call.1} parent=0 // pred_fallthru
    _
  // Predicated region
  $region6: #{tpu_custom_call.1} parent=0 // pred_check
    _
  $region7: #{tpu_custom_call.1} parent=0 // pred_check_branch
    %19 = sbr.rel (0) target = $region9
  $region8: #{tpu_custom_call.1} parent=0 // pred_region
    _
  $region9: #{tpu_custom_call.1} parent=0 // pred_fallthru
    _
  // Predicated region
  $region10: #{tpu_custom_call.1} parent=0 // pred_check
    _
  $region11: #{tpu_custom_call.1} parent=0 // pred_check_branch
    %21 = sbr.rel (0) target = $region13
  $region12: #{tpu_custom_call.1} parent=0 // pred_region
    _
  $region13: #{tpu_custom_call.1} parent=0 // pred_fallthru
    _
  // Predicated region
  $region14: #{tpu_custom_call.1} parent=0 // pred_check
    _
  $region15: #{tpu_custom_call.1} parent=0 // pred_check_branch
    %23 = sbr.rel (0) target = $region17
  $region16: #{tpu_custom_call.1} parent=0 // pred_region
    _
  $region17: #{tpu_custom_call.1} parent=0 // pred_fallthru
    _
  // Predicated region
  $region18: #{tpu_custom_call.1} parent=0 // pred_check
    _
  $region19: #{tpu_custom_call.1} parent=0 // pred_check_branch
    %25 = sbr.rel (0) target = $region21
  $region20: #{tpu_custom_call.1} parent=0 // pred_region
    _
  $region21: #{tpu_custom_call.1} parent=0 // pred_fallthru
    _
  // Predicated region
  $region22: #{tpu_custom_call.1} parent=0 // pred_check
    _
  $region23: #{tpu_custom_call.1} parent=0 // pred_check_branch
    %27 = sbr.rel (0) target = $region25
  $region24: #{tpu_custom_call.1} parent=0 // pred_region
    _
  $region25: #{tpu_custom_call.1} parent=0 // pred_fallthru
    _
  // Predicated region
  $region26: #{tpu_custom_call.1} parent=0 // pred_check
    _
  $region27: #{tpu_custom_call.1} parent=0 // pred_check_branch
    %29 = sbr.rel (0) target = $region29
  $region28: #{tpu_custom_call.1} parent=0 // pred_region
    _
  $region29: #{tpu_custom_call.1} parent=0 // pred_fallthru
    _
  // Predicated region
  $region30: #{tpu_custom_call.1} parent=0 // pred_check
    _
  $region31: #{tpu_custom_call.1} parent=0 // pred_check_branch
    %31 = sbr.rel (0) target = $region33
  $region32: #{tpu_custom_call.1} parent=0 // pred_region
    _
  $region33: #{tpu_custom_call.1} parent=0 // pred_fallthru
    _
  // Predicated region
  $region34: #{tpu_custom_call.1} parent=0 // pred_check
    _
  $region35: #{tpu_custom_call.1} parent=0 // pred_check_branch
    %33 = sbr.rel (0) target = $region37
  $region36: #{tpu_custom_call.1} parent=0 // pred_region
    _
  $region37: #{tpu_custom_call.1} parent=0 // pred_fallthru
    _
  // Predicated region
  $region38: #{tpu_custom_call.1} parent=0 // pred_check
    _
  $region39: #{tpu_custom_call.1} parent=0 // pred_check_branch
    %35 = sbr.rel (0) target = $region41
  $region40: #{tpu_custom_call.1} parent=0 // pred_region
    _
  $region41: #{tpu_custom_call.1} parent=0 // pred_fallthru
    _
  // Predicated region
  $region42: #{tpu_custom_call.1} parent=0 // pred_check
    _
  $region43: #{tpu_custom_call.1} parent=0 // pred_check_branch
    %37 = sbr.rel (0) target = $region45
  $region44: #{tpu_custom_call.1} parent=0 // pred_region
    _
  $region45: #{tpu_custom_call.1} parent=0 // pred_fallthru
    _
  %vm38 = vcmask 64512
  %39 = vst.msk [vmem:[#allocation2] sm:$0xff] %vm38, 0.0
  %40 = vst.msk [vmem:[#allocation2 + $0x8] sm:$0xff] %vm38, 0.0
  %vm41 = vcmask 58368
  %42 = vst.msk [vmem:[#allocation2 + $0x10] sm:$0x3] %vm41, 0.0
  %43 = vst.msk [vmem:[#allocation2 + $0x18] sm:$0xff] %vm38, 0.0
  %44 = vst.msk [vmem:[#allocation2 + $0x20] sm:$0xff] %vm38, 0.0
  %45 = vst.msk [vmem:[#allocation2 + $0x28] sm:$0x3] %vm41, 0.0
  %46 = vst.msk [vmem:[#allocation2 + $0x30] sm:$0xff] %vm38, 0.0
  %47 = vst.msk [vmem:[#allocation2 + $0x38] sm:$0xff] %vm38, 0.0
  %48 = vst.msk [vmem:[#allocation2 + $0x40] sm:$0x3] %vm41, 0.0
  %49 = vst.msk [vmem:[#allocation2 + $0x48] sm:$0xff] %vm38, 0.0
  %50 = vst.msk [vmem:[#allocation2 + $0x50] sm:$0xff] %vm38, 0.0
  %51 = vst.msk [vmem:[#allocation2 + $0x58] sm:$0x3] %vm41, 0.0
  %52 = vst.msk [vmem:[#allocation2 + $0x60] sm:$0xff] %vm38, 0.0
  %53 = vst.msk [vmem:[#allocation2 + $0x68] sm:$0xff] %vm38, 0.0
  %54 = vst.msk [vmem:[#allocation2 + $0x70] sm:$0x3] %vm41, 0.0
  %55 = vst.msk [vmem:[#allocation2 + $0x78] sm:$0xff] %vm38, 0.0
  %56 = vst.msk [vmem:[#allocation2 + $0x80] sm:$0xff] %vm38, 0.0
  %57 = vst.msk [vmem:[#allocation2 + $0x88] sm:$0x3] %vm41, 0.0
  %58 = vst.msk [vmem:[#allocation2 + $0x90] sm:$0xff] %vm38, 0.0
  %59 = vst.msk [vmem:[#allocation2 + $0x98] sm:$0xff] %vm38, 0.0
  %60 = vst.msk [vmem:[#allocation2 + $0xa0] sm:$0x3] %vm41, 0.0
  %61 = vst.msk [vmem:[#allocation2 + $0xa8] sm:$0xff] %vm38, 0.0
  %62 = vst.msk [vmem:[#allocation2 + $0xb0] sm:$0xff] %vm38, 0.0
  %63 = vst.msk [vmem:[#allocation2 + $0xb8] sm:$0x3] %vm41, 0.0
  %64 = vst.msk [vmem:[#allocation2 + $0xc0] sm:$0xff] %vm38, 0.0
  %65 = vst.msk [vmem:[#allocation2 + $0xc8] sm:$0xff] %vm38, 0.0
  %66 = vst.msk [vmem:[#allocation2 + $0xd0] sm:$0x3] %vm41, 0.0
  %67 = vst.msk [vmem:[#allocation2 + $0xd8] sm:$0xff] %vm38, 0.0
  %68 = vst.msk [vmem:[#allocation2 + $0xe0] sm:$0xff] %vm38, 0.0
  %69 = vst.msk [vmem:[#allocation2 + $0xe8] sm:$0x3] %vm41, 0.0
  %70 = vst.msk [vmem:[#allocation2 + $0xf0] sm:$0xff] %vm38, 0.0
  %71 = vst.msk [vmem:[#allocation2 + $0xf8] sm:$0xff] %vm38, 0.0
  %72 = vst.msk [vmem:[#allocation2 + $0x100] sm:$0x3] %vm41, 0.0
  %73 = vst.msk [vmem:[#allocation2 + $0x108] sm:$0xff] %vm38, 0.0
  %74 = vst.msk [vmem:[#allocation2 + $0x110] sm:$0xff] %vm38, 0.0
  %75 = vst.msk [vmem:[#allocation2 + $0x118] sm:$0x3] %vm41, 0.0
  %76 = vst.msk [vmem:[#allocation2 + $0x120] sm:$0xff] %vm38, 0.0
  %77 = vst.msk [vmem:[#allocation2 + $0x128] sm:$0xff] %vm38, 0.0
  %78 = vst.msk [vmem:[#allocation2 + $0x130] sm:$0x3] %vm41, 0.0
  %79 = vst.msk [vmem:[#allocation2 + $0x138] sm:$0xff] %vm38, 0.0
  %80 = vst.msk [vmem:[#allocation2 + $0x140] sm:$0xff] %vm38, 0.0
  %81 = vst.msk [vmem:[#allocation2 + $0x148] sm:$0x3] %vm41, 0.0
  %82 = vst.msk [vmem:[#allocation2 + $0x150] sm:$0xff] %vm38, 0.0
  %83 = vst.msk [vmem:[#allocation2 + $0x158] sm:$0xff] %vm38, 0.0
  %84 = vst.msk [vmem:[#allocation2 + $0x160] sm:$0x3] %vm41, 0.0
  %85 = vst.msk [vmem:[#allocation2 + $0x168] sm:$0xff] %vm38, 0.0
  %86 = vst.msk [vmem:[#allocation2 + $0x170] sm:$0xff] %vm38, 0.0
  %87 = vst.msk [vmem:[#allocation2 + $0x178] sm:$0x3] %vm41, 0.0
  %88 = vst.msk [vmem:[#allocation2 + $0x180] sm:$0xff] %vm38, 0.0
  %89 = vst.msk [vmem:[#allocation2 + $0x188] sm:$0xff] %vm38, 0.0
  %90 = vst.msk [vmem:[#allocation2 + $0x190] sm:$0x3] %vm41, 0.0
  %91 = vst.msk [vmem:[#allocation2 + $0x198] sm:$0xff] %vm38, 0.0
  %92 = vst.msk [vmem:[#allocation2 + $0x1a0] sm:$0xff] %vm38, 0.0
  %93 = vst.msk [vmem:[#allocation2 + $0x1a8] sm:$0x3] %vm41, 0.0
  %v94 = vld [vmem:[%s0] sm:$0xff]
  %v95 = vld [vmem:[%s0 + $0x8] sm:$0xff]
  %v96 = vld [vmem:[%s0 + $0x10] sm:$0xff]
  %v97 = vld [vmem:[%s0 + $0x18] sm:$0xff]
  %v98 = vld [vmem:[%s0 + $0x20] sm:$0xff]
  %v99 = vld [vmem:[%s0 + $0x28] sm:$0xff]
  %v100 = vld [vmem:[%s0 + $0x30] sm:$0xff]
  %v101 = vld [vmem:[%s0 + $0x38] sm:$0xff]
  %v102 = vld [vmem:[%s0 + $0x40] sm:$0xff]
  %v103 = vld [vmem:[%s0 + $0x48] sm:$0xff]
  %v104 = vld [vmem:[%s0 + $0x50] sm:$0xff]
  %v105 = vld [vmem:[%s0 + $0x58] sm:$0xff]
  %v106 = vld [vmem:[%s0 + $0x60] sm:$0xff]
  %v107 = vld [vmem:[%s0 + $0x68] sm:$0xff]
  %v108 = vld [vmem:[%s0 + $0x70] sm:$0xff]
  %v109 = vld [vmem:[%s0 + $0x78] sm:$0xff]
  %v110 = vld [vmem:[%s0 + $0x80] sm:$0xff]
  %v111 = vld [vmem:[%s0 + $0x88] sm:$0xff]
  %v112 = vld [vmem:[%s0 + $0x90] sm:$0xff]
  %v113 = vld [vmem:[%s0 + $0x98] sm:$0xff]
  %v114 = vld [vmem:[%s0 + $0xa0] sm:$0xff]
  %v115 = vld [vmem:[%s0 + $0xa8] sm:$0xff]
  %v116 = vld [vmem:[%s0 + $0xb0] sm:$0xff]
  %v117 = vld [vmem:[%s0 + $0xb8] sm:$0xff]
  %v118 = vld [vmem:[%s0 + $0xc0] sm:$0xff]
  %v119 = vld [vmem:[%s0 + $0xc8] sm:$0xff]
  %v120 = vld [vmem:[%s0 + $0xd0] sm:$0xff]
  %v121 = vld [vmem:[%s0 + $0xd8] sm:$0xff]
  %v122 = vld [vmem:[%s0 + $0xe0] sm:$0xff]
  %v123 = vld [vmem:[%s0 + $0xe8] sm:$0xff]
  %v124 = vld [vmem:[%s0 + $0xf0] sm:$0xff]
  %v125 = vld [vmem:[%s0 + $0xf8] sm:$0xff]
  %v126 = vld [vmem:[%s1] sm:$0xf]
  %v127 = vld [vmem:[%s2] sm:$0x1]
  %v129 = vlaneseq
  %v130 = vshrl.u32 %v129, 7
  %v131 = vsub.s32 0, %v130
  %v132 = vrot.slane %v127, %v131
  %vm134 = vcmask 31744
  %v136 = vsel %vm134, %v94, 0
  %v139 = vsel %vm134, %v95, 0
  %v142 = vsel %vm134, %v96, 0
  %v145 = vsel %vm134, %v97, 0
  %v148 = vsel %vm134, %v98, 0
  %v151 = vsel %vm134, %v99, 0
  %v154 = vsel %vm134, %v100, 0
  %v157 = vsel %vm134, %v101, 0
  %v160 = vsel %vm134, %v102, 0
  %v163 = vsel %vm134, %v103, 0
  %v166 = vsel %vm134, %v104, 0
  %v169 = vsel %vm134, %v105, 0
  %v172 = vsel %vm134, %v106, 0
  %v175 = vsel %vm134, %v107, 0
  %v178 = vsel %vm134, %v108, 0
  %v181 = vsel %vm134, %v109, 0
  %v184 = vsel %vm134, %v110, 0
  %v187 = vsel %vm134, %v111, 0
  %v190 = vsel %vm134, %v112, 0
  %v193 = vsel %vm134, %v113, 0
  %v196 = vsel %vm134, %v114, 0
  %v199 = vsel %vm134, %v115, 0
  %v202 = vsel %vm134, %v116, 0
  %v205 = vsel %vm134, %v117, 0
  %v208 = vsel %vm134, %v118, 0
  %v211 = vsel %vm134, %v119, 0
  %v214 = vsel %vm134, %v120, 0
  %v217 = vsel %vm134, %v121, 0
  %v220 = vsel %vm134, %v122, 0
  %v223 = vsel %vm134, %v123, 0
  %v226 = vsel %vm134, %v124, 0
  %v229 = vsel %vm134, %v125, 0
  %vm231 = vcmask 1043456
  %v233 = vsel %vm231, %v126, 0
  %235 = vmatprep.subr.mxu0 0.0
  %236 = vmatpush1.msra.mxu0 %v233
  %237 = vmatprep.subr.mxu0 0.0
  %238 = vmatpush1.msra.mxu0 0.0
  %239 = vmatprep.subr.mxu0 0.0
  %240 = vmatpush1.msra.mxu0 0.0
  %241 = vmatprep.subr.mxu0 0.0
  %242 = vmatpush1.msra.mxu0 0.0
  %243 = vmatprep.subr.mxu0 0.0
  %244 = vmatpush1.msra.mxu0 0.0
  %245 = vmatprep.subr.mxu0 0.0
  %246 = vmatpush1.msra.mxu0 0.0
  %247 = vmatprep.subr.mxu0 0.0
  %248 = vmatpush1.msra.mxu0 0.0
  %249 = vmatprep.subr.mxu0 0.0
  %250 = vmatpush1.msra.mxu0 0.0
  %251 = vmatprep.subr.mxu0 0.0
  %252 = vmatpush1.msra.mxu0 0.0
  %253 = vmatprep.subr.mxu0 0.0
  %254 = vmatpush1.msra.mxu0 0.0
  %255 = vmatprep.subr.mxu0 0.0
  %256 = vmatpush1.msra.mxu0 0.0
  %257 = vmatprep.subr.mxu0 0.0
  %258 = vmatpush1.msra.mxu0 0.0
  %259 = vmatprep.subr.mxu0 0.0
  %260 = vmatpush1.msra.mxu0 0.0
  %261 = vmatprep.subr.mxu0 0.0
  %262 = vmatpush1.msra.mxu0 0.0
  %263 = vmatprep.subr.mxu0 0.0
  %264 = vmatpush1.msra.mxu0 0.0
  %265 = vmatprep.subr.mxu0 0.0
  %266 = vmatpush1.msra.mxu0 0.0
  %267 = vmatprep.subr.mxu0 0.0
  %268 = vmatpush1.msra.mxu0 0.0
  %269 = vmatprep.subr.mxu0 0.0
  %270 = vmatpush1.msra.mxu0 0.0
  %271 = vmatprep.subr.mxu0 0.0
  %272 = vmatpush1.msra.mxu0 0.0
  %273 = vmatprep.subr.mxu0 0.0
  %274 = vmatpush1.msra.mxu0 0.0
  %275 = vmatprep.subr.mxu0 0.0
  %276 = vmatpush1.msra.mxu0 0.0
  %277 = vmatprep.subr.mxu0 0.0
  %278 = vmatpush1.msra.mxu0 0.0
  %279 = vmatprep.subr.mxu0 0.0
  %280 = vmatpush1.msra.mxu0 0.0
  %281 = vmatprep.subr.mxu0 0.0
  %282 = vmatpush1.msra.mxu0 0.0
  %283 = vmatprep.subr.mxu0 0.0
  %284 = vmatpush1.msra.mxu0 0.0
  %285 = vmatprep.subr.mxu0 0.0
  %286 = vmatpush1.msra.mxu0 0.0
  %287 = vmatprep.subr.mxu0 0.0
  %288 = vmatpush1.msra.mxu0 0.0
  %289 = vmatprep.subr.mxu0 0.0
  %290 = vmatpush1.msra.mxu0 0.0
  %291 = vmatprep.subr.mxu0 0.0
  %292 = vmatpush1.msra.mxu0 0.0
  %293 = vmatprep.subr.mxu0 0.0
  %294 = vmatpush1.msra.mxu0 0.0
  %295 = vmatprep.subr.mxu0 0.0
  %296 = vmatpush1.msra.mxu0 0.0
  %297 = vmatprep.subr.mxu0 0.0
  %298 = vmatpush1.msra.mxu0 0.0
  %299 = vmatprep.mubr.f32.mxu0 0.0
  %300 = vmatmul.mubr.f32.gmra.mrb[0].mxu0 %v136
  %v301 = vpop.f32.mrb[0].mxu0
  %v302 = vadd.f32 %v132, %v301
  %v303 = vpop.f32.mrb[0].mxu0
  %304 = vmatprep.mubr.f32.mxu0 0.0
  %305 = vmatmul.mubr.f32.gmra.mrb[0].mxu0 %v139
  %v306 = vpop.f32.mrb[0].mxu0
  %v307 = vadd.f32 %v132, %v306
  %v308 = vpop.f32.mrb[0].mxu0
  %309 = vmatprep.mubr.f32.mxu0 0.0
  %310 = vmatmul.mubr.f32.gmra.mrb[0].mxu0 %v142
  %v311 = vpop.f32.mrb[0].mxu0
  %v312 = vadd.f32 %v132, %v311
  %v313 = vpop.f32.mrb[0].mxu0
  %314 = vmatprep.mubr.f32.mxu0 0.0
  %315 = vmatmul.mubr.f32.gmra.mrb[0].mxu0 %v145
  %v316 = vpop.f32.mrb[0].mxu0
  %v317 = vadd.f32 %v132, %v316
  %v318 = vpop.f32.mrb[0].mxu0
  %319 = vmatprep.mubr.f32.mxu0 0.0
  %320 = vmatmul.mubr.f32.gmra.mrb[0].mxu0 %v148
  %v321 = vpop.f32.mrb[0].mxu0
  %v322 = vadd.f32 %v132, %v321
  %v323 = vpop.f32.mrb[0].mxu0
  %324 = vmatprep.mubr.f32.mxu0 0.0
  %325 = vmatmul.mubr.f32.gmra.mrb[0].mxu0 %v151
  %v326 = vpop.f32.mrb[0].mxu0
  %v327 = vadd.f32 %v132, %v326
  %v328 = vpop.f32.mrb[0].mxu0
  %329 = vmatprep.mubr.f32.mxu0 0.0
  %330 = vmatmul.mubr.f32.gmra.mrb[0].mxu0 %v154
  %v331 = vpop.f32.mrb[0].mxu0
  %v332 = vadd.f32 %v132, %v331
  %v333 = vpop.f32.mrb[0].mxu0
  %334 = vmatprep.mubr.f32.mxu0 0.0
  %335 = vmatmul.mubr.f32.gmra.mrb[0].mxu0 %v157
  %v336 = vpop.f32.mrb[0].mxu0
  %v337 = vadd.f32 %v132, %v336
  %v338 = vpop.f32.mrb[0].mxu0
  %339 = vmatprep.mubr.f32.mxu0 0.0
  %340 = vmatmul.mubr.f32.gmra.mrb[0].mxu0 %v160
  %v341 = vpop.f32.mrb[0].mxu0
  %v342 = vadd.f32 %v132, %v341
  %v343 = vpop.f32.mrb[0].mxu0
  %344 = vmatprep.mubr.f32.mxu0 0.0
  %345 = vmatmul.mubr.f32.gmra.mrb[0].mxu0 %v163
  %v346 = vpop.f32.mrb[0].mxu0
  %v347 = vadd.f32 %v132, %v346
  %v348 = vpop.f32.mrb[0].mxu0
  %349 = vmatprep.mubr.f32.mxu0 0.0
  %350 = vmatmul.mubr.f32.gmra.mrb[0].mxu0 %v166
  %v351 = vpop.f32.mrb[0].mxu0
  %v352 = vadd.f32 %v132, %v351
  %v353 = vpop.f32.mrb[0].mxu0
  %354 = vmatprep.mubr.f32.mxu0 0.0
  %355 = vmatmul.mubr.f32.gmra.mrb[0].mxu0 %v169
  %v356 = vpop.f32.mrb[0].mxu0
  %v357 = vadd.f32 %v132, %v356
  %v358 = vpop.f32.mrb[0].mxu0
  %359 = vmatprep.mubr.f32.mxu0 0.0
  %360 = vmatmul.mubr.f32.gmra.mrb[0].mxu0 %v172
  %v361 = vpop.f32.mrb[0].mxu0
  %v362 = vadd.f32 %v132, %v361
  %v363 = vpop.f32.mrb[0].mxu0
  %364 = vmatprep.mubr.f32.mxu0 0.0
  %365 = vmatmul.mubr.f32.gmra.mrb[0].mxu0 %v175
  %v366 = vpop.f32.mrb[0].mxu0
  %v367 = vadd.f32 %v132, %v366
  %v368 = vpop.f32.mrb[0].mxu0
  %369 = vmatprep.mubr.f32.mxu0 0.0
  %370 = vmatmul.mubr.f32.gmra.mrb[0].mxu0 %v178
  %v371 = vpop.f32.mrb[0].mxu0
  %v372 = vadd.f32 %v132, %v371
  %v373 = vpop.f32.mrb[0].mxu0
  %374 = vmatprep.mubr.f32.mxu0 0.0
  %375 = vmatmul.mubr.f32.gmra.mrb[0].mxu0 %v181
  %v376 = vpop.f32.mrb[0].mxu0
  %v377 = vadd.f32 %v132, %v376
  %v378 = vpop.f32.mrb[0].mxu0
  %379 = vmatprep.mubr.f32.mxu0 0.0
  %380 = vmatmul.mubr.f32.gmra.mrb[0].mxu0 %v184
  %v381 = vpop.f32.mrb[0].mxu0
  %v382 = vadd.f32 %v132, %v381
  %v383 = vpop.f32.mrb[0].mxu0
  %384 = vmatprep.mubr.f32.mxu0 0.0
  %385 = vmatmul.mubr.f32.gmra.mrb[0].mxu0 %v187
  %v386 = vpop.f32.mrb[0].mxu0
  %v387 = vadd.f32 %v132, %v386
  %v388 = vpop.f32.mrb[0].mxu0
  %389 = vmatprep.mubr.f32.mxu0 0.0
  %390 = vmatmul.mubr.f32.gmra.mrb[0].mxu0 %v190
  %v391 = vpop.f32.mrb[0].mxu0
  %v392 = vadd.f32 %v132, %v391
  %v393 = vpop.f32.mrb[0].mxu0
  %394 = vmatprep.mubr.f32.mxu0 0.0
  %395 = vmatmul.mubr.f32.gmra.mrb[0].mxu0 %v193
  %v396 = vpop.f32.mrb[0].mxu0
  %v397 = vadd.f32 %v132, %v396
  %v398 = vpop.f32.mrb[0].mxu0
  %399 = vmatprep.mubr.f32.mxu0 0.0
  %400 = vmatmul.mubr.f32.gmra.mrb[0].mxu0 %v196
  %v401 = vpop.f32.mrb[0].mxu0
  %v402 = vadd.f32 %v132, %v401
  %v403 = vpop.f32.mrb[0].mxu0
  %404 = vmatprep.mubr.f32.mxu0 0.0
  %405 = vmatmul.mubr.f32.gmra.mrb[0].mxu0 %v199
  %v406 = vpop.f32.mrb[0].mxu0
  %v407 = vadd.f32 %v132, %v406
  %v408 = vpop.f32.mrb[0].mxu0
  %409 = vmatprep.mubr.f32.mxu0 0.0
  %410 = vmatmul.mubr.f32.gmra.mrb[0].mxu0 %v202
  %v411 = vpop.f32.mrb[0].mxu0
  %v412 = vadd.f32 %v132, %v411
  %v413 = vpop.f32.mrb[0].mxu0
  %414 = vmatprep.mubr.f32.mxu0 0.0
  %415 = vmatmul.mubr.f32.gmra.mrb[0].mxu0 %v205
  %v416 = vpop.f32.mrb[0].mxu0
  %v417 = vadd.f32 %v132, %v416
  %v418 = vpop.f32.mrb[0].mxu0
  %419 = vmatprep.mubr.f32.mxu0 0.0
  %420 = vmatmul.mubr.f32.gmra.mrb[0].mxu0 %v208
  %v421 = vpop.f32.mrb[0].mxu0
  %v422 = vadd.f32 %v132, %v421
  %v423 = vpop.f32.mrb[0].mxu0
  %424 = vmatprep.mubr.f32.mxu0 0.0
  %425 = vmatmul.mubr.f32.gmra.mrb[0].mxu0 %v211
  %v426 = vpop.f32.mrb[0].mxu0
  %v427 = vadd.f32 %v132, %v426
  %v428 = vpop.f32.mrb[0].mxu0
  %429 = vmatprep.mubr.f32.mxu0 0.0
  %430 = vmatmul.mubr.f32.gmra.mrb[0].mxu0 %v214
  %v431 = vpop.f32.mrb[0].mxu0
  %v432 = vadd.f32 %v132, %v431
  %v433 = vpop.f32.mrb[0].mxu0
  %434 = vmatprep.mubr.f32.mxu0 0.0
  %435 = vmatmul.mubr.f32.gmra.mrb[0].mxu0 %v217
  %v436 = vpop.f32.mrb[0].mxu0
  %v437 = vadd.f32 %v132, %v436
  %v438 = vpop.f32.mrb[0].mxu0
  %439 = vmatprep.mubr.f32.mxu0 0.0
  %440 = vmatmul.mubr.f32.gmra.mrb[0].mxu0 %v220
  %v441 = vpop.f32.mrb[0].mxu0
  %v442 = vadd.f32 %v132, %v441
  %v443 = vpop.f32.mrb[0].mxu0
  %444 = vmatprep.mubr.f32.mxu0 0.0
  %445 = vmatmul.mubr.f32.gmra.mrb[0].mxu0 %v223
  %v446 = vpop.f32.mrb[0].mxu0
  %v447 = vadd.f32 %v132, %v446
  %v448 = vpop.f32.mrb[0].mxu0
  %449 = vmatprep.mubr.f32.mxu0 0.0
  %450 = vmatmul.mubr.f32.gmra.mrb[0].mxu0 %v226
  %v451 = vpop.f32.mrb[0].mxu0
  %v452 = vadd.f32 %v132, %v451
  %v453 = vpop.f32.mrb[0].mxu0
  %454 = vmatprep.mubr.f32.mxu0 0.0
  %455 = vmatmul.mubr.f32.gmra.mrb[0].mxu0 %v229
  %v456 = vpop.f32.mrb[0].mxu0
  %v457 = vadd.f32 %v132, %v456
  %v458 = vpop.f32.mrb[0].mxu0
  %459 = vdwg.mxu0
  %v460 = vadd.f32 %v302, 3.0
  %v461 = vadd.f32 %v307, 3.0
  %v462 = vadd.f32 %v312, 3.0
  %v463 = vadd.f32 %v317, 3.0
  %v464 = vadd.f32 %v322, 3.0
  %v465 = vadd.f32 %v327, 3.0
  %v466 = vadd.f32 %v332, 3.0
  %v467 = vadd.f32 %v337, 3.0
  %v468 = vadd.f32 %v342, 3.0
  %v469 = vadd.f32 %v347, 3.0
  %v470 = vadd.f32 %v352, 3.0
  %v471 = vadd.f32 %v357, 3.0
  %v472 = vadd.f32 %v362, 3.0
  %v473 = vadd.f32 %v367, 3.0
  %v474 = vadd.f32 %v372, 3.0
  %v475 = vadd.f32 %v377, 3.0
  %v476 = vadd.f32 %v382, 3.0
  %v477 = vadd.f32 %v387, 3.0
  %v478 = vadd.f32 %v392, 3.0
  %v479 = vadd.f32 %v397, 3.0
  %v480 = vadd.f32 %v402, 3.0
  %v481 = vadd.f32 %v407, 3.0
  %v482 = vadd.f32 %v412, 3.0
  %v483 = vadd.f32 %v417, 3.0
  %v484 = vadd.f32 %v422, 3.0
  %v485 = vadd.f32 %v427, 3.0
  %v486 = vadd.f32 %v432, 3.0
  %v487 = vadd.f32 %v437, 3.0
  %v488 = vadd.f32 %v442, 3.0
  %v489 = vadd.f32 %v447, 3.0
  %v490 = vadd.f32 %v452, 3.0
  %v491 = vadd.f32 %v457, 3.0
  %v492 = vmax.f32 %v460, 0.0
  %v493 = vmax.f32 %v461, 0.0
  %v494 = vmax.f32 %v462, 0.0
  %v495 = vmax.f32 %v463, 0.0
  %v496 = vmax.f32 %v464, 0.0
  %v497 = vmax.f32 %v465, 0.0
  %v498 = vmax.f32 %v466, 0.0
  %v499 = vmax.f32 %v467, 0.0
  %v500 = vmax.f32 %v468, 0.0
  %v501 = vmax.f32 %v469, 0.0
  %v502 = vmax.f32 %v470, 0.0
  %v503 = vmax.f32 %v471, 0.0
  %v504 = vmax.f32 %v472, 0.0
  %v505 = vmax.f32 %v473, 0.0
  %v506 = vmax.f32 %v474, 0.0
  %v507 = vmax.f32 %v475, 0.0
  %v508 = vmax.f32 %v476, 0.0
  %v509 = vmax.f32 %v477, 0.0
  %v510 = vmax.f32 %v478, 0.0
  %v511 = vmax.f32 %v479, 0.0
  %v512 = vmax.f32 %v480, 0.0
  %v513 = vmax.f32 %v481, 0.0
  %v514 = vmax.f32 %v482, 0.0
  %v515 = vmax.f32 %v483, 0.0
  %v516 = vmax.f32 %v484, 0.0
  %v517 = vmax.f32 %v485, 0.0
  %v518 = vmax.f32 %v486, 0.0
  %v519 = vmax.f32 %v487, 0.0
  %v520 = vmax.f32 %v488, 0.0
  %v521 = vmax.f32 %v489, 0.0
  %v522 = vmax.f32 %v490, 0.0
  %v523 = vmax.f32 %v491, 0.0
  %v524 = vmin.f32 %v492, 6.0
  %v525 = vmin.f32 %v493, 6.0
  %v526 = vmin.f32 %v494, 6.0
  %v527 = vmin.f32 %v495, 6.0
  %v528 = vmin.f32 %v496, 6.0
  %v529 = vmin.f32 %v497, 6.0
  %v530 = vmin.f32 %v498, 6.0
  %v531 = vmin.f32 %v499, 6.0
  %v532 = vmin.f32 %v500, 6.0
  %v533 = vmin.f32 %v501, 6.0
  %v534 = vmin.f32 %v502, 6.0
  %v535 = vmin.f32 %v503, 6.0
  %v536 = vmin.f32 %v504, 6.0
  %v537 = vmin.f32 %v505, 6.0
  %v538 = vmin.f32 %v506, 6.0
  %v539 = vmin.f32 %v507, 6.0
  %v540 = vmin.f32 %v508, 6.0
  %v541 = vmin.f32 %v509, 6.0
  %v542 = vmin.f32 %v510, 6.0
  %v543 = vmin.f32 %v511, 6.0
  %v544 = vmin.f32 %v512, 6.0
  %v545 = vmin.f32 %v513, 6.0
  %v546 = vmin.f32 %v514, 6.0
  %v547 = vmin.f32 %v515, 6.0
  %v548 = vmin.f32 %v516, 6.0
  %v549 = vmin.f32 %v517, 6.0
  %v550 = vmin.f32 %v518, 6.0
  %v551 = vmin.f32 %v519, 6.0
  %v552 = vmin.f32 %v520, 6.0
  %v553 = vmin.f32 %v521, 6.0
  %v554 = vmin.f32 %v522, 6.0
  %v555 = vmin.f32 %v523, 6.0
  %v556 = vmul.f32 %v524, 0.16666667
  %v557 = vmul.f32 %v525, 0.16666667
  %v558 = vmul.f32 %v526, 0.16666667
  %v559 = vmul.f32 %v527, 0.16666667
  %v560 = vmul.f32 %v528, 0.16666667
  %v561 = vmul.f32 %v529, 0.16666667
  %v562 = vmul.f32 %v530, 0.16666667
  %v563 = vmul.f32 %v531, 0.16666667
  %v564 = vmul.f32 %v532, 0.16666667
  %v565 = vmul.f32 %v533, 0.16666667
  %v566 = vmul.f32 %v534, 0.16666667
  %v567 = vmul.f32 %v535, 0.16666667
  %v568 = vmul.f32 %v536, 0.16666667
  %v569 = vmul.f32 %v537, 0.16666667
  %v570 = vmul.f32 %v538, 0.16666667
  %v571 = vmul.f32 %v539, 0.16666667
  %v572 = vmul.f32 %v540, 0.16666667
  %v573 = vmul.f32 %v541, 0.16666667
  %v574 = vmul.f32 %v542, 0.16666667
  %v575 = vmul.f32 %v543, 0.16666667
  %v576 = vmul.f32 %v544, 0.16666667
  %v577 = vmul.f32 %v545, 0.16666667
  %v578 = vmul.f32 %v546, 0.16666667
  %v579 = vmul.f32 %v547, 0.16666667
  %v580 = vmul.f32 %v548, 0.16666667
  %v581 = vmul.f32 %v549, 0.16666667
  %v582 = vmul.f32 %v550, 0.16666667
  %v583 = vmul.f32 %v551, 0.16666667
  %v584 = vmul.f32 %v552, 0.16666667
  %v585 = vmul.f32 %v553, 0.16666667
  %v586 = vmul.f32 %v554, 0.16666667
  %v587 = vmul.f32 %v555, 0.16666667
  %v588 = vmul.f32 %v302, %v556
  %v589 = vmul.f32 %v307, %v557
  %v590 = vmul.f32 %v312, %v558
  %v591 = vmul.f32 %v317, %v559
  %v592 = vmul.f32 %v322, %v560
  %v593 = vmul.f32 %v327, %v561
  %v594 = vmul.f32 %v332, %v562
  %v595 = vmul.f32 %v337, %v563
  %v596 = vmul.f32 %v342, %v564
  %v597 = vmul.f32 %v347, %v565
  %v598 = vmul.f32 %v352, %v566
  %v599 = vmul.f32 %v357, %v567
  %v600 = vmul.f32 %v362, %v568
  %v601 = vmul.f32 %v367, %v569
  %v602 = vmul.f32 %v372, %v570
  %v603 = vmul.f32 %v377, %v571
  %v604 = vmul.f32 %v382, %v572
  %v605 = vmul.f32 %v387, %v573
  %v606 = vmul.f32 %v392, %v574
  %v607 = vmul.f32 %v397, %v575
  %v608 = vmul.f32 %v402, %v576
  %v609 = vmul.f32 %v407, %v577
  %v610 = vmul.f32 %v412, %v578
  %v611 = vmul.f32 %v417, %v579
  %v612 = vmul.f32 %v422, %v580
  %v613 = vmul.f32 %v427, %v581
  %v614 = vmul.f32 %v432, %v582
  %v615 = vmul.f32 %v437, %v583
  %v616 = vmul.f32 %v442, %v584
  %v617 = vmul.f32 %v447, %v585
  %v618 = vmul.f32 %v452, %v586
  %v619 = vmul.f32 %v457, %v587
  %s620 = scalar_lea.vmem [#allocation2], 24
  %621 = vst.msk [vmem:[%s620 + $0x1] sm:$0xff] %vm38, %v588
  %622 = vst.msk [vmem:[%s620 + $0x9] sm:$0xff] %vm38, %v589
  %623 = vst.msk [vmem:[%s620 + $0x19] sm:$0xff] %vm38, %v590
  %624 = vst.msk [vmem:[%s620 + $0x21] sm:$0xff] %vm38, %v591
  %625 = vst.msk [vmem:[%s620 + $0x31] sm:$0xff] %vm38, %v592
  %626 = vst.msk [vmem:[%s620 + $0x39] sm:$0xff] %vm38, %v593
  %627 = vst.msk [vmem:[%s620 + $0x49] sm:$0xff] %vm38, %v594
  %628 = vst.msk [vmem:[%s620 + $0x51] sm:$0xff] %vm38, %v595
  %629 = vst.msk [vmem:[%s620 + $0x61] sm:$0xff] %vm38, %v596
  %630 = vst.msk [vmem:[%s620 + $0x69] sm:$0xff] %vm38, %v597
  %631 = vst.msk [vmem:[%s620 + $0x79] sm:$0xff] %vm38, %v598
  %632 = vst.msk [vmem:[%s620 + $0x81] sm:$0xff] %vm38, %v599
  %633 = vst.msk [vmem:[%s620 + $0x91] sm:$0xff] %vm38, %v600
  %634 = vst.msk [vmem:[%s620 + $0x99] sm:$0xff] %vm38, %v601
  %635 = vst.msk [vmem:[%s620 + $0xa9] sm:$0xff] %vm38, %v602
  %636 = vst.msk [vmem:[%s620 + $0xb1] sm:$0xff] %vm38, %v603
  %637 = vst.msk [vmem:[%s620 + $0xc1] sm:$0xff] %vm38, %v604
  %638 = vst.msk [vmem:[%s620 + $0xc9] sm:$0xff] %vm38, %v605
  %639 = vst.msk [vmem:[%s620 + $0xd9] sm:$0xff] %vm38, %v606
  %640 = vst.msk [vmem:[%s620 + $0xe1] sm:$0xff] %vm38, %v607
  %641 = vst.msk [vmem:[%s620 + $0xf1] sm:$0xff] %vm38, %v608
  %642 = vst.msk [vmem:[%s620 + $0xf9] sm:$0xff] %vm38, %v609
  %643 = vst.msk [vmem:[%s620 + $0x109] sm:$0xff] %vm38, %v610
  %644 = vst.msk [vmem:[%s620 + $0x111] sm:$0xff] %vm38, %v611
  %645 = vst.msk [vmem:[%s620 + $0x121] sm:$0xff] %vm38, %v612
  %646 = vst.msk [vmem:[%s620 + $0x129] sm:$0xff] %vm38, %v613
  %647 = vst.msk [vmem:[%s620 + $0x139] sm:$0xff] %vm38, %v614
  %648 = vst.msk [vmem:[%s620 + $0x141] sm:$0xff] %vm38, %v615
  %649 = vst.msk [vmem:[%s620 + $0x151] sm:$0xff] %vm38, %v616
  %650 = vst.msk [vmem:[%s620 + $0x159] sm:$0xff] %vm38, %v617
  %651 = vst.msk [vmem:[%s620 + $0x169] sm:$0xff] %vm38, %v618
  %652 = vst.msk [vmem:[%s620 + $0x171] sm:$0xff] %vm38, %v619
  %v653 = vld [vmem:[#allocation2] sm:$0xff]
  %v654 = vld [vmem:[#allocation2 + $0x8] sm:$0xff]
  %v655 = vld [vmem:[#allocation2 + $0x18] sm:$0xff]
  %v656 = vld [vmem:[#allocation2 + $0x20] sm:$0xff]
  %v657 = vld [vmem:[#allocation2 + $0x30] sm:$0xff]
  %v658 = vld [vmem:[#allocation2 + $0x38] sm:$0xff]
  %v659 = vld [vmem:[#allocation2 + $0x48] sm:$0xff]
  %v660 = vld [vmem:[#allocation2 + $0x50] sm:$0xff]
  %v661 = vld [vmem:[#allocation2 + $0x60] sm:$0xff]
  %v662 = vld [vmem:[#allocation2 + $0x68] sm:$0xff]
  %v663 = vld [vmem:[#allocation2 + $0x78] sm:$0xff]
  %v664 = vld [vmem:[#allocation2 + $0x80] sm:$0xff]
  %v665 = vld [vmem:[#allocation2 + $0x90] sm:$0xff]
  %v666 = vld [vmem:[#allocation2 + $0x98] sm:$0xff]
  %v667 = vld [vmem:[#allocation2 + $0xa8] sm:$0xff]
  %v668 = vld [vmem:[#allocation2 + $0xb0] sm:$0xff]
  %v669 = vld [vmem:[#allocation2 + $0xc0] sm:$0xff]
  %v670 = vld [vmem:[#allocation2 + $0xc8] sm:$0xff]
  %v671 = vld [vmem:[#allocation2 + $0xd8] sm:$0xff]
  %v672 = vld [vmem:[#allocation2 + $0xe0] sm:$0xff]
  %v673 = vld [vmem:[#allocation2 + $0xf0] sm:$0xff]
  %v674 = vld [vmem:[#allocation2 + $0xf8] sm:$0xff]
  %v675 = vld [vmem:[#allocation2 + $0x108] sm:$0xff]
  %v676 = vld [vmem:[#allocation2 + $0x110] sm:$0xff]
  %v677 = vld [vmem:[#allocation2 + $0x120] sm:$0xff]
  %v678 = vld [vmem:[#allocation2 + $0x128] sm:$0xff]
  %v679 = vld [vmem:[#allocation2 + $0x138] sm:$0xff]
  %v680 = vld [vmem:[#allocation2 + $0x140] sm:$0xff]
  %v681 = vld [vmem:[#allocation2 + $0x150] sm:$0xff]
  %v682 = vld [vmem:[#allocation2 + $0x158] sm:$0xff]
  %v683 = vld [vmem:[#allocation2 + $0x168] sm:$0xff]
  %v684 = vld [vmem:[#allocation2 + $0x170] sm:$0xff]
  %v685 = vld [vmem:[%s3] sm:$0x1]
  %v686 = vlaneseq
  %v687 = vshrl.u32 %v686, 7
  %v688 = vsub.s32 0, %v687
  %v689 = vrot.slane %v685, %v688
  %v690 = vmul.f32 %v653, %v689
  %v691 = vmul.f32 %v654, %v689
  %v692 = vmul.f32 %v655, %v689
  %v693 = vmul.f32 %v656, %v689
  %v694 = vmul.f32 %v657, %v689
  %v695 = vmul.f32 %v658, %v689
  %v696 = vmul.f32 %v659, %v689
  %v697 = vmul.f32 %v660, %v689
  %v698 = vmul.f32 %v661, %v689
  %v699 = vmul.f32 %v662, %v689
  %v700 = vmul.f32 %v663, %v689
  %v701 = vmul.f32 %v664, %v689
  %v702 = vmul.f32 %v665, %v689
  %v703 = vmul.f32 %v666, %v689
  %v704 = vmul.f32 %v667, %v689
  %v705 = vmul.f32 %v668, %v689
  %v706 = vmul.f32 %v669, %v689
  %v707 = vmul.f32 %v670, %v689
  %v708 = vmul.f32 %v671, %v689
  %v709 = vmul.f32 %v672, %v689
  %v710 = vmul.f32 %v673, %v689
  %v711 = vmul.f32 %v674, %v689
  %v712 = vmul.f32 %v675, %v689
  %v713 = vmul.f32 %v676, %v689
  %v714 = vmul.f32 %v677, %v689
  %v715 = vmul.f32 %v678, %v689
  %v716 = vmul.f32 %v679, %v689
  %v717 = vmul.f32 %v680, %v689
  %v718 = vmul.f32 %v681, %v689
  %v719 = vmul.f32 %v682, %v689
  %v720 = vmul.f32 %v683, %v689
  %v721 = vmul.f32 %v684, %v689
  %v722 = vadd.f32 %v690, 0.0
  %v723 = vadd.f32 %v691, 0.0
  %v724 = vadd.f32 %v692, 0.0
  %v725 = vadd.f32 %v693, 0.0
  %v726 = vadd.f32 %v694, 0.0
  %v727 = vadd.f32 %v695, 0.0
  %v728 = vadd.f32 %v696, 0.0
  %v729 = vadd.f32 %v697, 0.0
  %v730 = vadd.f32 %v698, 0.0
  %v731 = vadd.f32 %v699, 0.0
  %v732 = vadd.f32 %v700, 0.0
  %v733 = vadd.f32 %v701, 0.0
  %v734 = vadd.f32 %v702, 0.0
  %v735 = vadd.f32 %v703, 0.0
  %v736 = vadd.f32 %v704, 0.0
  %v737 = vadd.f32 %v705, 0.0
  %v738 = vadd.f32 %v706, 0.0
  %v739 = vadd.f32 %v707, 0.0
  %v740 = vadd.f32 %v708, 0.0
  %v741 = vadd.f32 %v709, 0.0
  %v742 = vadd.f32 %v710, 0.0
  %v743 = vadd.f32 %v711, 0.0
  %v744 = vadd.f32 %v712, 0.0
  %v745 = vadd.f32 %v713, 0.0
  %v746 = vadd.f32 %v714, 0.0
  %v747 = vadd.f32 %v715, 0.0
  %v748 = vadd.f32 %v716, 0.0
  %v749 = vadd.f32 %v717, 0.0
  %v750 = vadd.f32 %v718, 0.0
  %v751 = vadd.f32 %v719, 0.0
  %v752 = vadd.f32 %v720, 0.0
  %v753 = vadd.f32 %v721, 0.0
  %v754 = vld [vmem:[#allocation2 + $0x1] sm:$0xff]
  %v755 = vld [vmem:[#allocation2 + $0x9] sm:$0xff]
  %v756 = vld [vmem:[#allocation2 + $0x19] sm:$0xff]
  %v757 = vld [vmem:[#allocation2 + $0x21] sm:$0xff]
  %v758 = vld [vmem:[#allocation2 + $0x31] sm:$0xff]
  %v759 = vld [vmem:[#allocation2 + $0x39] sm:$0xff]
  %v760 = vld [vmem:[#allocation2 + $0x49] sm:$0xff]
  %v761 = vld [vmem:[#allocation2 + $0x51] sm:$0xff]
  %v762 = vld [vmem:[#allocation2 + $0x61] sm:$0xff]
  %v763 = vld [vmem:[#allocation2 + $0x69] sm:$0xff]
  %v764 = vld [vmem:[#allocation2 + $0x79] sm:$0xff]
  %v765 = vld [vmem:[#allocation2 + $0x81] sm:$0xff]
  %v766 = vld [vmem:[#allocation2 + $0x91] sm:$0xff]
  %v767 = vld [vmem:[#allocation2 + $0x99] sm:$0xff]
  %v768 = vld [vmem:[#allocation2 + $0xa9] sm:$0xff]
  %v769 = vld [vmem:[#allocation2 + $0xb1] sm:$0xff]
  %v770 = vld [vmem:[#allocation2 + $0xc1] sm:$0xff]
  %v771 = vld [vmem:[#allocation2 + $0xc9] sm:$0xff]
  %v772 = vld [vmem:[#allocation2 + $0xd9] sm:$0xff]
  %v773 = vld [vmem:[#allocation2 + $0xe1] sm:$0xff]
  %v774 = vld [vmem:[#allocation2 + $0xf1] sm:$0xff]
  %v775 = vld [vmem:[#allocation2 + $0xf9] sm:$0xff]
  %v776 = vld [vmem:[#allocation2 + $0x109] sm:$0xff]
  %v777 = vld [vmem:[#allocation2 + $0x111] sm:$0xff]
  %v778 = vld [vmem:[#allocation2 + $0x121] sm:$0xff]
  %v779 = vld [vmem:[#allocation2 + $0x129] sm:$0xff]
  %v780 = vld [vmem:[#allocation2 + $0x139] sm:$0xff]
  %v781 = vld [vmem:[#allocation2 + $0x141] sm:$0xff]
  %v782 = vld [vmem:[#allocation2 + $0x151] sm:$0xff]
  %v783 = vld [vmem:[#allocation2 + $0x159] sm:$0xff]
  %v784 = vld [vmem:[#allocation2 + $0x169] sm:$0xff]
  %v785 = vld [vmem:[#allocation2 + $0x171] sm:$0xff]
  %v786 = vld [vmem:[%s3 + $0x1] sm:$0x1]
  %v787 = vlaneseq
  %v788 = vshrl.u32 %v787, 7
  %v789 = vsub.s32 0, %v788
  %v790 = vrot.slane %v786, %v789
  %v791 = vmul.f32 %v754, %v790
  %v792 = vmul.f32 %v755, %v790
  %v793 = vmul.f32 %v756, %v790
  %v794 = vmul.f32 %v757, %v790
  %v795 = vmul.f32 %v758, %v790
  %v796 = vmul.f32 %v759, %v790
  %v797 = vmul.f32 %v760, %v790
  %v798 = vmul.f32 %v761, %v790
  %v799 = vmul.f32 %v762, %v790
  %v800 = vmul.f32 %v763, %v790
  %v801 = vmul.f32 %v764, %v790
  %v802 = vmul.f32 %v765, %v790
  %v803 = vmul.f32 %v766, %v790
  %v804 = vmul.f32 %v767, %v790
  %v805 = vmul.f32 %v768, %v790
  %v806 = vmul.f32 %v769, %v790
  %v807 = vmul.f32 %v770, %v790
  %v808 = vmul.f32 %v771, %v790
  %v809 = vmul.f32 %v772, %v790
  %v810 = vmul.f32 %v773, %v790
  %v811 = vmul.f32 %v774, %v790
  %v812 = vmul.f32 %v775, %v790
  %v813 = vmul.f32 %v776, %v790
  %v814 = vmul.f32 %v777, %v790
  %v815 = vmul.f32 %v778, %v790
  %v816 = vmul.f32 %v779, %v790
  %v817 = vmul.f32 %v780, %v790
  %v818 = vmul.f32 %v781, %v790
  %v819 = vmul.f32 %v782, %v790
  %v820 = vmul.f32 %v783, %v790
  %v821 = vmul.f32 %v784, %v790
  %v822 = vmul.f32 %v785, %v790
  %v823 = vadd.f32 %v722, %v791
  %v824 = vadd.f32 %v723, %v792
  %v825 = vadd.f32 %v724, %v793
  %v826 = vadd.f32 %v725, %v794
  %v827 = vadd.f32 %v726, %v795
  %v828 = vadd.f32 %v727, %v796
  %v829 = vadd.f32 %v728, %v797
  %v830 = vadd.f32 %v729, %v798
  %v831 = vadd.f32 %v730, %v799
  %v832 = vadd.f32 %v731, %v800
  %v833 = vadd.f32 %v732, %v801
  %v834 = vadd.f32 %v733, %v802
  %v835 = vadd.f32 %v734, %v803
  %v836 = vadd.f32 %v735, %v804
  %v837 = vadd.f32 %v736, %v805
  %v838 = vadd.f32 %v737, %v806
  %v839 = vadd.f32 %v738, %v807
  %v840 = vadd.f32 %v739, %v808
  %v841 = vadd.f32 %v740, %v809
  %v842 = vadd.f32 %v741, %v810
  %v843 = vadd.f32 %v742, %v811
  %v844 = vadd.f32 %v743, %v812
  %v845 = vadd.f32 %v744, %v813
  %v846 = vadd.f32 %v745, %v814
  %v847 = vadd.f32 %v746, %v815
  %v848 = vadd.f32 %v747, %v816
  %v849 = vadd.f32 %v748, %v817
  %v850 = vadd.f32 %v749, %v818
  %v851 = vadd.f32 %v750, %v819
  %v852 = vadd.f32 %v751, %v820
  %v853 = vadd.f32 %v752, %v821
  %v854 = vadd.f32 %v753, %v822
  %v855 = vld [vmem:[#allocation2 + $0x2] sm:$0xff]
  %v856 = vld [vmem:[#allocation2 + $0xa] sm:$0xff]
  %v857 = vld [vmem:[#allocation2 + $0x1a] sm:$0xff]
  %v858 = vld [vmem:[#allocation2 + $0x22] sm:$0xff]
  %v859 = vld [vmem:[#allocation2 + $0x32] sm:$0xff]
  %v860 = vld [vmem:[#allocation2 + $0x3a] sm:$0xff]
  %v861 = vld [vmem:[#allocation2 + $0x4a] sm:$0xff]
  %v862 = vld [vmem:[#allocation2 + $0x52] sm:$0xff]
  %v863 = vld [vmem:[#allocation2 + $0x62] sm:$0xff]
  %v864 = vld [vmem:[#allocation2 + $0x6a] sm:$0xff]
  %v865 = vld [vmem:[#allocation2 + $0x7a] sm:$0xff]
  %v866 = vld [vmem:[#allocation2 + $0x82] sm:$0xff]
  %v867 = vld [vmem:[#allocation2 + $0x92] sm:$0xff]
  %v868 = vld [vmem:[#allocation2 + $0x9a] sm:$0xff]
  %v869 = vld [vmem:[#allocation2 + $0xaa] sm:$0xff]
  %v870 = vld [vmem:[#allocation2 + $0xb2] sm:$0xff]
  %v871 = vld [vmem:[#allocation2 + $0xc2] sm:$0xff]
  %v872 = vld [vmem:[#allocation2 + $0xca] sm:$0xff]
  %v873 = vld [vmem:[#allocation2 + $0xda] sm:$0xff]
  %v874 = vld [vmem:[#allocation2 + $0xe2] sm:$0xff]
  %v875 = vld [vmem:[#allocation2 + $0xf2] sm:$0xff]
  %v876 = vld [vmem:[#allocation2 + $0xfa] sm:$0xff]
  %v877 = vld [vmem:[#allocation2 + $0x10a] sm:$0xff]
  %v878 = vld [vmem:[#allocation2 + $0x112] sm:$0xff]
  %v879 = vld [vmem:[#allocation2 + $0x122] sm:$0xff]
  %v880 = vld [vmem:[#allocation2 + $0x12a] sm:$0xff]
  %v881 = vld [vmem:[#allocation2 + $0x13a] sm:$0xff]
  %v882 = vld [vmem:[#allocation2 + $0x142] sm:$0xff]
  %v883 = vld [vmem:[#allocation2 + $0x152] sm:$0xff]
  %v884 = vld [vmem:[#allocation2 + $0x15a] sm:$0xff]
  %v885 = vld [vmem:[#allocation2 + $0x16a] sm:$0xff]
  %v886 = vld [vmem:[#allocation2 + $0x172] sm:$0xff]
  %v887 = vld [vmem:[%s3 + $0x2] sm:$0x1]
  %v888 = vlaneseq
  %v889 = vshrl.u32 %v888, 7
  %v890 = vsub.s32 0, %v889
  %v891 = vrot.slane %v887, %v890
  %v892 = vmul.f32 %v855, %v891
  %v893 = vmul.f32 %v856, %v891
  %v894 = vmul.f32 %v857, %v891
  %v895 = vmul.f32 %v858, %v891
  %v896 = vmul.f32 %v859, %v891
  %v897 = vmul.f32 %v860, %v891
  %v898 = vmul.f32 %v861, %v891
  %v899 = vmul.f32 %v862, %v891
  %v900 = vmul.f32 %v863, %v891
  %v901 = vmul.f32 %v864, %v891
  %v902 = vmul.f32 %v865, %v891
  %v903 = vmul.f32 %v866, %v891
  %v904 = vmul.f32 %v867, %v891
  %v905 = vmul.f32 %v868, %v891
  %v906 = vmul.f32 %v869, %v891
  %v907 = vmul.f32 %v870, %v891
  %v908 = vmul.f32 %v871, %v891
  %v909 = vmul.f32 %v872, %v891
  %v910 = vmul.f32 %v873, %v891
  %v911 = vmul.f32 %v874, %v891
  %v912 = vmul.f32 %v875, %v891
  %v913 = vmul.f32 %v876, %v891
  %v914 = vmul.f32 %v877, %v891
  %v915 = vmul.f32 %v878, %v891
  %v916 = vmul.f32 %v879, %v891
  %v917 = vmul.f32 %v880, %v891
  %v918 = vmul.f32 %v881, %v891
  %v919 = vmul.f32 %v882, %v891
  %v920 = vmul.f32 %v883, %v891
  %v921 = vmul.f32 %v884, %v891
  %v922 = vmul.f32 %v885, %v891
  %v923 = vmul.f32 %v886, %v891
  %v924 = vadd.f32 %v823, %v892
  %v925 = vadd.f32 %v824, %v893
  %v926 = vadd.f32 %v825, %v894
  %v927 = vadd.f32 %v826, %v895
  %v928 = vadd.f32 %v827, %v896
  %v929 = vadd.f32 %v828, %v897
  %v930 = vadd.f32 %v829, %v898
  %v931 = vadd.f32 %v830, %v899
  %v932 = vadd.f32 %v831, %v900
  %v933 = vadd.f32 %v832, %v901
  %v934 = vadd.f32 %v833, %v902
  %v935 = vadd.f32 %v834, %v903
  %v936 = vadd.f32 %v835, %v904
  %v937 = vadd.f32 %v836, %v905
  %v938 = vadd.f32 %v837, %v906
  %v939 = vadd.f32 %v838, %v907
  %v940 = vadd.f32 %v839, %v908
  %v941 = vadd.f32 %v840, %v909
  %v942 = vadd.f32 %v841, %v910
  %v943 = vadd.f32 %v842, %v911
  %v944 = vadd.f32 %v843, %v912
  %v945 = vadd.f32 %v844, %v913
  %v946 = vadd.f32 %v845, %v914
  %v947 = vadd.f32 %v846, %v915
  %v948 = vadd.f32 %v847, %v916
  %v949 = vadd.f32 %v848, %v917
  %v950 = vadd.f32 %v849, %v918
  %v951 = vadd.f32 %v850, %v919
  %v952 = vadd.f32 %v851, %v920
  %v953 = vadd.f32 %v852, %v921
  %v954 = vadd.f32 %v853, %v922
  %v955 = vadd.f32 %v854, %v923
  %v956 = vld [vmem:[%s620] sm:$0xff]
  %v957 = vld [vmem:[%s620 + $0x8] sm:$0xff]
  %v958 = vld [vmem:[%s620 + $0x18] sm:$0xff]
  %v959 = vld [vmem:[%s620 + $0x20] sm:$0xff]
  %v960 = vld [vmem:[%s620 + $0x30] sm:$0xff]
  %v961 = vld [vmem:[%s620 + $0x38] sm:$0xff]
  %v962 = vld [vmem:[%s620 + $0x48] sm:$0xff]
  %v963 = vld [vmem:[%s620 + $0x50] sm:$0xff]
  %v964 = vld [vmem:[%s620 + $0x60] sm:$0xff]
  %v965 = vld [vmem:[%s620 + $0x68] sm:$0xff]
  %v966 = vld [vmem:[%s620 + $0x78] sm:$0xff]
  %v967 = vld [vmem:[%s620 + $0x80] sm:$0xff]
  %v968 = vld [vmem:[%s620 + $0x90] sm:$0xff]
  %v969 = vld [vmem:[%s620 + $0x98] sm:$0xff]
  %v970 = vld [vmem:[%s620 + $0xa8] sm:$0xff]
  %v971 = vld [vmem:[%s620 + $0xb0] sm:$0xff]
  %v972 = vld [vmem:[%s620 + $0xc0] sm:$0xff]
  %v973 = vld [vmem:[%s620 + $0xc8] sm:$0xff]
  %v974 = vld [vmem:[%s620 + $0xd8] sm:$0xff]
  %v975 = vld [vmem:[%s620 + $0xe0] sm:$0xff]
  %v976 = vld [vmem:[%s620 + $0xf0] sm:$0xff]
  %v977 = vld [vmem:[%s620 + $0xf8] sm:$0xff]
  %v978 = vld [vmem:[%s620 + $0x108] sm:$0xff]
  %v979 = vld [vmem:[%s620 + $0x110] sm:$0xff]
  %v980 = vld [vmem:[%s620 + $0x120] sm:$0xff]
  %v981 = vld [vmem:[%s620 + $0x128] sm:$0xff]
  %v982 = vld [vmem:[%s620 + $0x138] sm:$0xff]
  %v983 = vld [vmem:[%s620 + $0x140] sm:$0xff]
  %v984 = vld [vmem:[%s620 + $0x150] sm:$0xff]
  %v985 = vld [vmem:[%s620 + $0x158] sm:$0xff]
  %v986 = vld [vmem:[%s620 + $0x168] sm:$0xff]
  %v987 = vld [vmem:[%s620 + $0x170] sm:$0xff]
  %v988 = vld [vmem:[%s3 + $0x3] sm:$0x1]
  %v989 = vlaneseq
  %v990 = vshrl.u32 %v989, 7
  %v991 = vsub.s32 0, %v990
  %v992 = vrot.slane %v988, %v991
  %v993 = vmul.f32 %v956, %v992
  %v994 = vmul.f32 %v957, %v992
  %v995 = vmul.f32 %v958, %v992
  %v996 = vmul.f32 %v959, %v992
  %v997 = vmul.f32 %v960, %v992
  %v998 = vmul.f32 %v961, %v992
  %v999 = vmul.f32 %v962, %v992
  %v1000 = vmul.f32 %v963, %v992
  %v1001 = vmul.f32 %v964, %v992
  %v1002 = vmul.f32 %v965, %v992
  %v1003 = vmul.f32 %v966, %v992
  %v1004 = vmul.f32 %v967, %v992
  %v1005 = vmul.f32 %v968, %v992
  %v1006 = vmul.f32 %v969, %v992
  %v1007 = vmul.f32 %v970, %v992
  %v1008 = vmul.f32 %v971, %v992
  %v1009 = vmul.f32 %v972, %v992
  %v1010 = vmul.f32 %v973, %v992
  %v1011 = vmul.f32 %v974, %v992
  %v1012 = vmul.f32 %v975, %v992
  %v1013 = vmul.f32 %v976, %v992
  %v1014 = vmul.f32 %v977, %v992
  %v1015 = vmul.f32 %v978, %v992
  %v1016 = vmul.f32 %v979, %v992
  %v1017 = vmul.f32 %v980, %v992
  %v1018 = vmul.f32 %v981, %v992
  %v1019 = vmul.f32 %v982, %v992
  %v1020 = vmul.f32 %v983, %v992
  %v1021 = vmul.f32 %v984, %v992
  %v1022 = vmul.f32 %v985, %v992
  %v1023 = vmul.f32 %v986, %v992
  %v1024 = vmul.f32 %v987, %v992
  %v1025 = vadd.f32 %v924, %v993
  %v1026 = vadd.f32 %v925, %v994
  %v1027 = vadd.f32 %v926, %v995
  %v1028 = vadd.f32 %v927, %v996
  %v1029 = vadd.f32 %v928, %v997
  %v1030 = vadd.f32 %v929, %v998
  %v1031 = vadd.f32 %v930, %v999
  %v1032 = vadd.f32 %v931, %v1000
  %v1033 = vadd.f32 %v932, %v1001
  %v1034 = vadd.f32 %v933, %v1002
  %v1035 = vadd.f32 %v934, %v1003
  %v1036 = vadd.f32 %v935, %v1004
  %v1037 = vadd.f32 %v936, %v1005
  %v1038 = vadd.f32 %v937, %v1006
  %v1039 = vadd.f32 %v938, %v1007
  %v1040 = vadd.f32 %v939, %v1008
  %v1041 = vadd.f32 %v940, %v1009
  %v1042 = vadd.f32 %v941, %v1010
  %v1043 = vadd.f32 %v942, %v1011
  %v1044 = vadd.f32 %v943, %v1012
  %v1045 = vadd.f32 %v944, %v1013
  %v1046 = vadd.f32 %v945, %v1014
  %v1047 = vadd.f32 %v946, %v1015
  %v1048 = vadd.f32 %v947, %v1016
  %v1049 = vadd.f32 %v948, %v1017
  %v1050 = vadd.f32 %v949, %v1018
  %v1051 = vadd.f32 %v950, %v1019
  %v1052 = vadd.f32 %v951, %v1020
  %v1053 = vadd.f32 %v952, %v1021
  %v1054 = vadd.f32 %v953, %v1022
  %v1055 = vadd.f32 %v954, %v1023
  %v1056 = vadd.f32 %v955, %v1024
  %v1057 = vld [vmem:[%s620 + $0x1] sm:$0xff]
  %v1058 = vld [vmem:[%s620 + $0x9] sm:$0xff]
  %v1059 = vld [vmem:[%s620 + $0x19] sm:$0xff]
  %v1060 = vld [vmem:[%s620 + $0x21] sm:$0xff]
  %v1061 = vld [vmem:[%s620 + $0x31] sm:$0xff]
  %v1062 = vld [vmem:[%s620 + $0x39] sm:$0xff]
  %v1063 = vld [vmem:[%s620 + $0x49] sm:$0xff]
  %v1064 = vld [vmem:[%s620 + $0x51] sm:$0xff]
  %v1065 = vld [vmem:[%s620 + $0x61] sm:$0xff]
  %v1066 = vld [vmem:[%s620 + $0x69] sm:$0xff]
  %v1067 = vld [vmem:[%s620 + $0x79] sm:$0xff]
  %v1068 = vld [vmem:[%s620 + $0x81] sm:$0xff]
  %v1069 = vld [vmem:[%s620 + $0x91] sm:$0xff]
  %v1070 = vld [vmem:[%s620 + $0x99] sm:$0xff]
  %v1071 = vld [vmem:[%s620 + $0xa9] sm:$0xff]
  %v1072 = vld [vmem:[%s620 + $0xb1] sm:$0xff]
  %v1073 = vld [vmem:[%s620 + $0xc1] sm:$0xff]
  %v1074 = vld [vmem:[%s620 + $0xc9] sm:$0xff]
  %v1075 = vld [vmem:[%s620 + $0xd9] sm:$0xff]
  %v1076 = vld [vmem:[%s620 + $0xe1] sm:$0xff]
  %v1077 = vld [vmem:[%s620 + $0xf1] sm:$0xff]
  %v1078 = vld [vmem:[%s620 + $0xf9] sm:$0xff]
  %v1079 = vld [vmem:[%s620 + $0x109] sm:$0xff]
  %v1080 = vld [vmem:[%s620 + $0x111] sm:$0xff]
  %v1081 = vld [vmem:[%s620 + $0x121] sm:$0xff]
  %v1082 = vld [vmem:[%s620 + $0x129] sm:$0xff]
  %v1083 = vld [vmem:[%s620 + $0x139] sm:$0xff]
  %v1084 = vld [vmem:[%s620 + $0x141] sm:$0xff]
  %v1085 = vld [vmem:[%s620 + $0x151] sm:$0xff]
  %v1086 = vld [vmem:[%s620 + $0x159] sm:$0xff]
  %v1087 = vld [vmem:[%s620 + $0x169] sm:$0xff]
  %v1088 = vld [vmem:[%s620 + $0x171] sm:$0xff]
  %v1089 = vld [vmem:[%s3 + $0x4] sm:$0x1]
  %v1090 = vlaneseq
  %v1091 = vshrl.u32 %v1090, 7
  %v1092 = vsub.s32 0, %v1091
  %v1093 = vrot.slane %v1089, %v1092
  %v1094 = vmul.f32 %v1057, %v1093
  %v1095 = vmul.f32 %v1058, %v1093
  %v1096 = vmul.f32 %v1059, %v1093
  %v1097 = vmul.f32 %v1060, %v1093
  %v1098 = vmul.f32 %v1061, %v1093
  %v1099 = vmul.f32 %v1062, %v1093
  %v1100 = vmul.f32 %v1063, %v1093
  %v1101 = vmul.f32 %v1064, %v1093
  %v1102 = vmul.f32 %v1065, %v1093
  %v1103 = vmul.f32 %v1066, %v1093
  %v1104 = vmul.f32 %v1067, %v1093
  %v1105 = vmul.f32 %v1068, %v1093
  %v1106 = vmul.f32 %v1069, %v1093
  %v1107 = vmul.f32 %v1070, %v1093
  %v1108 = vmul.f32 %v1071, %v1093
  %v1109 = vmul.f32 %v1072, %v1093
  %v1110 = vmul.f32 %v1073, %v1093
  %v1111 = vmul.f32 %v1074, %v1093
  %v1112 = vmul.f32 %v1075, %v1093
  %v1113 = vmul.f32 %v1076, %v1093
  %v1114 = vmul.f32 %v1077, %v1093
  %v1115 = vmul.f32 %v1078, %v1093
  %v1116 = vmul.f32 %v1079, %v1093
  %v1117 = vmul.f32 %v1080, %v1093
  %v1118 = vmul.f32 %v1081, %v1093
  %v1119 = vmul.f32 %v1082, %v1093
  %v1120 = vmul.f32 %v1083, %v1093
  %v1121 = vmul.f32 %v1084, %v1093
  %v1122 = vmul.f32 %v1085, %v1093
  %v1123 = vmul.f32 %v1086, %v1093
  %v1124 = vmul.f32 %v1087, %v1093
  %v1125 = vmul.f32 %v1088, %v1093
  %v1126 = vadd.f32 %v1025, %v1094
  %v1127 = vadd.f32 %v1026, %v1095
  %v1128 = vadd.f32 %v1027, %v1096
  %v1129 = vadd.f32 %v1028, %v1097
  %v1130 = vadd.f32 %v1029, %v1098
  %v1131 = vadd.f32 %v1030, %v1099
  %v1132 = vadd.f32 %v1031, %v1100
  %v1133 = vadd.f32 %v1032, %v1101
  %v1134 = vadd.f32 %v1033, %v1102
  %v1135 = vadd.f32 %v1034, %v1103
  %v1136 = vadd.f32 %v1035, %v1104
  %v1137 = vadd.f32 %v1036, %v1105
  %v1138 = vadd.f32 %v1037, %v1106
  %v1139 = vadd.f32 %v1038, %v1107
  %v1140 = vadd.f32 %v1039, %v1108
  %v1141 = vadd.f32 %v1040, %v1109
  %v1142 = vadd.f32 %v1041, %v1110
  %v1143 = vadd.f32 %v1042, %v1111
  %v1144 = vadd.f32 %v1043, %v1112
  %v1145 = vadd.f32 %v1044, %v1113
  %v1146 = vadd.f32 %v1045, %v1114
  %v1147 = vadd.f32 %v1046, %v1115
  %v1148 = vadd.f32 %v1047, %v1116
  %v1149 = vadd.f32 %v1048, %v1117
  %v1150 = vadd.f32 %v1049, %v1118
  %v1151 = vadd.f32 %v1050, %v1119
  %v1152 = vadd.f32 %v1051, %v1120
  %v1153 = vadd.f32 %v1052, %v1121
  %v1154 = vadd.f32 %v1053, %v1122
  %v1155 = vadd.f32 %v1054, %v1123
  %v1156 = vadd.f32 %v1055, %v1124
  %v1157 = vadd.f32 %v1056, %v1125
  %v1158 = vld [vmem:[%s620 + $0x2] sm:$0xff]
  %v1159 = vld [vmem:[%s620 + $0xa] sm:$0xff]
  %v1160 = vld [vmem:[%s620 + $0x1a] sm:$0xff]
  %v1161 = vld [vmem:[%s620 + $0x22] sm:$0xff]
  %v1162 = vld [vmem:[%s620 + $0x32] sm:$0xff]
  %v1163 = vld [vmem:[%s620 + $0x3a] sm:$0xff]
  %v1164 = vld [vmem:[%s620 + $0x4a] sm:$0xff]
  %v1165 = vld [vmem:[%s620 + $0x52] sm:$0xff]
  %v1166 = vld [vmem:[%s620 + $0x62] sm:$0xff]
  %v1167 = vld [vmem:[%s620 + $0x6a] sm:$0xff]
  %v1168 = vld [vmem:[%s620 + $0x7a] sm:$0xff]
  %v1169 = vld [vmem:[%s620 + $0x82] sm:$0xff]
  %v1170 = vld [vmem:[%s620 + $0x92] sm:$0xff]
  %v1171 = vld [vmem:[%s620 + $0x9a] sm:$0xff]
  %v1172 = vld [vmem:[%s620 + $0xaa] sm:$0xff]
  %v1173 = vld [vmem:[%s620 + $0xb2] sm:$0xff]
  %v1174 = vld [vmem:[%s620 + $0xc2] sm:$0xff]
  %v1175 = vld [vmem:[%s620 + $0xca] sm:$0xff]
  %v1176 = vld [vmem:[%s620 + $0xda] sm:$0xff]
  %v1177 = vld [vmem:[%s620 + $0xe2] sm:$0xff]
  %v1178 = vld [vmem:[%s620 + $0xf2] sm:$0xff]
  %v1179 = vld [vmem:[%s620 + $0xfa] sm:$0xff]
  %v1180 = vld [vmem:[%s620 + $0x10a] sm:$0xff]
  %v1181 = vld [vmem:[%s620 + $0x112] sm:$0xff]
  %v1182 = vld [vmem:[%s620 + $0x122] sm:$0xff]
  %v1183 = vld [vmem:[%s620 + $0x12a] sm:$0xff]
  %v1184 = vld [vmem:[%s620 + $0x13a] sm:$0xff]
  %v1185 = vld [vmem:[%s620 + $0x142] sm:$0xff]
  %v1186 = vld [vmem:[%s620 + $0x152] sm:$0xff]
  %v1187 = vld [vmem:[%s620 + $0x15a] sm:$0xff]
  %v1188 = vld [vmem:[%s620 + $0x16a] sm:$0xff]
  %v1189 = vld [vmem:[%s620 + $0x172] sm:$0xff]
  %v1190 = vld [vmem:[%s3 + $0x5] sm:$0x1]
  %v1191 = vlaneseq
  %v1192 = vshrl.u32 %v1191, 7
  %v1193 = vsub.s32 0, %v1192
  %v1194 = vrot.slane %v1190, %v1193
  %v1195 = vmul.f32 %v1158, %v1194
  %v1196 = vmul.f32 %v1159, %v1194
  %v1197 = vmul.f32 %v1160, %v1194
  %v1198 = vmul.f32 %v1161, %v1194
  %v1199 = vmul.f32 %v1162, %v1194
  %v1200 = vmul.f32 %v1163, %v1194
  %v1201 = vmul.f32 %v1164, %v1194
  %v1202 = vmul.f32 %v1165, %v1194
  %v1203 = vmul.f32 %v1166, %v1194
  %v1204 = vmul.f32 %v1167, %v1194
  %v1205 = vmul.f32 %v1168, %v1194
  %v1206 = vmul.f32 %v1169, %v1194
  %v1207 = vmul.f32 %v1170, %v1194
  %v1208 = vmul.f32 %v1171, %v1194
  %v1209 = vmul.f32 %v1172, %v1194
  %v1210 = vmul.f32 %v1173, %v1194
  %v1211 = vmul.f32 %v1174, %v1194
  %v1212 = vmul.f32 %v1175, %v1194
  %v1213 = vmul.f32 %v1176, %v1194
  %v1214 = vmul.f32 %v1177, %v1194
  %v1215 = vmul.f32 %v1178, %v1194
  %v1216 = vmul.f32 %v1179, %v1194
  %v1217 = vmul.f32 %v1180, %v1194
  %v1218 = vmul.f32 %v1181, %v1194
  %v1219 = vmul.f32 %v1182, %v1194
  %v1220 = vmul.f32 %v1183, %v1194
  %v1221 = vmul.f32 %v1184, %v1194
  %v1222 = vmul.f32 %v1185, %v1194
  %v1223 = vmul.f32 %v1186, %v1194
  %v1224 = vmul.f32 %v1187, %v1194
  %v1225 = vmul.f32 %v1188, %v1194
  %v1226 = vmul.f32 %v1189, %v1194
  %v1227 = vadd.f32 %v1126, %v1195
  %v1228 = vadd.f32 %v1127, %v1196
  %v1229 = vadd.f32 %v1128, %v1197
  %v1230 = vadd.f32 %v1129, %v1198
  %v1231 = vadd.f32 %v1130, %v1199
  %v1232 = vadd.f32 %v1131, %v1200
  %v1233 = vadd.f32 %v1132, %v1201
  %v1234 = vadd.f32 %v1133, %v1202
  %v1235 = vadd.f32 %v1134, %v1203
  %v1236 = vadd.f32 %v1135, %v1204
  %v1237 = vadd.f32 %v1136, %v1205
  %v1238 = vadd.f32 %v1137, %v1206
  %v1239 = vadd.f32 %v1138, %v1207
  %v1240 = vadd.f32 %v1139, %v1208
  %v1241 = vadd.f32 %v1140, %v1209
  %v1242 = vadd.f32 %v1141, %v1210
  %v1243 = vadd.f32 %v1142, %v1211
  %v1244 = vadd.f32 %v1143, %v1212
  %v1245 = vadd.f32 %v1144, %v1213
  %v1246 = vadd.f32 %v1145, %v1214
  %v1247 = vadd.f32 %v1146, %v1215
  %v1248 = vadd.f32 %v1147, %v1216
  %v1249 = vadd.f32 %v1148, %v1217
  %v1250 = vadd.f32 %v1149, %v1218
  %v1251 = vadd.f32 %v1150, %v1219
  %v1252 = vadd.f32 %v1151, %v1220
  %v1253 = vadd.f32 %v1152, %v1221
  %v1254 = vadd.f32 %v1153, %v1222
  %v1255 = vadd.f32 %v1154, %v1223
  %v1256 = vadd.f32 %v1155, %v1224
  %v1257 = vadd.f32 %v1156, %v1225
  %v1258 = vadd.f32 %v1157, %v1226
  %s1259 = scalar_lea.vmem [#allocation2], 48
  %v1260 = vld [vmem:[%s1259] sm:$0xff]
  %v1261 = vld [vmem:[%s1259 + $0x8] sm:$0xff]
  %v1262 = vld [vmem:[%s1259 + $0x18] sm:$0xff]
  %v1263 = vld [vmem:[%s1259 + $0x20] sm:$0xff]
  %v1264 = vld [vmem:[%s1259 + $0x30] sm:$0xff]
  %v1265 = vld [vmem:[%s1259 + $0x38] sm:$0xff]
  %v1266 = vld [vmem:[%s1259 + $0x48] sm:$0xff]
  %v1267 = vld [vmem:[%s1259 + $0x50] sm:$0xff]
  %v1268 = vld [vmem:[%s1259 + $0x60] sm:$0xff]
  %v1269 = vld [vmem:[%s1259 + $0x68] sm:$0xff]
  %v1270 = vld [vmem:[%s1259 + $0x78] sm:$0xff]
  %v1271 = vld [vmem:[%s1259 + $0x80] sm:$0xff]
  %v1272 = vld [vmem:[%s1259 + $0x90] sm:$0xff]
  %v1273 = vld [vmem:[%s1259 + $0x98] sm:$0xff]
  %v1274 = vld [vmem:[%s1259 + $0xa8] sm:$0xff]
  %v1275 = vld [vmem:[%s1259 + $0xb0] sm:$0xff]
  %v1276 = vld [vmem:[%s1259 + $0xc0] sm:$0xff]
  %v1277 = vld [vmem:[%s1259 + $0xc8] sm:$0xff]
  %v1278 = vld [vmem:[%s1259 + $0xd8] sm:$0xff]
  %v1279 = vld [vmem:[%s1259 + $0xe0] sm:$0xff]
  %v1280 = vld [vmem:[%s1259 + $0xf0] sm:$0xff]
  %v1281 = vld [vmem:[%s1259 + $0xf8] sm:$0xff]
  %v1282 = vld [vmem:[%s1259 + $0x108] sm:$0xff]
  %v1283 = vld [vmem:[%s1259 + $0x110] sm:$0xff]
  %v1284 = vld [vmem:[%s1259 + $0x120] sm:$0xff]
  %v1285 = vld [vmem:[%s1259 + $0x128] sm:$0xff]
  %v1286 = vld [vmem:[%s1259 + $0x138] sm:$0xff]
  %v1287 = vld [vmem:[%s1259 + $0x140] sm:$0xff]
  %v1288 = vld [vmem:[%s1259 + $0x150] sm:$0xff]
  %v1289 = vld [vmem:[%s1259 + $0x158] sm:$0xff]
  %v1290 = vld [vmem:[%s1259 + $0x168] sm:$0xff]
  %v1291 = vld [vmem:[%s1259 + $0x170] sm:$0xff]
  %v1292 = vld [vmem:[%s3 + $0x6] sm:$0x1]
  %v1293 = vlaneseq
  %v1294 = vshrl.u32 %v1293, 7
  %v1295 = vsub.s32 0, %v1294
  %v1296 = vrot.slane %v1292, %v1295
  %v1297 = vmul.f32 %v1260, %v1296
  %v1298 = vmul.f32 %v1261, %v1296
  %v1299 = vmul.f32 %v1262, %v1296
  %v1300 = vmul.f32 %v1263, %v1296
  %v1301 = vmul.f32 %v1264, %v1296
  %v1302 = vmul.f32 %v1265, %v1296
  %v1303 = vmul.f32 %v1266, %v1296
  %v1304 = vmul.f32 %v1267, %v1296
  %v1305 = vmul.f32 %v1268, %v1296
  %v1306 = vmul.f32 %v1269, %v1296
  %v1307 = vmul.f32 %v1270, %v1296
  %v1308 = vmul.f32 %v1271, %v1296
  %v1309 = vmul.f32 %v1272, %v1296
  %v1310 = vmul.f32 %v1273, %v1296
  %v1311 = vmul.f32 %v1274, %v1296
  %v1312 = vmul.f32 %v1275, %v1296
  %v1313 = vmul.f32 %v1276, %v1296
  %v1314 = vmul.f32 %v1277, %v1296
  %v1315 = vmul.f32 %v1278, %v1296
  %v1316 = vmul.f32 %v1279, %v1296
  %v1317 = vmul.f32 %v1280, %v1296
  %v1318 = vmul.f32 %v1281, %v1296
  %v1319 = vmul.f32 %v1282, %v1296
  %v1320 = vmul.f32 %v1283, %v1296
  %v1321 = vmul.f32 %v1284, %v1296
  %v1322 = vmul.f32 %v1285, %v1296
  %v1323 = vmul.f32 %v1286, %v1296
  %v1324 = vmul.f32 %v1287, %v1296
  %v1325 = vmul.f32 %v1288, %v1296
  %v1326 = vmul.f32 %v1289, %v1296
  %v1327 = vmul.f32 %v1290, %v1296
  %v1328 = vmul.f32 %v1291, %v1296
  %v1329 = vadd.f32 %v1227, %v1297
  %v1330 = vadd.f32 %v1228, %v1298
  %v1331 = vadd.f32 %v1229, %v1299
  %v1332 = vadd.f32 %v1230, %v1300
  %v1333 = vadd.f32 %v1231, %v1301
  %v1334 = vadd.f32 %v1232, %v1302
  %v1335 = vadd.f32 %v1233, %v1303
  %v1336 = vadd.f32 %v1234, %v1304
  %v1337 = vadd.f32 %v1235, %v1305
  %v1338 = vadd.f32 %v1236, %v1306
  %v1339 = vadd.f32 %v1237, %v1307
  %v1340 = vadd.f32 %v1238, %v1308
  %v1341 = vadd.f32 %v1239, %v1309
  %v1342 = vadd.f32 %v1240, %v1310
  %v1343 = vadd.f32 %v1241, %v1311
  %v1344 = vadd.f32 %v1242, %v1312
  %v1345 = vadd.f32 %v1243, %v1313
  %v1346 = vadd.f32 %v1244, %v1314
  %v1347 = vadd.f32 %v1245, %v1315
  %v1348 = vadd.f32 %v1246, %v1316
  %v1349 = vadd.f32 %v1247, %v1317
  %v1350 = vadd.f32 %v1248, %v1318
  %v1351 = vadd.f32 %v1249, %v1319
  %v1352 = vadd.f32 %v1250, %v1320
  %v1353 = vadd.f32 %v1251, %v1321
  %v1354 = vadd.f32 %v1252, %v1322
  %v1355 = vadd.f32 %v1253, %v1323
  %v1356 = vadd.f32 %v1254, %v1324
  %v1357 = vadd.f32 %v1255, %v1325
  %v1358 = vadd.f32 %v1256, %v1326
  %v1359 = vadd.f32 %v1257, %v1327
  %v1360 = vadd.f32 %v1258, %v1328
  %v1361 = vld [vmem:[%s1259 + $0x1] sm:$0xff]
  %v1362 = vld [vmem:[%s1259 + $0x9] sm:$0xff]
  %v1363 = vld [vmem:[%s1259 + $0x19] sm:$0xff]
  %v1364 = vld [vmem:[%s1259 + $0x21] sm:$0xff]
  %v1365 = vld [vmem:[%s1259 + $0x31] sm:$0xff]
  %v1366 = vld [vmem:[%s1259 + $0x39] sm:$0xff]
  %v1367 = vld [vmem:[%s1259 + $0x49] sm:$0xff]
  %v1368 = vld [vmem:[%s1259 + $0x51] sm:$0xff]
  %v1369 = vld [vmem:[%s1259 + $0x61] sm:$0xff]
  %v1370 = vld [vmem:[%s1259 + $0x69] sm:$0xff]
  %v1371 = vld [vmem:[%s1259 + $0x79] sm:$0xff]
  %v1372 = vld [vmem:[%s1259 + $0x81] sm:$0xff]
  %v1373 = vld [vmem:[%s1259 + $0x91] sm:$0xff]
  %v1374 = vld [vmem:[%s1259 + $0x99] sm:$0xff]
  %v1375 = vld [vmem:[%s1259 + $0xa9] sm:$0xff]
  %v1376 = vld [vmem:[%s1259 + $0xb1] sm:$0xff]
  %v1377 = vld [vmem:[%s1259 + $0xc1] sm:$0xff]
  %v1378 = vld [vmem:[%s1259 + $0xc9] sm:$0xff]
  %v1379 = vld [vmem:[%s1259 + $0xd9] sm:$0xff]
  %v1380 = vld [vmem:[%s1259 + $0xe1] sm:$0xff]
  %v1381 = vld [vmem:[%s1259 + $0xf1] sm:$0xff]
  %v1382 = vld [vmem:[%s1259 + $0xf9] sm:$0xff]
  %v1383 = vld [vmem:[%s1259 + $0x109] sm:$0xff]
  %v1384 = vld [vmem:[%s1259 + $0x111] sm:$0xff]
  %v1385 = vld [vmem:[%s1259 + $0x121] sm:$0xff]
  %v1386 = vld [vmem:[%s1259 + $0x129] sm:$0xff]
  %v1387 = vld [vmem:[%s1259 + $0x139] sm:$0xff]
  %v1388 = vld [vmem:[%s1259 + $0x141] sm:$0xff]
  %v1389 = vld [vmem:[%s1259 + $0x151] sm:$0xff]
  %v1390 = vld [vmem:[%s1259 + $0x159] sm:$0xff]
  %v1391 = vld [vmem:[%s1259 + $0x169] sm:$0xff]
  %v1392 = vld [vmem:[%s1259 + $0x171] sm:$0xff]
  %v1393 = vld [vmem:[%s3 + $0x7] sm:$0x1]
  %v1394 = vlaneseq
  %v1395 = vshrl.u32 %v1394, 7
  %v1396 = vsub.s32 0, %v1395
  %v1397 = vrot.slane %v1393, %v1396
  %v1398 = vmul.f32 %v1361, %v1397
  %v1399 = vmul.f32 %v1362, %v1397
  %v1400 = vmul.f32 %v1363, %v1397
  %v1401 = vmul.f32 %v1364, %v1397
  %v1402 = vmul.f32 %v1365, %v1397
  %v1403 = vmul.f32 %v1366, %v1397
  %v1404 = vmul.f32 %v1367, %v1397
  %v1405 = vmul.f32 %v1368, %v1397
  %v1406 = vmul.f32 %v1369, %v1397
  %v1407 = vmul.f32 %v1370, %v1397
  %v1408 = vmul.f32 %v1371, %v1397
  %v1409 = vmul.f32 %v1372, %v1397
  %v1410 = vmul.f32 %v1373, %v1397
  %v1411 = vmul.f32 %v1374, %v1397
  %v1412 = vmul.f32 %v1375, %v1397
  %v1413 = vmul.f32 %v1376, %v1397
  %v1414 = vmul.f32 %v1377, %v1397
  %v1415 = vmul.f32 %v1378, %v1397
  %v1416 = vmul.f32 %v1379, %v1397
  %v1417 = vmul.f32 %v1380, %v1397
  %v1418 = vmul.f32 %v1381, %v1397
  %v1419 = vmul.f32 %v1382, %v1397
  %v1420 = vmul.f32 %v1383, %v1397
  %v1421 = vmul.f32 %v1384, %v1397
  %v1422 = vmul.f32 %v1385, %v1397
  %v1423 = vmul.f32 %v1386, %v1397
  %v1424 = vmul.f32 %v1387, %v1397
  %v1425 = vmul.f32 %v1388, %v1397
  %v1426 = vmul.f32 %v1389, %v1397
  %v1427 = vmul.f32 %v1390, %v1397
  %v1428 = vmul.f32 %v1391, %v1397
  %v1429 = vmul.f32 %v1392, %v1397
  %v1430 = vadd.f32 %v1329, %v1398
  %v1431 = vadd.f32 %v1330, %v1399
  %v1432 = vadd.f32 %v1331, %v1400
  %v1433 = vadd.f32 %v1332, %v1401
  %v1434 = vadd.f32 %v1333, %v1402
  %v1435 = vadd.f32 %v1334, %v1403
  %v1436 = vadd.f32 %v1335, %v1404
  %v1437 = vadd.f32 %v1336, %v1405
  %v1438 = vadd.f32 %v1337, %v1406
  %v1439 = vadd.f32 %v1338, %v1407
  %v1440 = vadd.f32 %v1339, %v1408
  %v1441 = vadd.f32 %v1340, %v1409
  %v1442 = vadd.f32 %v1341, %v1410
  %v1443 = vadd.f32 %v1342, %v1411
  %v1444 = vadd.f32 %v1343, %v1412
  %v1445 = vadd.f32 %v1344, %v1413
  %v1446 = vadd.f32 %v1345, %v1414
  %v1447 = vadd.f32 %v1346, %v1415
  %v1448 = vadd.f32 %v1347, %v1416
  %v1449 = vadd.f32 %v1348, %v1417
  %v1450 = vadd.f32 %v1349, %v1418
  %v1451 = vadd.f32 %v1350, %v1419
  %v1452 = vadd.f32 %v1351, %v1420
  %v1453 = vadd.f32 %v1352, %v1421
  %v1454 = vadd.f32 %v1353, %v1422
  %v1455 = vadd.f32 %v1354, %v1423
  %v1456 = vadd.f32 %v1355, %v1424
  %v1457 = vadd.f32 %v1356, %v1425
  %v1458 = vadd.f32 %v1357, %v1426
  %v1459 = vadd.f32 %v1358, %v1427
  %v1460 = vadd.f32 %v1359, %v1428
  %v1461 = vadd.f32 %v1360, %v1429
  %v1462 = vld [vmem:[%s1259 + $0x2] sm:$0xff]
  %v1463 = vld [vmem:[%s1259 + $0xa] sm:$0xff]
  %v1464 = vld [vmem:[%s1259 + $0x1a] sm:$0xff]
  %v1465 = vld [vmem:[%s1259 + $0x22] sm:$0xff]
  %v1466 = vld [vmem:[%s1259 + $0x32] sm:$0xff]
  %v1467 = vld [vmem:[%s1259 + $0x3a] sm:$0xff]
  %v1468 = vld [vmem:[%s1259 + $0x4a] sm:$0xff]
  %v1469 = vld [vmem:[%s1259 + $0x52] sm:$0xff]
  %v1470 = vld [vmem:[%s1259 + $0x62] sm:$0xff]
  %v1471 = vld [vmem:[%s1259 + $0x6a] sm:$0xff]
  %v1472 = vld [vmem:[%s1259 + $0x7a] sm:$0xff]
  %v1473 = vld [vmem:[%s1259 + $0x82] sm:$0xff]
  %v1474 = vld [vmem:[%s1259 + $0x92] sm:$0xff]
  %v1475 = vld [vmem:[%s1259 + $0x9a] sm:$0xff]
  %v1476 = vld [vmem:[%s1259 + $0xaa] sm:$0xff]
  %v1477 = vld [vmem:[%s1259 + $0xb2] sm:$0xff]
  %v1478 = vld [vmem:[%s1259 + $0xc2] sm:$0xff]
  %v1479 = vld [vmem:[%s1259 + $0xca] sm:$0xff]
  %v1480 = vld [vmem:[%s1259 + $0xda] sm:$0xff]
  %v1481 = vld [vmem:[%s1259 + $0xe2] sm:$0xff]
  %v1482 = vld [vmem:[%s1259 + $0xf2] sm:$0xff]
  %v1483 = vld [vmem:[%s1259 + $0xfa] sm:$0xff]
  %v1484 = vld [vmem:[%s1259 + $0x10a] sm:$0xff]
  %v1485 = vld [vmem:[%s1259 + $0x112] sm:$0xff]
  %v1486 = vld [vmem:[%s1259 + $0x122] sm:$0xff]
  %v1487 = vld [vmem:[%s1259 + $0x12a] sm:$0xff]
  %v1488 = vld [vmem:[%s1259 + $0x13a] sm:$0xff]
  %v1489 = vld [vmem:[%s1259 + $0x142] sm:$0xff]
  %v1490 = vld [vmem:[%s1259 + $0x152] sm:$0xff]
  %v1491 = vld [vmem:[%s1259 + $0x15a] sm:$0xff]
  %v1492 = vld [vmem:[%s1259 + $0x16a] sm:$0xff]
  %v1493 = vld [vmem:[%s1259 + $0x172] sm:$0xff]
  %v1494 = vld [vmem:[%s3 + $0x8] sm:$0x1]
  %v1495 = vlaneseq
  %v1496 = vshrl.u32 %v1495, 7
  %v1497 = vsub.s32 0, %v1496
  %v1498 = vrot.slane %v1494, %v1497
  %v1499 = vmul.f32 %v1462, %v1498
  %v1500 = vmul.f32 %v1463, %v1498
  %v1501 = vmul.f32 %v1464, %v1498
  %v1502 = vmul.f32 %v1465, %v1498
  %v1503 = vmul.f32 %v1466, %v1498
  %v1504 = vmul.f32 %v1467, %v1498
  %v1505 = vmul.f32 %v1468, %v1498
  %v1506 = vmul.f32 %v1469, %v1498
  %v1507 = vmul.f32 %v1470, %v1498
  %v1508 = vmul.f32 %v1471, %v1498
  %v1509 = vmul.f32 %v1472, %v1498
  %v1510 = vmul.f32 %v1473, %v1498
  %v1511 = vmul.f32 %v1474, %v1498
  %v1512 = vmul.f32 %v1475, %v1498
  %v1513 = vmul.f32 %v1476, %v1498
  %v1514 = vmul.f32 %v1477, %v1498
  %v1515 = vmul.f32 %v1478, %v1498
  %v1516 = vmul.f32 %v1479, %v1498
  %v1517 = vmul.f32 %v1480, %v1498
  %v1518 = vmul.f32 %v1481, %v1498
  %v1519 = vmul.f32 %v1482, %v1498
  %v1520 = vmul.f32 %v1483, %v1498
  %v1521 = vmul.f32 %v1484, %v1498
  %v1522 = vmul.f32 %v1485, %v1498
  %v1523 = vmul.f32 %v1486, %v1498
  %v1524 = vmul.f32 %v1487, %v1498
  %v1525 = vmul.f32 %v1488, %v1498
  %v1526 = vmul.f32 %v1489, %v1498
  %v1527 = vmul.f32 %v1490, %v1498
  %v1528 = vmul.f32 %v1491, %v1498
  %v1529 = vmul.f32 %v1492, %v1498
  %v1530 = vmul.f32 %v1493, %v1498
  %v1531 = vadd.f32 %v1430, %v1499
  %v1532 = vadd.f32 %v1431, %v1500
  %v1533 = vadd.f32 %v1432, %v1501
  %v1534 = vadd.f32 %v1433, %v1502
  %v1535 = vadd.f32 %v1434, %v1503
  %v1536 = vadd.f32 %v1435, %v1504
  %v1537 = vadd.f32 %v1436, %v1505
  %v1538 = vadd.f32 %v1437, %v1506
  %v1539 = vadd.f32 %v1438, %v1507
  %v1540 = vadd.f32 %v1439, %v1508
  %v1541 = vadd.f32 %v1440, %v1509
  %v1542 = vadd.f32 %v1441, %v1510
  %v1543 = vadd.f32 %v1442, %v1511
  %v1544 = vadd.f32 %v1443, %v1512
  %v1545 = vadd.f32 %v1444, %v1513
  %v1546 = vadd.f32 %v1445, %v1514
  %v1547 = vadd.f32 %v1446, %v1515
  %v1548 = vadd.f32 %v1447, %v1516
  %v1549 = vadd.f32 %v1448, %v1517
  %v1550 = vadd.f32 %v1449, %v1518
  %v1551 = vadd.f32 %v1450, %v1519
  %v1552 = vadd.f32 %v1451, %v1520
  %v1553 = vadd.f32 %v1452, %v1521
  %v1554 = vadd.f32 %v1453, %v1522
  %v1555 = vadd.f32 %v1454, %v1523
  %v1556 = vadd.f32 %v1455, %v1524
  %v1557 = vadd.f32 %v1456, %v1525
  %v1558 = vadd.f32 %v1457, %v1526
  %v1559 = vadd.f32 %v1458, %v1527
  %v1560 = vadd.f32 %v1459, %v1528
  %v1561 = vadd.f32 %v1460, %v1529
  %v1562 = vadd.f32 %v1461, %v1530
  %v1563 = vld [vmem:[%s4] sm:$0x1]
  %v1565 = vlaneseq
  %v1566 = vshrl.u32 %v1565, 7
  %v1567 = vsub.s32 0, %v1566
  %v1568 = vrot.slane %v1563, %v1567
  %v1570 = vadd.f32 %v1531, %v1568
  %v1571 = vadd.f32 %v1532, %v1568
  %v1572 = vadd.f32 %v1533, %v1568
  %v1573 = vadd.f32 %v1534, %v1568
  %v1574 = vadd.f32 %v1535, %v1568
  %v1575 = vadd.f32 %v1536, %v1568
  %v1576 = vadd.f32 %v1537, %v1568
  %v1577 = vadd.f32 %v1538, %v1568
  %v1578 = vadd.f32 %v1539, %v1568
  %v1579 = vadd.f32 %v1540, %v1568
  %v1580 = vadd.f32 %v1541, %v1568
  %v1581 = vadd.f32 %v1542, %v1568
  %v1582 = vadd.f32 %v1543, %v1568
  %v1583 = vadd.f32 %v1544, %v1568
  %v1584 = vadd.f32 %v1545, %v1568
  %v1585 = vadd.f32 %v1546, %v1568
  %v1586 = vadd.f32 %v1547, %v1568
  %v1587 = vadd.f32 %v1548, %v1568
  %v1588 = vadd.f32 %v1549, %v1568
  %v1589 = vadd.f32 %v1550, %v1568
  %v1590 = vadd.f32 %v1551, %v1568
  %v1591 = vadd.f32 %v1552, %v1568
  %v1592 = vadd.f32 %v1553, %v1568
  %v1593 = vadd.f32 %v1554, %v1568
  %v1594 = vadd.f32 %v1555, %v1568
  %v1595 = vadd.f32 %v1556, %v1568
  %v1596 = vadd.f32 %v1557, %v1568
  %v1597 = vadd.f32 %v1558, %v1568
  %v1598 = vadd.f32 %v1559, %v1568
  %v1599 = vadd.f32 %v1560, %v1568
  %v1600 = vadd.f32 %v1561, %v1568
  %v1601 = vadd.f32 %v1562, %v1568
  %v1602 = vsel %vm38, %v1570, 0.0
  %v1603 = vsel %vm38, %v1571, 0.0
  %v1604 = vadd.f32 %v1602, %v1603
  %v1605 = vsel %vm38, %v1572, 0.0
  %v1606 = vadd.f32 %v1604, %v1605
  %v1607 = vsel %vm38, %v1573, 0.0
  %v1608 = vadd.f32 %v1606, %v1607
  %v1609 = vsel %vm38, %v1574, 0.0
  %v1610 = vadd.f32 %v1608, %v1609
  %v1611 = vsel %vm38, %v1575, 0.0
  %v1612 = vadd.f32 %v1610, %v1611
  %v1613 = vsel %vm38, %v1576, 0.0
  %v1614 = vadd.f32 %v1612, %v1613
  %v1615 = vsel %vm38, %v1577, 0.0
  %v1616 = vadd.f32 %v1614, %v1615
  %v1617 = vsel %vm38, %v1578, 0.0
  %v1618 = vadd.f32 %v1616, %v1617
  %v1619 = vsel %vm38, %v1579, 0.0
  %v1620 = vadd.f32 %v1618, %v1619
  %v1621 = vsel %vm38, %v1580, 0.0
  %v1622 = vadd.f32 %v1620, %v1621
  %v1623 = vsel %vm38, %v1581, 0.0
  %v1624 = vadd.f32 %v1622, %v1623
  %v1625 = vsel %vm38, %v1582, 0.0
  %v1626 = vadd.f32 %v1624, %v1625
  %v1627 = vsel %vm38, %v1583, 0.0
  %v1628 = vadd.f32 %v1626, %v1627
  %v1629 = vsel %vm38, %v1584, 0.0
  %v1630 = vadd.f32 %v1628, %v1629
  %v1631 = vsel %vm38, %v1585, 0.0
  %v1632 = vadd.f32 %v1630, %v1631
  %v1633 = vsel %vm38, %v1586, 0.0
  %v1634 = vadd.f32 %v1632, %v1633
  %v1635 = vsel %vm38, %v1587, 0.0
  %v1636 = vadd.f32 %v1634, %v1635
  %v1637 = vsel %vm38, %v1588, 0.0
  %v1638 = vadd.f32 %v1636, %v1637
  %v1639 = vsel %vm38, %v1589, 0.0
  %v1640 = vadd.f32 %v1638, %v1639
  %v1641 = vsel %vm38, %v1590, 0.0
  %v1642 = vadd.f32 %v1640, %v1641
  %v1643 = vsel %vm38, %v1591, 0.0
  %v1644 = vadd.f32 %v1642, %v1643
  %v1645 = vsel %vm38, %v1592, 0.0
  %v1646 = vadd.f32 %v1644, %v1645
  %v1647 = vsel %vm38, %v1593, 0.0
  %v1648 = vadd.f32 %v1646, %v1647
  %v1649 = vsel %vm38, %v1594, 0.0
  %v1650 = vadd.f32 %v1648, %v1649
  %v1651 = vsel %vm38, %v1595, 0.0
  %v1652 = vadd.f32 %v1650, %v1651
  %v1653 = vsel %vm38, %v1596, 0.0
  %v1654 = vadd.f32 %v1652, %v1653
  %v1655 = vsel %vm38, %v1597, 0.0
  %v1656 = vadd.f32 %v1654, %v1655
  %v1657 = vsel %vm38, %v1598, 0.0
  %v1658 = vadd.f32 %v1656, %v1657
  %v1659 = vsel %vm38, %v1599, 0.0
  %v1660 = vadd.f32 %v1658, %v1659
  %v1661 = vsel %vm38, %v1600, 0.0
  %v1662 = vadd.f32 %v1660, %v1661
  %v1663 = vsel %vm38, %v1601, 0.0
  %v1664 = vadd.f32 %v1662, %v1663
  %v1665 = vrot.slane %v1664, 4
  %v1666 = vadd.f32 %v1664, %v1665
  %v1667 = vrot.slane %v1666, 2
  %v1668 = vadd.f32 %v1666, %v1667
  %v1669 = vrot.slane %v1668, 1
  %v1670 = vadd.f32 %v1668, %v1669
  %v1671 = vrcp.pop 256.0
  %v1672 = vmul.f32 %v1670, %v1671
  %v1673 = vld [vmem:[%s5] sm:$0xff]
  %v1674 = vld [vmem:[%s6] sm:$0x1]
  %v1676 = vsel %vm38, %v1672, 0
  %1678 = vmatprep.subr.mxu0 0.0
  %1679 = vmatpush1.msra.mxu0 %v1673
  %1680 = vmatprep.subr.mxu0 0.0
  %1681 = vmatpush1.msra.mxu0 0.0
  %1682 = vmatprep.subr.mxu0 0.0
  %1683 = vmatpush1.msra.mxu0 0.0
  %1684 = vmatprep.subr.mxu0 0.0
  %1685 = vmatpush1.msra.mxu0 0.0
  %1686 = vmatprep.subr.mxu0 0.0
  %1687 = vmatpush1.msra.mxu0 0.0
  %1688 = vmatprep.subr.mxu0 0.0
  %1689 = vmatpush1.msra.mxu0 0.0
  %1690 = vmatprep.subr.mxu0 0.0
  %1691 = vmatpush1.msra.mxu0 0.0
  %1692 = vmatprep.subr.mxu0 0.0
  %1693 = vmatpush1.msra.mxu0 0.0
  %1694 = vmatprep.subr.mxu0 0.0
  %1695 = vmatpush1.msra.mxu0 0.0
  %1696 = vmatprep.subr.mxu0 0.0
  %1697 = vmatpush1.msra.mxu0 0.0
  %1698 = vmatprep.subr.mxu0 0.0
  %1699 = vmatpush1.msra.mxu0 0.0
  %1700 = vmatprep.subr.mxu0 0.0
  %1701 = vmatpush1.msra.mxu0 0.0
  %1702 = vmatprep.subr.mxu0 0.0
  %1703 = vmatpush1.msra.mxu0 0.0
  %1704 = vmatprep.subr.mxu0 0.0
  %1705 = vmatpush1.msra.mxu0 0.0
  %1706 = vmatprep.subr.mxu0 0.0
  %1707 = vmatpush1.msra.mxu0 0.0
  %1708 = vmatprep.subr.mxu0 0.0
  %1709 = vmatpush1.msra.mxu0 0.0
  %1710 = vmatprep.subr.mxu0 0.0
  %1711 = vmatpush1.msra.mxu0 0.0
  %1712 = vmatprep.subr.mxu0 0.0
  %1713 = vmatpush1.msra.mxu0 0.0
  %1714 = vmatprep.subr.mxu0 0.0
  %1715 = vmatpush1.msra.mxu0 0.0
  %1716 = vmatprep.subr.mxu0 0.0
  %1717 = vmatpush1.msra.mxu0 0.0
  %1718 = vmatprep.subr.mxu0 0.0
  %1719 = vmatpush1.msra.mxu0 0.0
  %1720 = vmatprep.subr.mxu0 0.0
  %1721 = vmatpush1.msra.mxu0 0.0
  %1722 = vmatprep.subr.mxu0 0.0
  %1723 = vmatpush1.msra.mxu0 0.0
  %1724 = vmatprep.subr.mxu0 0.0
  %1725 = vmatpush1.msra.mxu0 0.0
  %1726 = vmatprep.subr.mxu0 0.0
  %1727 = vmatpush1.msra.mxu0 0.0
  %1728 = vmatprep.subr.mxu0 0.0
  %1729 = vmatpush1.msra.mxu0 0.0
  %1730 = vmatprep.subr.mxu0 0.0
  %1731 = vmatpush1.msra.mxu0 0.0
  %1732 = vmatprep.subr.mxu0 0.0
  %1733 = vmatpush1.msra.mxu0 0.0
  %1734 = vmatprep.subr.mxu0 0.0
  %1735 = vmatpush1.msra.mxu0 0.0
  %1736 = vmatprep.subr.mxu0 0.0
  %1737 = vmatpush1.msra.mxu0 0.0
  %1738 = vmatprep.subr.mxu0 0.0
  %1739 = vmatpush1.msra.mxu0 0.0
  %1740 = vmatprep.subr.mxu0 0.0
  %1741 = vmatpush1.msra.mxu0 0.0
  %1742 = vmatprep.mubr.f32.mxu0 0.0
  %1743 = vmatmul.mubr.f32.gmra.mrb[0].mxu0 %v1676
  %v1744 = vpop.f32.mrb[0].mxu0
  %v1745 = vadd.f32 %v1674, %v1744
  %v1746 = vpop.f32.mrb[0].mxu0
  %1747 = vdwg.mxu0
  %v1748 = vmax.f32 %v1745, 0.0
  %v1749 = vld [vmem:[%s7] sm:$0x3]
  %v1750 = vld [vmem:[%s8] sm:$0x1]
  %vm1751 = vcmask 15360
  %v1753 = vsel %vm1751, %v1748, 0
  %vm1755 = vcmask 1041408
  %v1757 = vsel %vm1755, %v1749, 0
  %1759 = vmatprep.subr.mxu0 0.0
  %1760 = vmatpush1.msra.mxu0 %v1757
  %1761 = vmatprep.subr.mxu0 0.0
  %1762 = vmatpush1.msra.mxu0 0.0
  %1763 = vmatprep.subr.mxu0 0.0
  %1764 = vmatpush1.msra.mxu0 0.0
  %1765 = vmatprep.subr.mxu0 0.0
  %1766 = vmatpush1.msra.mxu0 0.0
  %1767 = vmatprep.subr.mxu0 0.0
  %1768 = vmatpush1.msra.mxu0 0.0
  %1769 = vmatprep.subr.mxu0 0.0
  %1770 = vmatpush1.msra.mxu0 0.0
  %1771 = vmatprep.subr.mxu0 0.0
  %1772 = vmatpush1.msra.mxu0 0.0
  %1773 = vmatprep.subr.mxu0 0.0
  %1774 = vmatpush1.msra.mxu0 0.0
  %1775 = vmatprep.subr.mxu0 0.0
  %1776 = vmatpush1.msra.mxu0 0.0
  %1777 = vmatprep.subr.mxu0 0.0
  %1778 = vmatpush1.msra.mxu0 0.0
  %1779 = vmatprep.subr.mxu0 0.0
  %1780 = vmatpush1.msra.mxu0 0.0
  %1781 = vmatprep.subr.mxu0 0.0
  %1782 = vmatpush1.msra.mxu0 0.0
  %1783 = vmatprep.subr.mxu0 0.0
  %1784 = vmatpush1.msra.mxu0 0.0
  %1785 = vmatprep.subr.mxu0 0.0
  %1786 = vmatpush1.msra.mxu0 0.0
  %1787 = vmatprep.subr.mxu0 0.0
  %1788 = vmatpush1.msra.mxu0 0.0
  %1789 = vmatprep.subr.mxu0 0.0
  %1790 = vmatpush1.msra.mxu0 0.0
  %1791 = vmatprep.subr.mxu0 0.0
  %1792 = vmatpush1.msra.mxu0 0.0
  %1793 = vmatprep.subr.mxu0 0.0
  %1794 = vmatpush1.msra.mxu0 0.0
  %1795 = vmatprep.subr.mxu0 0.0
  %1796 = vmatpush1.msra.mxu0 0.0
  %1797 = vmatprep.subr.mxu0 0.0
  %1798 = vmatpush1.msra.mxu0 0.0
  %1799 = vmatprep.subr.mxu0 0.0
  %1800 = vmatpush1.msra.mxu0 0.0
  %1801 = vmatprep.subr.mxu0 0.0
  %1802 = vmatpush1.msra.mxu0 0.0
  %1803 = vmatprep.subr.mxu0 0.0
  %1804 = vmatpush1.msra.mxu0 0.0
  %1805 = vmatprep.subr.mxu0 0.0
  %1806 = vmatpush1.msra.mxu0 0.0
  %1807 = vmatprep.subr.mxu0 0.0
  %1808 = vmatpush1.msra.mxu0 0.0
  %1809 = vmatprep.subr.mxu0 0.0
  %1810 = vmatpush1.msra.mxu0 0.0
  %1811 = vmatprep.subr.mxu0 0.0
  %1812 = vmatpush1.msra.mxu0 0.0
  %1813 = vmatprep.subr.mxu0 0.0
  %1814 = vmatpush1.msra.mxu0 0.0
  %1815 = vmatprep.subr.mxu0 0.0
  %1816 = vmatpush1.msra.mxu0 0.0
  %1817 = vmatprep.subr.mxu0 0.0
  %1818 = vmatpush1.msra.mxu0 0.0
  %1819 = vmatprep.subr.mxu0 0.0
  %1820 = vmatpush1.msra.mxu0 0.0
  %1821 = vmatprep.subr.mxu0 0.0
  %1822 = vmatpush1.msra.mxu0 0.0
  %1823 = vmatprep.mubr.f32.mxu0 0.0
  %1824 = vmatmul.mubr.f32.gmra.mrb[0].mxu0 %v1753
  %v1825 = vpop.f32.mrb[0].mxu0
  %v1826 = vadd.f32 %v1750, %v1825
  %v1827 = vpop.f32.mrb[0].mxu0
  %1828 = vdwg.mxu0
  %v1829 = vadd.f32 %v1826, 3.0
  %v1830 = vmax.f32 %v1829, 0.0
  %v1831 = vmin.f32 %v1830, 6.0
  %v1832 = vmul.f32 %v1831, 0.16666667
  %v1833 = vlaneseq
  %v1834 = vshrl.u32 %v1833, 7
  %v1835 = vsub.s32 0, %v1834
  %v1836 = vrot.slane %v1832, %v1835
  %v1837 = vmul.f32 %v1570, %v1836
  %v1838 = vmul.f32 %v1571, %v1836
  %v1839 = vmul.f32 %v1572, %v1836
  %v1840 = vmul.f32 %v1573, %v1836
  %v1841 = vmul.f32 %v1574, %v1836
  %v1842 = vmul.f32 %v1575, %v1836
  %v1843 = vmul.f32 %v1576, %v1836
  %v1844 = vmul.f32 %v1577, %v1836
  %v1845 = vmul.f32 %v1578, %v1836
  %v1846 = vmul.f32 %v1579, %v1836
  %v1847 = vmul.f32 %v1580, %v1836
  %v1848 = vmul.f32 %v1581, %v1836
  %v1849 = vmul.f32 %v1582, %v1836
  %v1850 = vmul.f32 %v1583, %v1836
  %v1851 = vmul.f32 %v1584, %v1836
  %v1852 = vmul.f32 %v1585, %v1836
  %v1853 = vmul.f32 %v1586, %v1836
  %v1854 = vmul.f32 %v1587, %v1836
  %v1855 = vmul.f32 %v1588, %v1836
  %v1856 = vmul.f32 %v1589, %v1836
  %v1857 = vmul.f32 %v1590, %v1836
  %v1858 = vmul.f32 %v1591, %v1836
  %v1859 = vmul.f32 %v1592, %v1836
  %v1860 = vmul.f32 %v1593, %v1836
  %v1861 = vmul.f32 %v1594, %v1836
  %v1862 = vmul.f32 %v1595, %v1836
  %v1863 = vmul.f32 %v1596, %v1836
  %v1864 = vmul.f32 %v1597, %v1836
  %v1865 = vmul.f32 %v1598, %v1836
  %v1866 = vmul.f32 %v1599, %v1836
  %v1867 = vmul.f32 %v1600, %v1836
  %v1868 = vmul.f32 %v1601, %v1836
  %v1869 = vadd.f32 %v1837, 3.0
  %v1870 = vadd.f32 %v1838, 3.0
  %v1871 = vadd.f32 %v1839, 3.0
  %v1872 = vadd.f32 %v1840, 3.0
  %v1873 = vadd.f32 %v1841, 3.0
  %v1874 = vadd.f32 %v1842, 3.0
  %v1875 = vadd.f32 %v1843, 3.0
  %v1876 = vadd.f32 %v1844, 3.0
  %v1877 = vadd.f32 %v1845, 3.0
  %v1878 = vadd.f32 %v1846, 3.0
  %v1879 = vadd.f32 %v1847, 3.0
  %v1880 = vadd.f32 %v1848, 3.0
  %v1881 = vadd.f32 %v1849, 3.0
  %v1882 = vadd.f32 %v1850, 3.0
  %v1883 = vadd.f32 %v1851, 3.0
  %v1884 = vadd.f32 %v1852, 3.0
  %v1885 = vadd.f32 %v1853, 3.0
  %v1886 = vadd.f32 %v1854, 3.0
  %v1887 = vadd.f32 %v1855, 3.0
  %v1888 = vadd.f32 %v1856, 3.0
  %v1889 = vadd.f32 %v1857, 3.0
  %v1890 = vadd.f32 %v1858, 3.0
  %v1891 = vadd.f32 %v1859, 3.0
  %v1892 = vadd.f32 %v1860, 3.0
  %v1893 = vadd.f32 %v1861, 3.0
  %v1894 = vadd.f32 %v1862, 3.0
  %v1895 = vadd.f32 %v1863, 3.0
  %v1896 = vadd.f32 %v1864, 3.0
  %v1897 = vadd.f32 %v1865, 3.0
  %v1898 = vadd.f32 %v1866, 3.0
  %v1899 = vadd.f32 %v1867, 3.0
  %v1900 = vadd.f32 %v1868, 3.0
  %v1901 = vmax.f32 %v1869, 0.0
  %v1902 = vmax.f32 %v1870, 0.0
  %v1903 = vmax.f32 %v1871, 0.0
  %v1904 = vmax.f32 %v1872, 0.0
  %v1905 = vmax.f32 %v1873, 0.0
  %v1906 = vmax.f32 %v1874, 0.0
  %v1907 = vmax.f32 %v1875, 0.0
  %v1908 = vmax.f32 %v1876, 0.0
  %v1909 = vmax.f32 %v1877, 0.0
  %v1910 = vmax.f32 %v1878, 0.0
  %v1911 = vmax.f32 %v1879, 0.0
  %v1912 = vmax.f32 %v1880, 0.0
  %v1913 = vmax.f32 %v1881, 0.0
  %v1914 = vmax.f32 %v1882, 0.0
  %v1915 = vmax.f32 %v1883, 0.0
  %v1916 = vmax.f32 %v1884, 0.0
  %v1917 = vmax.f32 %v1885, 0.0
  %v1918 = vmax.f32 %v1886, 0.0
  %v1919 = vmax.f32 %v1887, 0.0
  %v1920 = vmax.f32 %v1888, 0.0
  %v1921 = vmax.f32 %v1889, 0.0
  %v1922 = vmax.f32 %v1890, 0.0
  %v1923 = vmax.f32 %v1891, 0.0
  %v1924 = vmax.f32 %v1892, 0.0
  %v1925 = vmax.f32 %v1893, 0.0
  %v1926 = vmax.f32 %v1894, 0.0
  %v1927 = vmax.f32 %v1895, 0.0
  %v1928 = vmax.f32 %v1896, 0.0
  %v1929 = vmax.f32 %v1897, 0.0
  %v1930 = vmax.f32 %v1898, 0.0
  %v1931 = vmax.f32 %v1899, 0.0
  %v1932 = vmax.f32 %v1900, 0.0
  %v1933 = vmin.f32 %v1901, 6.0
  %v1934 = vmin.f32 %v1902, 6.0
  %v1935 = vmin.f32 %v1903, 6.0
  %v1936 = vmin.f32 %v1904, 6.0
  %v1937 = vmin.f32 %v1905, 6.0
  %v1938 = vmin.f32 %v1906, 6.0
  %v1939 = vmin.f32 %v1907, 6.0
  %v1940 = vmin.f32 %v1908, 6.0
  %v1941 = vmin.f32 %v1909, 6.0
  %v1942 = vmin.f32 %v1910, 6.0
  %v1943 = vmin.f32 %v1911, 6.0
  %v1944 = vmin.f32 %v1912, 6.0
  %v1945 = vmin.f32 %v1913, 6.0
  %v1946 = vmin.f32 %v1914, 6.0
  %v1947 = vmin.f32 %v1915, 6.0
  %v1948 = vmin.f32 %v1916, 6.0
  %v1949 = vmin.f32 %v1917, 6.0
  %v1950 = vmin.f32 %v1918, 6.0
  %v1951 = vmin.f32 %v1919, 6.0
  %v1952 = vmin.f32 %v1920, 6.0
  %v1953 = vmin.f32 %v1921, 6.0
  %v1954 = vmin.f32 %v1922, 6.0
  %v1955 = vmin.f32 %v1923, 6.0
  %v1956 = vmin.f32 %v1924, 6.0
  %v1957 = vmin.f32 %v1925, 6.0
  %v1958 = vmin.f32 %v1926, 6.0
  %v1959 = vmin.f32 %v1927, 6.0
  %v1960 = vmin.f32 %v1928, 6.0
  %v1961 = vmin.f32 %v1929, 6.0
  %v1962 = vmin.f32 %v1930, 6.0
  %v1963 = vmin.f32 %v1931, 6.0
  %v1964 = vmin.f32 %v1932, 6.0
  %v1965 = vmul.f32 %v1933, 0.16666667
  %v1966 = vmul.f32 %v1934, 0.16666667
  %v1967 = vmul.f32 %v1935, 0.16666667
  %v1968 = vmul.f32 %v1936, 0.16666667
  %v1969 = vmul.f32 %v1937, 0.16666667
  %v1970 = vmul.f32 %v1938, 0.16666667
  %v1971 = vmul.f32 %v1939, 0.16666667
  %v1972 = vmul.f32 %v1940, 0.16666667
  %v1973 = vmul.f32 %v1941, 0.16666667
  %v1974 = vmul.f32 %v1942, 0.16666667
  %v1975 = vmul.f32 %v1943, 0.16666667
  %v1976 = vmul.f32 %v1944, 0.16666667
  %v1977 = vmul.f32 %v1945, 0.16666667
  %v1978 = vmul.f32 %v1946, 0.16666667
  %v1979 = vmul.f32 %v1947, 0.16666667
  %v1980 = vmul.f32 %v1948, 0.16666667
  %v1981 = vmul.f32 %v1949, 0.16666667
  %v1982 = vmul.f32 %v1950, 0.16666667
  %v1983 = vmul.f32 %v1951, 0.16666667
  %v1984 = vmul.f32 %v1952, 0.16666667
  %v1985 = vmul.f32 %v1953, 0.16666667
  %v1986 = vmul.f32 %v1954, 0.16666667
  %v1987 = vmul.f32 %v1955, 0.16666667
  %v1988 = vmul.f32 %v1956, 0.16666667
  %v1989 = vmul.f32 %v1957, 0.16666667
  %v1990 = vmul.f32 %v1958, 0.16666667
  %v1991 = vmul.f32 %v1959, 0.16666667
  %v1992 = vmul.f32 %v1960, 0.16666667
  %v1993 = vmul.f32 %v1961, 0.16666667
  %v1994 = vmul.f32 %v1962, 0.16666667
  %v1995 = vmul.f32 %v1963, 0.16666667
  %v1996 = vmul.f32 %v1964, 0.16666667
  %v1997 = vmul.f32 %v1837, %v1965
  %v1998 = vmul.f32 %v1838, %v1966
  %v1999 = vmul.f32 %v1839, %v1967
  %v2000 = vmul.f32 %v1840, %v1968
  %v2001 = vmul.f32 %v1841, %v1969
  %v2002 = vmul.f32 %v1842, %v1970
  %v2003 = vmul.f32 %v1843, %v1971
  %v2004 = vmul.f32 %v1844, %v1972
  %v2005 = vmul.f32 %v1845, %v1973
  %v2006 = vmul.f32 %v1846, %v1974
  %v2007 = vmul.f32 %v1847, %v1975
  %v2008 = vmul.f32 %v1848, %v1976
  %v2009 = vmul.f32 %v1849, %v1977
  %v2010 = vmul.f32 %v1850, %v1978
  %v2011 = vmul.f32 %v1851, %v1979
  %v2012 = vmul.f32 %v1852, %v1980
  %v2013 = vmul.f32 %v1853, %v1981
  %v2014 = vmul.f32 %v1854, %v1982
  %v2015 = vmul.f32 %v1855, %v1983
  %v2016 = vmul.f32 %v1856, %v1984
  %v2017 = vmul.f32 %v1857, %v1985
  %v2018 = vmul.f32 %v1858, %v1986
  %v2019 = vmul.f32 %v1859, %v1987
  %v2020 = vmul.f32 %v1860, %v1988
  %v2021 = vmul.f32 %v1861, %v1989
  %v2022 = vmul.f32 %v1862, %v1990
  %v2023 = vmul.f32 %v1863, %v1991
  %v2024 = vmul.f32 %v1864, %v1992
  %v2025 = vmul.f32 %v1865, %v1993
  %v2026 = vmul.f32 %v1866, %v1994
  %v2027 = vmul.f32 %v1867, %v1995
  %v2028 = vmul.f32 %v1868, %v1996
  %v2029 = vld [vmem:[%s9] sm:$0xff]
  %v2030 = vld [vmem:[%s10] sm:$0x1]
  %v2032 = vlaneseq
  %v2033 = vshrl.u32 %v2032, 7
  %v2034 = vsub.s32 0, %v2033
  %v2035 = vrot.slane %v2030, %v2034
  %v2038 = vsel %vm38, %v1997, 0
  %v2041 = vsel %vm38, %v1998, 0
  %v2044 = vsel %vm38, %v1999, 0
  %v2047 = vsel %vm38, %v2000, 0
  %v2050 = vsel %vm38, %v2001, 0
  %v2053 = vsel %vm38, %v2002, 0
  %v2056 = vsel %vm38, %v2003, 0
  %v2059 = vsel %vm38, %v2004, 0
  %v2062 = vsel %vm38, %v2005, 0
  %v2065 = vsel %vm38, %v2006, 0
  %v2068 = vsel %vm38, %v2007, 0
  %v2071 = vsel %vm38, %v2008, 0
  %v2074 = vsel %vm38, %v2009, 0
  %v2077 = vsel %vm38, %v2010, 0
  %v2080 = vsel %vm38, %v2011, 0
  %v2083 = vsel %vm38, %v2012, 0
  %v2086 = vsel %vm38, %v2013, 0
  %v2089 = vsel %vm38, %v2014, 0
  %v2092 = vsel %vm38, %v2015, 0
  %v2095 = vsel %vm38, %v2016, 0
  %v2098 = vsel %vm38, %v2017, 0
  %v2101 = vsel %vm38, %v2018, 0
  %v2104 = vsel %vm38, %v2019, 0
  %v2107 = vsel %vm38, %v2020, 0
  %v2110 = vsel %vm38, %v2021, 0
  %v2113 = vsel %vm38, %v2022, 0
  %v2116 = vsel %vm38, %v2023, 0
  %v2119 = vsel %vm38, %v2024, 0
  %v2122 = vsel %vm38, %v2025, 0
  %v2125 = vsel %vm38, %v2026, 0
  %v2128 = vsel %vm38, %v2027, 0
  %v2131 = vsel %vm38, %v2028, 0
  %2133 = vmatprep.subr.mxu0 0.0
  %2134 = vmatpush1.msra.mxu0 %v2029
  %2135 = vmatprep.subr.mxu0 0.0
  %2136 = vmatpush1.msra.mxu0 0.0
  %2137 = vmatprep.subr.mxu0 0.0
  %2138 = vmatpush1.msra.mxu0 0.0
  %2139 = vmatprep.subr.mxu0 0.0
  %2140 = vmatpush1.msra.mxu0 0.0
  %2141 = vmatprep.subr.mxu0 0.0
  %2142 = vmatpush1.msra.mxu0 0.0
  %2143 = vmatprep.subr.mxu0 0.0
  %2144 = vmatpush1.msra.mxu0 0.0
  %2145 = vmatprep.subr.mxu0 0.0
  %2146 = vmatpush1.msra.mxu0 0.0
  %2147 = vmatprep.subr.mxu0 0.0
  %2148 = vmatpush1.msra.mxu0 0.0
  %2149 = vmatprep.subr.mxu0 0.0
  %2150 = vmatpush1.msra.mxu0 0.0
  %2151 = vmatprep.subr.mxu0 0.0
  %2152 = vmatpush1.msra.mxu0 0.0
  %2153 = vmatprep.subr.mxu0 0.0
  %2154 = vmatpush1.msra.mxu0 0.0
  %2155 = vmatprep.subr.mxu0 0.0
  %2156 = vmatpush1.msra.mxu0 0.0
  %2157 = vmatprep.subr.mxu0 0.0
  %2158 = vmatpush1.msra.mxu0 0.0
  %2159 = vmatprep.subr.mxu0 0.0
  %2160 = vmatpush1.msra.mxu0 0.0
  %2161 = vmatprep.subr.mxu0 0.0
  %2162 = vmatpush1.msra.mxu0 0.0
  %2163 = vmatprep.subr.mxu0 0.0
  %2164 = vmatpush1.msra.mxu0 0.0
  %2165 = vmatprep.subr.mxu0 0.0
  %2166 = vmatpush1.msra.mxu0 0.0
  %2167 = vmatprep.subr.mxu0 0.0
  %2168 = vmatpush1.msra.mxu0 0.0
  %2169 = vmatprep.subr.mxu0 0.0
  %2170 = vmatpush1.msra.mxu0 0.0
  %2171 = vmatprep.subr.mxu0 0.0
  %2172 = vmatpush1.msra.mxu0 0.0
  %2173 = vmatprep.subr.mxu0 0.0
  %2174 = vmatpush1.msra.mxu0 0.0
  %2175 = vmatprep.subr.mxu0 0.0
  %2176 = vmatpush1.msra.mxu0 0.0
  %2177 = vmatprep.subr.mxu0 0.0
  %2178 = vmatpush1.msra.mxu0 0.0
  %2179 = vmatprep.subr.mxu0 0.0
  %2180 = vmatpush1.msra.mxu0 0.0
  %2181 = vmatprep.subr.mxu0 0.0
  %2182 = vmatpush1.msra.mxu0 0.0
  %2183 = vmatprep.subr.mxu0 0.0
  %2184 = vmatpush1.msra.mxu0 0.0
  %2185 = vmatprep.subr.mxu0 0.0
  %2186 = vmatpush1.msra.mxu0 0.0
  %2187 = vmatprep.subr.mxu0 0.0
  %2188 = vmatpush1.msra.mxu0 0.0
  %2189 = vmatprep.subr.mxu0 0.0
  %2190 = vmatpush1.msra.mxu0 0.0
  %2191 = vmatprep.subr.mxu0 0.0
  %2192 = vmatpush1.msra.mxu0 0.0
  %2193 = vmatprep.subr.mxu0 0.0
  %2194 = vmatpush1.msra.mxu0 0.0
  %2195 = vmatprep.subr.mxu0 0.0
  %2196 = vmatpush1.msra.mxu0 0.0
  %2197 = vmatprep.mubr.f32.mxu0 0.0
  %2198 = vmatmul.mubr.f32.gmra.mrb[0].mxu0 %v2038
  %v2199 = vpop.f32.mrb[0].mxu0
  %v2200 = vadd.f32 %v2035, %v2199
  %v2201 = vpop.f32.mrb[0].mxu0
  %2202 = vmatprep.mubr.f32.mxu0 0.0
  %2203 = vmatmul.mubr.f32.gmra.mrb[0].mxu0 %v2041
  %v2204 = vpop.f32.mrb[0].mxu0
  %v2205 = vadd.f32 %v2035, %v2204
  %v2206 = vpop.f32.mrb[0].mxu0
  %2207 = vmatprep.mubr.f32.mxu0 0.0
  %2208 = vmatmul.mubr.f32.gmra.mrb[0].mxu0 %v2044
  %v2209 = vpop.f32.mrb[0].mxu0
  %v2210 = vadd.f32 %v2035, %v2209
  %v2211 = vpop.f32.mrb[0].mxu0
  %2212 = vmatprep.mubr.f32.mxu0 0.0
  %2213 = vmatmul.mubr.f32.gmra.mrb[0].mxu0 %v2047
  %v2214 = vpop.f32.mrb[0].mxu0
  %v2215 = vadd.f32 %v2035, %v2214
  %v2216 = vpop.f32.mrb[0].mxu0
  %2217 = vmatprep.mubr.f32.mxu0 0.0
  %2218 = vmatmul.mubr.f32.gmra.mrb[0].mxu0 %v2050
  %v2219 = vpop.f32.mrb[0].mxu0
  %v2220 = vadd.f32 %v2035, %v2219
  %v2221 = vpop.f32.mrb[0].mxu0
  %2222 = vmatprep.mubr.f32.mxu0 0.0
  %2223 = vmatmul.mubr.f32.gmra.mrb[0].mxu0 %v2053
  %v2224 = vpop.f32.mrb[0].mxu0
  %v2225 = vadd.f32 %v2035, %v2224
  %v2226 = vpop.f32.mrb[0].mxu0
  %2227 = vmatprep.mubr.f32.mxu0 0.0
  %2228 = vmatmul.mubr.f32.gmra.mrb[0].mxu0 %v2056
  %v2229 = vpop.f32.mrb[0].mxu0
  %v2230 = vadd.f32 %v2035, %v2229
  %v2231 = vpop.f32.mrb[0].mxu0
  %2232 = vmatprep.mubr.f32.mxu0 0.0
  %2233 = vmatmul.mubr.f32.gmra.mrb[0].mxu0 %v2059
  %v2234 = vpop.f32.mrb[0].mxu0
  %v2235 = vadd.f32 %v2035, %v2234
  %v2236 = vpop.f32.mrb[0].mxu0
  %2237 = vmatprep.mubr.f32.mxu0 0.0
  %2238 = vmatmul.mubr.f32.gmra.mrb[0].mxu0 %v2062
  %v2239 = vpop.f32.mrb[0].mxu0
  %v2240 = vadd.f32 %v2035, %v2239
  %v2241 = vpop.f32.mrb[0].mxu0
  %2242 = vmatprep.mubr.f32.mxu0 0.0
  %2243 = vmatmul.mubr.f32.gmra.mrb[0].mxu0 %v2065
  %v2244 = vpop.f32.mrb[0].mxu0
  %v2245 = vadd.f32 %v2035, %v2244
  %v2246 = vpop.f32.mrb[0].mxu0
  %2247 = vmatprep.mubr.f32.mxu0 0.0
  %2248 = vmatmul.mubr.f32.gmra.mrb[0].mxu0 %v2068
  %v2249 = vpop.f32.mrb[0].mxu0
  %v2250 = vadd.f32 %v2035, %v2249
  %v2251 = vpop.f32.mrb[0].mxu0
  %2252 = vmatprep.mubr.f32.mxu0 0.0
  %2253 = vmatmul.mubr.f32.gmra.mrb[0].mxu0 %v2071
  %v2254 = vpop.f32.mrb[0].mxu0
  %v2255 = vadd.f32 %v2035, %v2254
  %v2256 = vpop.f32.mrb[0].mxu0
  %2257 = vmatprep.mubr.f32.mxu0 0.0
  %2258 = vmatmul.mubr.f32.gmra.mrb[0].mxu0 %v2074
  %v2259 = vpop.f32.mrb[0].mxu0
  %v2260 = vadd.f32 %v2035, %v2259
  %v2261 = vpop.f32.mrb[0].mxu0
  %2262 = vmatprep.mubr.f32.mxu0 0.0
  %2263 = vmatmul.mubr.f32.gmra.mrb[0].mxu0 %v2077
  %v2264 = vpop.f32.mrb[0].mxu0
  %v2265 = vadd.f32 %v2035, %v2264
  %v2266 = vpop.f32.mrb[0].mxu0
  %2267 = vmatprep.mubr.f32.mxu0 0.0
  %2268 = vmatmul.mubr.f32.gmra.mrb[0].mxu0 %v2080
  %v2269 = vpop.f32.mrb[0].mxu0
  %v2270 = vadd.f32 %v2035, %v2269
  %v2271 = vpop.f32.mrb[0].mxu0
  %2272 = vmatprep.mubr.f32.mxu0 0.0
  %2273 = vmatmul.mubr.f32.gmra.mrb[0].mxu0 %v2083
  %v2274 = vpop.f32.mrb[0].mxu0
  %v2275 = vadd.f32 %v2035, %v2274
  %v2276 = vpop.f32.mrb[0].mxu0
  %2277 = vmatprep.mubr.f32.mxu0 0.0
  %2278 = vmatmul.mubr.f32.gmra.mrb[0].mxu0 %v2086
  %v2279 = vpop.f32.mrb[0].mxu0
  %v2280 = vadd.f32 %v2035, %v2279
  %v2281 = vpop.f32.mrb[0].mxu0
  %2282 = vmatprep.mubr.f32.mxu0 0.0
  %2283 = vmatmul.mubr.f32.gmra.mrb[0].mxu0 %v2089
  %v2284 = vpop.f32.mrb[0].mxu0
  %v2285 = vadd.f32 %v2035, %v2284
  %v2286 = vpop.f32.mrb[0].mxu0
  %2287 = vmatprep.mubr.f32.mxu0 0.0
  %2288 = vmatmul.mubr.f32.gmra.mrb[0].mxu0 %v2092
  %v2289 = vpop.f32.mrb[0].mxu0
  %v2290 = vadd.f32 %v2035, %v2289
  %v2291 = vpop.f32.mrb[0].mxu0
  %2292 = vmatprep.mubr.f32.mxu0 0.0
  %2293 = vmatmul.mubr.f32.gmra.mrb[0].mxu0 %v2095
  %v2294 = vpop.f32.mrb[0].mxu0
  %v2295 = vadd.f32 %v2035, %v2294
  %v2296 = vpop.f32.mrb[0].mxu0
  %2297 = vmatprep.mubr.f32.mxu0 0.0
  %2298 = vmatmul.mubr.f32.gmra.mrb[0].mxu0 %v2098
  %v2299 = vpop.f32.mrb[0].mxu0
  %v2300 = vadd.f32 %v2035, %v2299
  %v2301 = vpop.f32.mrb[0].mxu0
  %2302 = vmatprep.mubr.f32.mxu0 0.0
  %2303 = vmatmul.mubr.f32.gmra.mrb[0].mxu0 %v2101
  %v2304 = vpop.f32.mrb[0].mxu0
  %v2305 = vadd.f32 %v2035, %v2304
  %v2306 = vpop.f32.mrb[0].mxu0
  %2307 = vmatprep.mubr.f32.mxu0 0.0
  %2308 = vmatmul.mubr.f32.gmra.mrb[0].mxu0 %v2104
  %v2309 = vpop.f32.mrb[0].mxu0
  %v2310 = vadd.f32 %v2035, %v2309
  %v2311 = vpop.f32.mrb[0].mxu0
  %2312 = vmatprep.mubr.f32.mxu0 0.0
  %2313 = vmatmul.mubr.f32.gmra.mrb[0].mxu0 %v2107
  %v2314 = vpop.f32.mrb[0].mxu0
  %v2315 = vadd.f32 %v2035, %v2314
  %v2316 = vpop.f32.mrb[0].mxu0
  %2317 = vmatprep.mubr.f32.mxu0 0.0
  %2318 = vmatmul.mubr.f32.gmra.mrb[0].mxu0 %v2110
  %v2319 = vpop.f32.mrb[0].mxu0
  %v2320 = vadd.f32 %v2035, %v2319
  %v2321 = vpop.f32.mrb[0].mxu0
  %2322 = vmatprep.mubr.f32.mxu0 0.0
  %2323 = vmatmul.mubr.f32.gmra.mrb[0].mxu0 %v2113
  %v2324 = vpop.f32.mrb[0].mxu0
  %v2325 = vadd.f32 %v2035, %v2324
  %v2326 = vpop.f32.mrb[0].mxu0
  %2327 = vmatprep.mubr.f32.mxu0 0.0
  %2328 = vmatmul.mubr.f32.gmra.mrb[0].mxu0 %v2116
  %v2329 = vpop.f32.mrb[0].mxu0
  %v2330 = vadd.f32 %v2035, %v2329
  %v2331 = vpop.f32.mrb[0].mxu0
  %2332 = vmatprep.mubr.f32.mxu0 0.0
  %2333 = vmatmul.mubr.f32.gmra.mrb[0].mxu0 %v2119
  %v2334 = vpop.f32.mrb[0].mxu0
  %v2335 = vadd.f32 %v2035, %v2334
  %v2336 = vpop.f32.mrb[0].mxu0
  %2337 = vmatprep.mubr.f32.mxu0 0.0
  %2338 = vmatmul.mubr.f32.gmra.mrb[0].mxu0 %v2122
  %v2339 = vpop.f32.mrb[0].mxu0
  %v2340 = vadd.f32 %v2035, %v2339
  %v2341 = vpop.f32.mrb[0].mxu0
  %2342 = vmatprep.mubr.f32.mxu0 0.0
  %2343 = vmatmul.mubr.f32.gmra.mrb[0].mxu0 %v2125
  %v2344 = vpop.f32.mrb[0].mxu0
  %v2345 = vadd.f32 %v2035, %v2344
  %v2346 = vpop.f32.mrb[0].mxu0
  %2347 = vmatprep.mubr.f32.mxu0 0.0
  %2348 = vmatmul.mubr.f32.gmra.mrb[0].mxu0 %v2128
  %v2349 = vpop.f32.mrb[0].mxu0
  %v2350 = vadd.f32 %v2035, %v2349
  %v2351 = vpop.f32.mrb[0].mxu0
  %2352 = vmatprep.mubr.f32.mxu0 0.0
  %2353 = vmatmul.mubr.f32.gmra.mrb[0].mxu0 %v2131
  %v2354 = vpop.f32.mrb[0].mxu0
  %v2355 = vadd.f32 %v2035, %v2354
  %v2356 = vpop.f32.mrb[0].mxu0
  %2357 = vdwg.mxu0
  %v2358 = vadd.f32 %v2200, %v94
  %v2359 = vadd.f32 %v2205, %v95
  %v2360 = vadd.f32 %v2210, %v96
  %v2361 = vadd.f32 %v2215, %v97
  %v2362 = vadd.f32 %v2220, %v98
  %v2363 = vadd.f32 %v2225, %v99
  %v2364 = vadd.f32 %v2230, %v100
  %v2365 = vadd.f32 %v2235, %v101
  %v2366 = vadd.f32 %v2240, %v102
  %v2367 = vadd.f32 %v2245, %v103
  %v2368 = vadd.f32 %v2250, %v104
  %v2369 = vadd.f32 %v2255, %v105
  %v2370 = vadd.f32 %v2260, %v106
  %v2371 = vadd.f32 %v2265, %v107
  %v2372 = vadd.f32 %v2270, %v108
  %v2373 = vadd.f32 %v2275, %v109
  %v2374 = vadd.f32 %v2280, %v110
  %v2375 = vadd.f32 %v2285, %v111
  %v2376 = vadd.f32 %v2290, %v112
  %v2377 = vadd.f32 %v2295, %v113
  %v2378 = vadd.f32 %v2300, %v114
  %v2379 = vadd.f32 %v2305, %v115
  %v2380 = vadd.f32 %v2310, %v116
  %v2381 = vadd.f32 %v2315, %v117
  %v2382 = vadd.f32 %v2320, %v118
  %v2383 = vadd.f32 %v2325, %v119
  %v2384 = vadd.f32 %v2330, %v120
  %v2385 = vadd.f32 %v2335, %v121
  %v2386 = vadd.f32 %v2340, %v122
  %v2387 = vadd.f32 %v2345, %v123
  %v2388 = vadd.f32 %v2350, %v124
  %v2389 = vadd.f32 %v2355, %v125
  %2390 = vst.msk [vmem:[%s11] sm:$0xff] %vm134, %v2358
  %2391 = vst.msk [vmem:[%s11 + $0x8] sm:$0xff] %vm134, %v2359
  %2392 = vst.msk [vmem:[%s11 + $0x10] sm:$0xff] %vm134, %v2360
  %2393 = vst.msk [vmem:[%s11 + $0x18] sm:$0xff] %vm134, %v2361
  %2394 = vst.msk [vmem:[%s11 + $0x20] sm:$0xff] %vm134, %v2362
  %2395 = vst.msk [vmem:[%s11 + $0x28] sm:$0xff] %vm134, %v2363
  %2396 = vst.msk [vmem:[%s11 + $0x30] sm:$0xff] %vm134, %v2364
  %2397 = vst.msk [vmem:[%s11 + $0x38] sm:$0xff] %vm134, %v2365
  %2398 = vst.msk [vmem:[%s11 + $0x40] sm:$0xff] %vm134, %v2366
  %2399 = vst.msk [vmem:[%s11 + $0x48] sm:$0xff] %vm134, %v2367
  %2400 = vst.msk [vmem:[%s11 + $0x50] sm:$0xff] %vm134, %v2368
  %2401 = vst.msk [vmem:[%s11 + $0x58] sm:$0xff] %vm134, %v2369
  %2402 = vst.msk [vmem:[%s11 + $0x60] sm:$0xff] %vm134, %v2370
  %2403 = vst.msk [vmem:[%s11 + $0x68] sm:$0xff] %vm134, %v2371
  %2404 = vst.msk [vmem:[%s11 + $0x70] sm:$0xff] %vm134, %v2372
  %2405 = vst.msk [vmem:[%s11 + $0x78] sm:$0xff] %vm134, %v2373
  %2406 = vst.msk [vmem:[%s11 + $0x80] sm:$0xff] %vm134, %v2374
  %2407 = vst.msk [vmem:[%s11 + $0x88] sm:$0xff] %vm134, %v2375
  %2408 = vst.msk [vmem:[%s11 + $0x90] sm:$0xff] %vm134, %v2376
  %2409 = vst.msk [vmem:[%s11 + $0x98] sm:$0xff] %vm134, %v2377
  %2410 = vst.msk [vmem:[%s11 + $0xa0] sm:$0xff] %vm134, %v2378
  %2411 = vst.msk [vmem:[%s11 + $0xa8] sm:$0xff] %vm134, %v2379
  %2412 = vst.msk [vmem:[%s11 + $0xb0] sm:$0xff] %vm134, %v2380
  %2413 = vst.msk [vmem:[%s11 + $0xb8] sm:$0xff] %vm134, %v2381
  %2414 = vst.msk [vmem:[%s11 + $0xc0] sm:$0xff] %vm134, %v2382
  %2415 = vst.msk [vmem:[%s11 + $0xc8] sm:$0xff] %vm134, %v2383
  %2416 = vst.msk [vmem:[%s11 + $0xd0] sm:$0xff] %vm134, %v2384
  %2417 = vst.msk [vmem:[%s11 + $0xd8] sm:$0xff] %vm134, %v2385
  %2418 = vst.msk [vmem:[%s11 + $0xe0] sm:$0xff] %vm134, %v2386
  %2419 = vst.msk [vmem:[%s11 + $0xe8] sm:$0xff] %vm134, %v2387
  %2420 = vst.msk [vmem:[%s11 + $0xf0] sm:$0xff] %vm134, %v2388
  %2421 = vst.msk [vmem:[%s11 + $0xf8] sm:$0xff] %vm134, %v2389
  %s2422 = scalar_lea.vmem %s0, 256
  %v2423 = vld [vmem:[%s2422] sm:$0xff]
  %v2424 = vld [vmem:[%s2422 + $0x8] sm:$0xff]
  %v2425 = vld [vmem:[%s2422 + $0x10] sm:$0xff]
  %v2426 = vld [vmem:[%s2422 + $0x18] sm:$0xff]
  %v2427 = vld [vmem:[%s2422 + $0x20] sm:$0xff]
  %v2428 = vld [vmem:[%s2422 + $0x28] sm:$0xff]
  %v2429 = vld [vmem:[%s2422 + $0x30] sm:$0xff]
  %v2430 = vld [vmem:[%s2422 + $0x38] sm:$0xff]
  %v2431 = vld [vmem:[%s2422 + $0x40] sm:$0xff]
  %v2432 = vld [vmem:[%s2422 + $0x48] sm:$0xff]
  %v2433 = vld [vmem:[%s2422 + $0x50] sm:$0xff]
  %v2434 = vld [vmem:[%s2422 + $0x58] sm:$0xff]
  %v2435 = vld [vmem:[%s2422 + $0x60] sm:$0xff]
  %v2436 = vld [vmem:[%s2422 + $0x68] sm:$0xff]
  %v2437 = vld [vmem:[%s2422 + $0x70] sm:$0xff]
  %v2438 = vld [vmem:[%s2422 + $0x78] sm:$0xff]
  %v2439 = vld [vmem:[%s2422 + $0x80] sm:$0xff]
  %v2440 = vld [vmem:[%s2422 + $0x88] sm:$0xff]
  %v2441 = vld [vmem:[%s2422 + $0x90] sm:$0xff]
  %v2442 = vld [vmem:[%s2422 + $0x98] sm:$0xff]
  %v2443 = vld [vmem:[%s2422 + $0xa0] sm:$0xff]
  %v2444 = vld [vmem:[%s2422 + $0xa8] sm:$0xff]
  %v2445 = vld [vmem:[%s2422 + $0xb0] sm:$0xff]
  %v2446 = vld [vmem:[%s2422 + $0xb8] sm:$0xff]
  %v2447 = vld [vmem:[%s2422 + $0xc0] sm:$0xff]
  %v2448 = vld [vmem:[%s2422 + $0xc8] sm:$0xff]
  %v2449 = vld [vmem:[%s2422 + $0xd0] sm:$0xff]
  %v2450 = vld [vmem:[%s2422 + $0xd8] sm:$0xff]
  %v2451 = vld [vmem:[%s2422 + $0xe0] sm:$0xff]
  %v2452 = vld [vmem:[%s2422 + $0xe8] sm:$0xff]
  %v2453 = vld [vmem:[%s2422 + $0xf0] sm:$0xff]
  %v2454 = vld [vmem:[%s2422 + $0xf8] sm:$0xff]
  %v2455 = vld [vmem:[%s1] sm:$0xf]
  %v2456 = vld [vmem:[%s2] sm:$0x1]
  %v2458 = vlaneseq
  %v2459 = vshrl.u32 %v2458, 7
  %v2460 = vsub.s32 0, %v2459
  %v2461 = vrot.slane %v2456, %v2460
  %v2464 = vsel %vm134, %v2423, 0
  %v2467 = vsel %vm134, %v2424, 0
  %v2470 = vsel %vm134, %v2425, 0
  %v2473 = vsel %vm134, %v2426, 0
  %v2476 = vsel %vm134, %v2427, 0
  %v2479 = vsel %vm134, %v2428, 0
  %v2482 = vsel %vm134, %v2429, 0
  %v2485 = vsel %vm134, %v2430, 0
  %v2488 = vsel %vm134, %v2431, 0
  %v2491 = vsel %vm134, %v2432, 0
  %v2494 = vsel %vm134, %v2433, 0
  %v2497 = vsel %vm134, %v2434, 0
  %v2500 = vsel %vm134, %v2435, 0
  %v2503 = vsel %vm134, %v2436, 0
  %v2506 = vsel %vm134, %v2437, 0
  %v2509 = vsel %vm134, %v2438, 0
  %v2512 = vsel %vm134, %v2439, 0
  %v2515 = vsel %vm134, %v2440, 0
  %v2518 = vsel %vm134, %v2441, 0
  %v2521 = vsel %vm134, %v2442, 0
  %v2524 = vsel %vm134, %v2443, 0
  %v2527 = vsel %vm134, %v2444, 0
  %v2530 = vsel %vm134, %v2445, 0
  %v2533 = vsel %vm134, %v2446, 0
  %v2536 = vsel %vm134, %v2447, 0
  %v2539 = vsel %vm134, %v2448, 0
  %v2542 = vsel %vm134, %v2449, 0
  %v2545 = vsel %vm134, %v2450, 0
  %v2548 = vsel %vm134, %v2451, 0
  %v2551 = vsel %vm134, %v2452, 0
  %v2554 = vsel %vm134, %v2453, 0
  %v2557 = vsel %vm134, %v2454, 0
  %v2560 = vsel %vm231, %v2455, 0
  %2562 = vmatprep.subr.mxu0 0.0
  %2563 = vmatpush1.msra.mxu0 %v2560
  %2564 = vmatprep.subr.mxu0 0.0
  %2565 = vmatpush1.msra.mxu0 0.0
  %2566 = vmatprep.subr.mxu0 0.0
  %2567 = vmatpush1.msra.mxu0 0.0
  %2568 = vmatprep.subr.mxu0 0.0
  %2569 = vmatpush1.msra.mxu0 0.0
  %2570 = vmatprep.subr.mxu0 0.0
  %2571 = vmatpush1.msra.mxu0 0.0
  %2572 = vmatprep.subr.mxu0 0.0
  %2573 = vmatpush1.msra.mxu0 0.0
  %2574 = vmatprep.subr.mxu0 0.0
  %2575 = vmatpush1.msra.mxu0 0.0
  %2576 = vmatprep.subr.mxu0 0.0
  %2577 = vmatpush1.msra.mxu0 0.0
  %2578 = vmatprep.subr.mxu0 0.0
  %2579 = vmatpush1.msra.mxu0 0.0
  %2580 = vmatprep.subr.mxu0 0.0
  %2581 = vmatpush1.msra.mxu0 0.0
  %2582 = vmatprep.subr.mxu0 0.0
  %2583 = vmatpush1.msra.mxu0 0.0
  %2584 = vmatprep.subr.mxu0 0.0
  %2585 = vmatpush1.msra.mxu0 0.0
  %2586 = vmatprep.subr.mxu0 0.0
  %2587 = vmatpush1.msra.mxu0 0.0
  %2588 = vmatprep.subr.mxu0 0.0
  %2589 = vmatpush1.msra.mxu0 0.0
  %2590 = vmatprep.subr.mxu0 0.0
  %2591 = vmatpush1.msra.mxu0 0.0
  %2592 = vmatprep.subr.mxu0 0.0
  %2593 = vmatpush1.msra.mxu0 0.0
  %2594 = vmatprep.subr.mxu0 0.0
  %2595 = vmatpush1.msra.mxu0 0.0
  %2596 = vmatprep.subr.mxu0 0.0
  %2597 = vmatpush1.msra.mxu0 0.0
  %2598 = vmatprep.subr.mxu0 0.0
  %2599 = vmatpush1.msra.mxu0 0.0
  %2600 = vmatprep.subr.mxu0 0.0
  %2601 = vmatpush1.msra.mxu0 0.0
  %2602 = vmatprep.subr.mxu0 0.0
  %2603 = vmatpush1.msra.mxu0 0.0
  %2604 = vmatprep.subr.mxu0 0.0
  %2605 = vmatpush1.msra.mxu0 0.0
  %2606 = vmatprep.subr.mxu0 0.0
  %2607 = vmatpush1.msra.mxu0 0.0
  %2608 = vmatprep.subr.mxu0 0.0
  %2609 = vmatpush1.msra.mxu0 0.0
  %2610 = vmatprep.subr.mxu0 0.0
  %2611 = vmatpush1.msra.mxu0 0.0
  %2612 = vmatprep.subr.mxu0 0.0
  %2613 = vmatpush1.msra.mxu0 0.0
  %2614 = vmatprep.subr.mxu0 0.0
  %2615 = vmatpush1.msra.mxu0 0.0
  %2616 = vmatprep.subr.mxu0 0.0
  %2617 = vmatpush1.msra.mxu0 0.0
  %2618 = vmatprep.subr.mxu0 0.0
  %2619 = vmatpush1.msra.mxu0 0.0
  %2620 = vmatprep.subr.mxu0 0.0
  %2621 = vmatpush1.msra.mxu0 0.0
  %2622 = vmatprep.subr.mxu0 0.0
  %2623 = vmatpush1.msra.mxu0 0.0
  %2624 = vmatprep.subr.mxu0 0.0
  %2625 = vmatpush1.msra.mxu0 0.0
  %2626 = vmatprep.mubr.f32.mxu0 0.0
  %2627 = vmatmul.mubr.f32.gmra.mrb[0].mxu0 %v2464
  %v2628 = vpop.f32.mrb[0].mxu0
  %v2629 = vadd.f32 %v2461, %v2628
  %v2630 = vpop.f32.mrb[0].mxu0
  %2631 = vmatprep.mubr.f32.mxu0 0.0
  %2632 = vmatmul.mubr.f32.gmra.mrb[0].mxu0 %v2467
  %v2633 = vpop.f32.mrb[0].mxu0
  %v2634 = vadd.f32 %v2461, %v2633
  %v2635 = vpop.f32.mrb[0].mxu0
  %2636 = vmatprep.mubr.f32.mxu0 0.0
  %2637 = vmatmul.mubr.f32.gmra.mrb[0].mxu0 %v2470
  %v2638 = vpop.f32.mrb[0].mxu0
  %v2639 = vadd.f32 %v2461, %v2638
  %v2640 = vpop.f32.mrb[0].mxu0
  %2641 = vmatprep.mubr.f32.mxu0 0.0
  %2642 = vmatmul.mubr.f32.gmra.mrb[0].mxu0 %v2473
  %v2643 = vpop.f32.mrb[0].mxu0
  %v2644 = vadd.f32 %v2461, %v2643
  %v2645 = vpop.f32.mrb[0].mxu0
  %2646 = vmatprep.mubr.f32.mxu0 0.0
  %2647 = vmatmul.mubr.f32.gmra.mrb[0].mxu0 %v2476
  %v2648 = vpop.f32.mrb[0].mxu0
  %v2649 = vadd.f32 %v2461, %v2648
  %v2650 = vpop.f32.mrb[0].mxu0
  %2651 = vmatprep.mubr.f32.mxu0 0.0
  %2652 = vmatmul.mubr.f32.gmra.mrb[0].mxu0 %v2479
  %v2653 = vpop.f32.mrb[0].mxu0
  %v2654 = vadd.f32 %v2461, %v2653
  %v2655 = vpop.f32.mrb[0].mxu0
  %2656 = vmatprep.mubr.f32.mxu0 0.0
  %2657 = vmatmul.mubr.f32.gmra.mrb[0].mxu0 %v2482
  %v2658 = vpop.f32.mrb[0].mxu0
  %v2659 = vadd.f32 %v2461, %v2658
  %v2660 = vpop.f32.mrb[0].mxu0
  %2661 = vmatprep.mubr.f32.mxu0 0.0
  %2662 = vmatmul.mubr.f32.gmra.mrb[0].mxu0 %v2485
  %v2663 = vpop.f32.mrb[0].mxu0
  %v2664 = vadd.f32 %v2461, %v2663
  %v2665 = vpop.f32.mrb[0].mxu0
  %2666 = vmatprep.mubr.f32.mxu0 0.0
  %2667 = vmatmul.mubr.f32.gmra.mrb[0].mxu0 %v2488
  %v2668 = vpop.f32.mrb[0].mxu0
  %v2669 = vadd.f32 %v2461, %v2668
  %v2670 = vpop.f32.mrb[0].mxu0
  %2671 = vmatprep.mubr.f32.mxu0 0.0
  %2672 = vmatmul.mubr.f32.gmra.mrb[0].mxu0 %v2491
  %v2673 = vpop.f32.mrb[0].mxu0
  %v2674 = vadd.f32 %v2461, %v2673
  %v2675 = vpop.f32.mrb[0].mxu0
  %2676 = vmatprep.mubr.f32.mxu0 0.0
  %2677 = vmatmul.mubr.f32.gmra.mrb[0].mxu0 %v2494
  %v2678 = vpop.f32.mrb[0].mxu0
  %v2679 = vadd.f32 %v2461, %v2678
  %v2680 = vpop.f32.mrb[0].mxu0
  %2681 = vmatprep.mubr.f32.mxu0 0.0
  %2682 = vmatmul.mubr.f32.gmra.mrb[0].mxu0 %v2497
  %v2683 = vpop.f32.mrb[0].mxu0
  %v2684 = vadd.f32 %v2461, %v2683
  %v2685 = vpop.f32.mrb[0].mxu0
  %2686 = vmatprep.mubr.f32.mxu0 0.0
  %2687 = vmatmul.mubr.f32.gmra.mrb[0].mxu0 %v2500
  %v2688 = vpop.f32.mrb[0].mxu0
  %v2689 = vadd.f32 %v2461, %v2688
  %v2690 = vpop.f32.mrb[0].mxu0
  %2691 = vmatprep.mubr.f32.mxu0 0.0
  %2692 = vmatmul.mubr.f32.gmra.mrb[0].mxu0 %v2503
  %v2693 = vpop.f32.mrb[0].mxu0
  %v2694 = vadd.f32 %v2461, %v2693
  %v2695 = vpop.f32.mrb[0].mxu0
  %2696 = vmatprep.mubr.f32.mxu0 0.0
  %2697 = vmatmul.mubr.f32.gmra.mrb[0].mxu0 %v2506
  %v2698 = vpop.f32.mrb[0].mxu0
  %v2699 = vadd.f32 %v2461, %v2698
  %v2700 = vpop.f32.mrb[0].mxu0
  %2701 = vmatprep.mubr.f32.mxu0 0.0
  %2702 = vmatmul.mubr.f32.gmra.mrb[0].mxu0 %v2509
  %v2703 = vpop.f32.mrb[0].mxu0
  %v2704 = vadd.f32 %v2461, %v2703
  %v2705 = vpop.f32.mrb[0].mxu0
  %2706 = vmatprep.mubr.f32.mxu0 0.0
  %2707 = vmatmul.mubr.f32.gmra.mrb[0].mxu0 %v2512
  %v2708 = vpop.f32.mrb[0].mxu0
  %v2709 = vadd.f32 %v2461, %v2708
  %v2710 = vpop.f32.mrb[0].mxu0
  %2711 = vmatprep.mubr.f32.mxu0 0.0
  %2712 = vmatmul.mubr.f32.gmra.mrb[0].mxu0 %v2515
  %v2713 = vpop.f32.mrb[0].mxu0
  %v2714 = vadd.f32 %v2461, %v2713
  %v2715 = vpop.f32.mrb[0].mxu0
  %2716 = vmatprep.mubr.f32.mxu0 0.0
  %2717 = vmatmul.mubr.f32.gmra.mrb[0].mxu0 %v2518
  %v2718 = vpop.f32.mrb[0].mxu0
  %v2719 = vadd.f32 %v2461, %v2718
  %v2720 = vpop.f32.mrb[0].mxu0
  %2721 = vmatprep.mubr.f32.mxu0 0.0
  %2722 = vmatmul.mubr.f32.gmra.mrb[0].mxu0 %v2521
  %v2723 = vpop.f32.mrb[0].mxu0
  %v2724 = vadd.f32 %v2461, %v2723
  %v2725 = vpop.f32.mrb[0].mxu0
  %2726 = vmatprep.mubr.f32.mxu0 0.0
  %2727 = vmatmul.mubr.f32.gmra.mrb[0].mxu0 %v2524
  %v2728 = vpop.f32.mrb[0].mxu0
  %v2729 = vadd.f32 %v2461, %v2728
  %v2730 = vpop.f32.mrb[0].mxu0
  %2731 = vmatprep.mubr.f32.mxu0 0.0
  %2732 = vmatmul.mubr.f32.gmra.mrb[0].mxu0 %v2527
  %v2733 = vpop.f32.mrb[0].mxu0
  %v2734 = vadd.f32 %v2461, %v2733
  %v2735 = vpop.f32.mrb[0].mxu0
  %2736 = vmatprep.mubr.f32.mxu0 0.0
  %2737 = vmatmul.mubr.f32.gmra.mrb[0].mxu0 %v2530
  %v2738 = vpop.f32.mrb[0].mxu0
  %v2739 = vadd.f32 %v2461, %v2738
  %v2740 = vpop.f32.mrb[0].mxu0
  %2741 = vmatprep.mubr.f32.mxu0 0.0
  %2742 = vmatmul.mubr.f32.gmra.mrb[0].mxu0 %v2533
  %v2743 = vpop.f32.mrb[0].mxu0
  %v2744 = vadd.f32 %v2461, %v2743
  %v2745 = vpop.f32.mrb[0].mxu0
  %2746 = vmatprep.mubr.f32.mxu0 0.0
  %2747 = vmatmul.mubr.f32.gmra.mrb[0].mxu0 %v2536
  %v2748 = vpop.f32.mrb[0].mxu0
  %v2749 = vadd.f32 %v2461, %v2748
  %v2750 = vpop.f32.mrb[0].mxu0
  %2751 = vmatprep.mubr.f32.mxu0 0.0
  %2752 = vmatmul.mubr.f32.gmra.mrb[0].mxu0 %v2539
  %v2753 = vpop.f32.mrb[0].mxu0
  %v2754 = vadd.f32 %v2461, %v2753
  %v2755 = vpop.f32.mrb[0].mxu0
  %2756 = vmatprep.mubr.f32.mxu0 0.0
  %2757 = vmatmul.mubr.f32.gmra.mrb[0].mxu0 %v2542
  %v2758 = vpop.f32.mrb[0].mxu0
  %v2759 = vadd.f32 %v2461, %v2758
  %v2760 = vpop.f32.mrb[0].mxu0
  %2761 = vmatprep.mubr.f32.mxu0 0.0
  %2762 = vmatmul.mubr.f32.gmra.mrb[0].mxu0 %v2545
  %v2763 = vpop.f32.mrb[0].mxu0
  %v2764 = vadd.f32 %v2461, %v2763
  %v2765 = vpop.f32.mrb[0].mxu0
  %2766 = vmatprep.mubr.f32.mxu0 0.0
  %2767 = vmatmul.mubr.f32.gmra.mrb[0].mxu0 %v2548
  %v2768 = vpop.f32.mrb[0].mxu0
  %v2769 = vadd.f32 %v2461, %v2768
  %v2770 = vpop.f32.mrb[0].mxu0
  %2771 = vmatprep.mubr.f32.mxu0 0.0
  %2772 = vmatmul.mubr.f32.gmra.mrb[0].mxu0 %v2551
  %v2773 = vpop.f32.mrb[0].mxu0
  %v2774 = vadd.f32 %v2461, %v2773
  %v2775 = vpop.f32.mrb[0].mxu0
  %2776 = vmatprep.mubr.f32.mxu0 0.0
  %2777 = vmatmul.mubr.f32.gmra.mrb[0].mxu0 %v2554
  %v2778 = vpop.f32.mrb[0].mxu0
  %v2779 = vadd.f32 %v2461, %v2778
  %v2780 = vpop.f32.mrb[0].mxu0
  %2781 = vmatprep.mubr.f32.mxu0 0.0
  %2782 = vmatmul.mubr.f32.gmra.mrb[0].mxu0 %v2557
  %v2783 = vpop.f32.mrb[0].mxu0
  %v2784 = vadd.f32 %v2461, %v2783
  %v2785 = vpop.f32.mrb[0].mxu0
  %2786 = vdwg.mxu0
  %v2787 = vadd.f32 %v2629, 3.0
  %v2788 = vadd.f32 %v2634, 3.0
  %v2789 = vadd.f32 %v2639, 3.0
  %v2790 = vadd.f32 %v2644, 3.0
  %v2791 = vadd.f32 %v2649, 3.0
  %v2792 = vadd.f32 %v2654, 3.0
  %v2793 = vadd.f32 %v2659, 3.0
  %v2794 = vadd.f32 %v2664, 3.0
  %v2795 = vadd.f32 %v2669, 3.0
  %v2796 = vadd.f32 %v2674, 3.0
  %v2797 = vadd.f32 %v2679, 3.0
  %v2798 = vadd.f32 %v2684, 3.0
  %v2799 = vadd.f32 %v2689, 3.0
  %v2800 = vadd.f32 %v2694, 3.0
  %v2801 = vadd.f32 %v2699, 3.0
  %v2802 = vadd.f32 %v2704, 3.0
  %v2803 = vadd.f32 %v2709, 3.0
  %v2804 = vadd.f32 %v2714, 3.0
  %v2805 = vadd.f32 %v2719, 3.0
  %v2806 = vadd.f32 %v2724, 3.0
  %v2807 = vadd.f32 %v2729, 3.0
  %v2808 = vadd.f32 %v2734, 3.0
  %v2809 = vadd.f32 %v2739, 3.0
  %v2810 = vadd.f32 %v2744, 3.0
  %v2811 = vadd.f32 %v2749, 3.0
  %v2812 = vadd.f32 %v2754, 3.0
  %v2813 = vadd.f32 %v2759, 3.0
  %v2814 = vadd.f32 %v2764, 3.0
  %v2815 = vadd.f32 %v2769, 3.0
  %v2816 = vadd.f32 %v2774, 3.0
  %v2817 = vadd.f32 %v2779, 3.0
  %v2818 = vadd.f32 %v2784, 3.0
  %v2819 = vmax.f32 %v2787, 0.0
  %v2820 = vmax.f32 %v2788, 0.0
  %v2821 = vmax.f32 %v2789, 0.0
  %v2822 = vmax.f32 %v2790, 0.0
  %v2823 = vmax.f32 %v2791, 0.0
  %v2824 = vmax.f32 %v2792, 0.0
  %v2825 = vmax.f32 %v2793, 0.0
  %v2826 = vmax.f32 %v2794, 0.0
  %v2827 = vmax.f32 %v2795, 0.0
  %v2828 = vmax.f32 %v2796, 0.0
  %v2829 = vmax.f32 %v2797, 0.0
  %v2830 = vmax.f32 %v2798, 0.0
  %v2831 = vmax.f32 %v2799, 0.0
  %v2832 = vmax.f32 %v2800, 0.0
  %v2833 = vmax.f32 %v2801, 0.0
  %v2834 = vmax.f32 %v2802, 0.0
  %v2835 = vmax.f32 %v2803, 0.0
  %v2836 = vmax.f32 %v2804, 0.0
  %v2837 = vmax.f32 %v2805, 0.0
  %v2838 = vmax.f32 %v2806, 0.0
  %v2839 = vmax.f32 %v2807, 0.0
  %v2840 = vmax.f32 %v2808, 0.0
  %v2841 = vmax.f32 %v2809, 0.0
  %v2842 = vmax.f32 %v2810, 0.0
  %v2843 = vmax.f32 %v2811, 0.0
  %v2844 = vmax.f32 %v2812, 0.0
  %v2845 = vmax.f32 %v2813, 0.0
  %v2846 = vmax.f32 %v2814, 0.0
  %v2847 = vmax.f32 %v2815, 0.0
  %v2848 = vmax.f32 %v2816, 0.0
  %v2849 = vmax.f32 %v2817, 0.0
  %v2850 = vmax.f32 %v2818, 0.0
  %v2851 = vmin.f32 %v2819, 6.0
  %v2852 = vmin.f32 %v2820, 6.0
  %v2853 = vmin.f32 %v2821, 6.0
  %v2854 = vmin.f32 %v2822, 6.0
  %v2855 = vmin.f32 %v2823, 6.0
  %v2856 = vmin.f32 %v2824, 6.0
  %v2857 = vmin.f32 %v2825, 6.0
  %v2858 = vmin.f32 %v2826, 6.0
  %v2859 = vmin.f32 %v2827, 6.0
  %v2860 = vmin.f32 %v2828, 6.0
  %v2861 = vmin.f32 %v2829, 6.0
  %v2862 = vmin.f32 %v2830, 6.0
  %v2863 = vmin.f32 %v2831, 6.0
  %v2864 = vmin.f32 %v2832, 6.0
  %v2865 = vmin.f32 %v2833, 6.0
  %v2866 = vmin.f32 %v2834, 6.0
  %v2867 = vmin.f32 %v2835, 6.0
  %v2868 = vmin.f32 %v2836, 6.0
  %v2869 = vmin.f32 %v2837, 6.0
  %v2870 = vmin.f32 %v2838, 6.0
  %v2871 = vmin.f32 %v2839, 6.0
  %v2872 = vmin.f32 %v2840, 6.0
  %v2873 = vmin.f32 %v2841, 6.0
  %v2874 = vmin.f32 %v2842, 6.0
  %v2875 = vmin.f32 %v2843, 6.0
  %v2876 = vmin.f32 %v2844, 6.0
  %v2877 = vmin.f32 %v2845, 6.0
  %v2878 = vmin.f32 %v2846, 6.0
  %v2879 = vmin.f32 %v2847, 6.0
  %v2880 = vmin.f32 %v2848, 6.0
  %v2881 = vmin.f32 %v2849, 6.0
  %v2882 = vmin.f32 %v2850, 6.0
  %v2883 = vmul.f32 %v2851, 0.16666667
  %v2884 = vmul.f32 %v2852, 0.16666667
  %v2885 = vmul.f32 %v2853, 0.16666667
  %v2886 = vmul.f32 %v2854, 0.16666667
  %v2887 = vmul.f32 %v2855, 0.16666667
  %v2888 = vmul.f32 %v2856, 0.16666667
  %v2889 = vmul.f32 %v2857, 0.16666667
  %v2890 = vmul.f32 %v2858, 0.16666667
  %v2891 = vmul.f32 %v2859, 0.16666667
  %v2892 = vmul.f32 %v2860, 0.16666667
  %v2893 = vmul.f32 %v2861, 0.16666667
  %v2894 = vmul.f32 %v2862, 0.16666667
  %v2895 = vmul.f32 %v2863, 0.16666667
  %v2896 = vmul.f32 %v2864, 0.16666667
  %v2897 = vmul.f32 %v2865, 0.16666667
  %v2898 = vmul.f32 %v2866, 0.16666667
  %v2899 = vmul.f32 %v2867, 0.16666667
  %v2900 = vmul.f32 %v2868, 0.16666667
  %v2901 = vmul.f32 %v2869, 0.16666667
  %v2902 = vmul.f32 %v2870, 0.16666667
  %v2903 = vmul.f32 %v2871, 0.16666667
  %v2904 = vmul.f32 %v2872, 0.16666667
  %v2905 = vmul.f32 %v2873, 0.16666667
  %v2906 = vmul.f32 %v2874, 0.16666667
  %v2907 = vmul.f32 %v2875, 0.16666667
  %v2908 = vmul.f32 %v2876, 0.16666667
  %v2909 = vmul.f32 %v2877, 0.16666667
  %v2910 = vmul.f32 %v2878, 0.16666667
  %v2911 = vmul.f32 %v2879, 0.16666667
  %v2912 = vmul.f32 %v2880, 0.16666667
  %v2913 = vmul.f32 %v2881, 0.16666667
  %v2914 = vmul.f32 %v2882, 0.16666667
  %v2915 = vmul.f32 %v2629, %v2883
  %v2916 = vmul.f32 %v2634, %v2884
  %v2917 = vmul.f32 %v2639, %v2885
  %v2918 = vmul.f32 %v2644, %v2886
  %v2919 = vmul.f32 %v2649, %v2887
  %v2920 = vmul.f32 %v2654, %v2888
  %v2921 = vmul.f32 %v2659, %v2889
  %v2922 = vmul.f32 %v2664, %v2890
  %v2923 = vmul.f32 %v2669, %v2891
  %v2924 = vmul.f32 %v2674, %v2892
  %v2925 = vmul.f32 %v2679, %v2893
  %v2926 = vmul.f32 %v2684, %v2894
  %v2927 = vmul.f32 %v2689, %v2895
  %v2928 = vmul.f32 %v2694, %v2896
  %v2929 = vmul.f32 %v2699, %v2897
  %v2930 = vmul.f32 %v2704, %v2898
  %v2931 = vmul.f32 %v2709, %v2899
  %v2932 = vmul.f32 %v2714, %v2900
  %v2933 = vmul.f32 %v2719, %v2901
  %v2934 = vmul.f32 %v2724, %v2902
  %v2935 = vmul.f32 %v2729, %v2903
  %v2936 = vmul.f32 %v2734, %v2904
  %v2937 = vmul.f32 %v2739, %v2905
  %v2938 = vmul.f32 %v2744, %v2906
  %v2939 = vmul.f32 %v2749, %v2907
  %v2940 = vmul.f32 %v2754, %v2908
  %v2941 = vmul.f32 %v2759, %v2909
  %v2942 = vmul.f32 %v2764, %v2910
  %v2943 = vmul.f32 %v2769, %v2911
  %v2944 = vmul.f32 %v2774, %v2912
  %v2945 = vmul.f32 %v2779, %v2913
  %v2946 = vmul.f32 %v2784, %v2914
  %2947 = vst.msk [vmem:[%s620 + $0x1] sm:$0xff] %vm38, %v2915
  %2948 = vst.msk [vmem:[%s620 + $0x9] sm:$0xff] %vm38, %v2916
  %2949 = vst.msk [vmem:[%s620 + $0x19] sm:$0xff] %vm38, %v2917
  %2950 = vst.msk [vmem:[%s620 + $0x21] sm:$0xff] %vm38, %v2918
  %2951 = vst.msk [vmem:[%s620 + $0x31] sm:$0xff] %vm38, %v2919
  %2952 = vst.msk [vmem:[%s620 + $0x39] sm:$0xff] %vm38, %v2920
  %2953 = vst.msk [vmem:[%s620 + $0x49] sm:$0xff] %vm38, %v2921
  %2954 = vst.msk [vmem:[%s620 + $0x51] sm:$0xff] %vm38, %v2922
  %2955 = vst.msk [vmem:[%s620 + $0x61] sm:$0xff] %vm38, %v2923
  %2956 = vst.msk [vmem:[%s620 + $0x69] sm:$0xff] %vm38, %v2924
  %2957 = vst.msk [vmem:[%s620 + $0x79] sm:$0xff] %vm38, %v2925
  %2958 = vst.msk [vmem:[%s620 + $0x81] sm:$0xff] %vm38, %v2926
  %2959 = vst.msk [vmem:[%s620 + $0x91] sm:$0xff] %vm38, %v2927
  %2960 = vst.msk [vmem:[%s620 + $0x99] sm:$0xff] %vm38, %v2928
  %2961 = vst.msk [vmem:[%s620 + $0xa9] sm:$0xff] %vm38, %v2929
  %2962 = vst.msk [vmem:[%s620 + $0xb1] sm:$0xff] %vm38, %v2930
  %2963 = vst.msk [vmem:[%s620 + $0xc1] sm:$0xff] %vm38, %v2931
  %2964 = vst.msk [vmem:[%s620 + $0xc9] sm:$0xff] %vm38, %v2932
  %2965 = vst.msk [vmem:[%s620 + $0xd9] sm:$0xff] %vm38, %v2933
  %2966 = vst.msk [vmem:[%s620 + $0xe1] sm:$0xff] %vm38, %v2934
  %2967 = vst.msk [vmem:[%s620 + $0xf1] sm:$0xff] %vm38, %v2935
  %2968 = vst.msk [vmem:[%s620 + $0xf9] sm:$0xff] %vm38, %v2936
  %2969 = vst.msk [vmem:[%s620 + $0x109] sm:$0xff] %vm38, %v2937
  %2970 = vst.msk [vmem:[%s620 + $0x111] sm:$0xff] %vm38, %v2938
  %2971 = vst.msk [vmem:[%s620 + $0x121] sm:$0xff] %vm38, %v2939
  %2972 = vst.msk [vmem:[%s620 + $0x129] sm:$0xff] %vm38, %v2940
  %2973 = vst.msk [vmem:[%s620 + $0x139] sm:$0xff] %vm38, %v2941
  %2974 = vst.msk [vmem:[%s620 + $0x141] sm:$0xff] %vm38, %v2942
  %2975 = vst.msk [vmem:[%s620 + $0x151] sm:$0xff] %vm38, %v2943
  %2976 = vst.msk [vmem:[%s620 + $0x159] sm:$0xff] %vm38, %v2944
  %2977 = vst.msk [vmem:[%s620 + $0x169] sm:$0xff] %vm38, %v2945
  %2978 = vst.msk [vmem:[%s620 + $0x171] sm:$0xff] %vm38, %v2946
  %v2979 = vld [vmem:[#allocation2] sm:$0xff]
  %v2980 = vld [vmem:[#allocation2 + $0x8] sm:$0xff]
  %v2981 = vld [vmem:[#allocation2 + $0x18] sm:$0xff]
  %v2982 = vld [vmem:[#allocation2 + $0x20] sm:$0xff]
  %v2983 = vld [vmem:[#allocation2 + $0x30] sm:$0xff]
  %v2984 = vld [vmem:[#allocation2 + $0x38] sm:$0xff]
  %v2985 = vld [vmem:[#allocation2 + $0x48] sm:$0xff]
  %v2986 = vld [vmem:[#allocation2 + $0x50] sm:$0xff]
  %v2987 = vld [vmem:[#allocation2 + $0x60] sm:$0xff]
  %v2988 = vld [vmem:[#allocation2 + $0x68] sm:$0xff]
  %v2989 = vld [vmem:[#allocation2 + $0x78] sm:$0xff]
  %v2990 = vld [vmem:[#allocation2 + $0x80] sm:$0xff]
  %v2991 = vld [vmem:[#allocation2 + $0x90] sm:$0xff]
  %v2992 = vld [vmem:[#allocation2 + $0x98] sm:$0xff]
  %v2993 = vld [vmem:[#allocation2 + $0xa8] sm:$0xff]
  %v2994 = vld [vmem:[#allocation2 + $0xb0] sm:$0xff]
  %v2995 = vld [vmem:[#allocation2 + $0xc0] sm:$0xff]
  %v2996 = vld [vmem:[#allocation2 + $0xc8] sm:$0xff]
  %v2997 = vld [vmem:[#allocation2 + $0xd8] sm:$0xff]
  %v2998 = vld [vmem:[#allocation2 + $0xe0] sm:$0xff]
  %v2999 = vld [vmem:[#allocation2 + $0xf0] sm:$0xff]
  %v3000 = vld [vmem:[#allocation2 + $0xf8] sm:$0xff]
  %v3001 = vld [vmem:[#allocation2 + $0x108] sm:$0xff]
  %v3002 = vld [vmem:[#allocation2 + $0x110] sm:$0xff]
  %v3003 = vld [vmem:[#allocation2 + $0x120] sm:$0xff]
  %v3004 = vld [vmem:[#allocation2 + $0x128] sm:$0xff]
  %v3005 = vld [vmem:[#allocation2 + $0x138] sm:$0xff]
  %v3006 = vld [vmem:[#allocation2 + $0x140] sm:$0xff]
  %v3007 = vld [vmem:[#allocation2 + $0x150] sm:$0xff]
  %v3008 = vld [vmem:[#allocation2 + $0x158] sm:$0xff]
  %v3009 = vld [vmem:[#allocation2 + $0x168] sm:$0xff]
  %v3010 = vld [vmem:[#allocation2 + $0x170] sm:$0xff]
  %v3011 = vld [vmem:[%s3] sm:$0x1]
  %v3012 = vlaneseq
  %v3013 = vshrl.u32 %v3012, 7
  %v3014 = vsub.s32 0, %v3013
  %v3015 = vrot.slane %v3011, %v3014
  %v3016 = vmul.f32 %v2979, %v3015
  %v3017 = vmul.f32 %v2980, %v3015
  %v3018 = vmul.f32 %v2981, %v3015
  %v3019 = vmul.f32 %v2982, %v3015
  %v3020 = vmul.f32 %v2983, %v3015
  %v3021 = vmul.f32 %v2984, %v3015
  %v3022 = vmul.f32 %v2985, %v3015
  %v3023 = vmul.f32 %v2986, %v3015
  %v3024 = vmul.f32 %v2987, %v3015
  %v3025 = vmul.f32 %v2988, %v3015
  %v3026 = vmul.f32 %v2989, %v3015
  %v3027 = vmul.f32 %v2990, %v3015
  %v3028 = vmul.f32 %v2991, %v3015
  %v3029 = vmul.f32 %v2992, %v3015
  %v3030 = vmul.f32 %v2993, %v3015
  %v3031 = vmul.f32 %v2994, %v3015
  %v3032 = vmul.f32 %v2995, %v3015
  %v3033 = vmul.f32 %v2996, %v3015
  %v3034 = vmul.f32 %v2997, %v3015
  %v3035 = vmul.f32 %v2998, %v3015
  %v3036 = vmul.f32 %v2999, %v3015
  %v3037 = vmul.f32 %v3000, %v3015
  %v3038 = vmul.f32 %v3001, %v3015
  %v3039 = vmul.f32 %v3002, %v3015
  %v3040 = vmul.f32 %v3003, %v3015
  %v3041 = vmul.f32 %v3004, %v3015
  %v3042 = vmul.f32 %v3005, %v3015
  %v3043 = vmul.f32 %v3006, %v3015
  %v3044 = vmul.f32 %v3007, %v3015
  %v3045 = vmul.f32 %v3008, %v3015
  %v3046 = vmul.f32 %v3009, %v3015
  %v3047 = vmul.f32 %v3010, %v3015
  %v3048 = vadd.f32 %v3016, 0.0
  %v3049 = vadd.f32 %v3017, 0.0
  %v3050 = vadd.f32 %v3018, 0.0
  %v3051 = vadd.f32 %v3019, 0.0
  %v3052 = vadd.f32 %v3020, 0.0
  %v3053 = vadd.f32 %v3021, 0.0
  %v3054 = vadd.f32 %v3022, 0.0
  %v3055 = vadd.f32 %v3023, 0.0
  %v3056 = vadd.f32 %v3024, 0.0
  %v3057 = vadd.f32 %v3025, 0.0
  %v3058 = vadd.f32 %v3026, 0.0
  %v3059 = vadd.f32 %v3027, 0.0
  %v3060 = vadd.f32 %v3028, 0.0
  %v3061 = vadd.f32 %v3029, 0.0
  %v3062 = vadd.f32 %v3030, 0.0
  %v3063 = vadd.f32 %v3031, 0.0
  %v3064 = vadd.f32 %v3032, 0.0
  %v3065 = vadd.f32 %v3033, 0.0
  %v3066 = vadd.f32 %v3034, 0.0
  %v3067 = vadd.f32 %v3035, 0.0
  %v3068 = vadd.f32 %v3036, 0.0
  %v3069 = vadd.f32 %v3037, 0.0
  %v3070 = vadd.f32 %v3038, 0.0
  %v3071 = vadd.f32 %v3039, 0.0
  %v3072 = vadd.f32 %v3040, 0.0
  %v3073 = vadd.f32 %v3041, 0.0
  %v3074 = vadd.f32 %v3042, 0.0
  %v3075 = vadd.f32 %v3043, 0.0
  %v3076 = vadd.f32 %v3044, 0.0
  %v3077 = vadd.f32 %v3045, 0.0
  %v3078 = vadd.f32 %v3046, 0.0
  %v3079 = vadd.f32 %v3047, 0.0
  %v3080 = vld [vmem:[#allocation2 + $0x1] sm:$0xff]
  %v3081 = vld [vmem:[#allocation2 + $0x9] sm:$0xff]
  %v3082 = vld [vmem:[#allocation2 + $0x19] sm:$0xff]
  %v3083 = vld [vmem:[#allocation2 + $0x21] sm:$0xff]
  %v3084 = vld [vmem:[#allocation2 + $0x31] sm:$0xff]
  %v3085 = vld [vmem:[#allocation2 + $0x39] sm:$0xff]
  %v3086 = vld [vmem:[#allocation2 + $0x49] sm:$0xff]
  %v3087 = vld [vmem:[#allocation2 + $0x51] sm:$0xff]
  %v3088 = vld [vmem:[#allocation2 + $0x61] sm:$0xff]
  %v3089 = vld [vmem:[#allocation2 + $0x69] sm:$0xff]
  %v3090 = vld [vmem:[#allocation2 + $0x79] sm:$0xff]
  %v3091 = vld [vmem:[#allocation2 + $0x81] sm:$0xff]
  %v3092 = vld [vmem:[#allocation2 + $0x91] sm:$0xff]
  %v3093 = vld [vmem:[#allocation2 + $0x99] sm:$0xff]
  %v3094 = vld [vmem:[#allocation2 + $0xa9] sm:$0xff]
  %v3095 = vld [vmem:[#allocation2 + $0xb1] sm:$0xff]
  %v3096 = vld [vmem:[#allocation2 + $0xc1] sm:$0xff]
  %v3097 = vld [vmem:[#allocation2 + $0xc9] sm:$0xff]
  %v3098 = vld [vmem:[#allocation2 + $0xd9] sm:$0xff]
  %v3099 = vld [vmem:[#allocation2 + $0xe1] sm:$0xff]
  %v3100 = vld [vmem:[#allocation2 + $0xf1] sm:$0xff]
  %v3101 = vld [vmem:[#allocation2 + $0xf9] sm:$0xff]
  %v3102 = vld [vmem:[#allocation2 + $0x109] sm:$0xff]
  %v3103 = vld [vmem:[#allocation2 + $0x111] sm:$0xff]
  %v3104 = vld [vmem:[#allocation2 + $0x121] sm:$0xff]
  %v3105 = vld [vmem:[#allocation2 + $0x129] sm:$0xff]
  %v3106 = vld [vmem:[#allocation2 + $0x139] sm:$0xff]
  %v3107 = vld [vmem:[#allocation2 + $0x141] sm:$0xff]
  %v3108 = vld [vmem:[#allocation2 + $0x151] sm:$0xff]
  %v3109 = vld [vmem:[#allocation2 + $0x159] sm:$0xff]
  %v3110 = vld [vmem:[#allocation2 + $0x169] sm:$0xff]
  %v3111 = vld [vmem:[#allocation2 + $0x171] sm:$0xff]
  %v3112 = vld [vmem:[%s3 + $0x1] sm:$0x1]
  %v3113 = vlaneseq
  %v3114 = vshrl.u32 %v3113, 7
  %v3115 = vsub.s32 0, %v3114
  %v3116 = vrot.slane %v3112, %v3115
  %v3117 = vmul.f32 %v3080, %v3116
  %v3118 = vmul.f32 %v3081, %v3116
  %v3119 = vmul.f32 %v3082, %v3116
  %v3120 = vmul.f32 %v3083, %v3116
  %v3121 = vmul.f32 %v3084, %v3116
  %v3122 = vmul.f32 %v3085, %v3116
  %v3123 = vmul.f32 %v3086, %v3116
  %v3124 = vmul.f32 %v3087, %v3116
  %v3125 = vmul.f32 %v3088, %v3116
  %v3126 = vmul.f32 %v3089, %v3116
  %v3127 = vmul.f32 %v3090, %v3116
  %v3128 = vmul.f32 %v3091, %v3116
  %v3129 = vmul.f32 %v3092, %v3116
  %v3130 = vmul.f32 %v3093, %v3116
  %v3131 = vmul.f32 %v3094, %v3116
  %v3132 = vmul.f32 %v3095, %v3116
  %v3133 = vmul.f32 %v3096, %v3116
  %v3134 = vmul.f32 %v3097, %v3116
  %v3135 = vmul.f32 %v3098, %v3116
  %v3136 = vmul.f32 %v3099, %v3116
  %v3137 = vmul.f32 %v3100, %v3116
  %v3138 = vmul.f32 %v3101, %v3116
  %v3139 = vmul.f32 %v3102, %v3116
  %v3140 = vmul.f32 %v3103, %v3116
  %v3141 = vmul.f32 %v3104, %v3116
  %v3142 = vmul.f32 %v3105, %v3116
  %v3143 = vmul.f32 %v3106, %v3116
  %v3144 = vmul.f32 %v3107, %v3116
  %v3145 = vmul.f32 %v3108, %v3116
  %v3146 = vmul.f32 %v3109, %v3116
  %v3147 = vmul.f32 %v3110, %v3116
  %v3148 = vmul.f32 %v3111, %v3116
  %v3149 = vadd.f32 %v3048, %v3117
  %v3150 = vadd.f32 %v3049, %v3118
  %v3151 = vadd.f32 %v3050, %v3119
  %v3152 = vadd.f32 %v3051, %v3120
  %v3153 = vadd.f32 %v3052, %v3121
  %v3154 = vadd.f32 %v3053, %v3122
  %v3155 = vadd.f32 %v3054, %v3123
  %v3156 = vadd.f32 %v3055, %v3124
  %v3157 = vadd.f32 %v3056, %v3125
  %v3158 = vadd.f32 %v3057, %v3126
  %v3159 = vadd.f32 %v3058, %v3127
  %v3160 = vadd.f32 %v3059, %v3128
  %v3161 = vadd.f32 %v3060, %v3129
  %v3162 = vadd.f32 %v3061, %v3130
  %v3163 = vadd.f32 %v3062, %v3131
  %v3164 = vadd.f32 %v3063, %v3132
  %v3165 = vadd.f32 %v3064, %v3133
  %v3166 = vadd.f32 %v3065, %v3134
  %v3167 = vadd.f32 %v3066, %v3135
  %v3168 = vadd.f32 %v3067, %v3136
  %v3169 = vadd.f32 %v3068, %v3137
  %v3170 = vadd.f32 %v3069, %v3138
  %v3171 = vadd.f32 %v3070, %v3139
  %v3172 = vadd.f32 %v3071, %v3140
  %v3173 = vadd.f32 %v3072, %v3141
  %v3174 = vadd.f32 %v3073, %v3142
  %v3175 = vadd.f32 %v3074, %v3143
  %v3176 = vadd.f32 %v3075, %v3144
  %v3177 = vadd.f32 %v3076, %v3145
  %v3178 = vadd.f32 %v3077, %v3146
  %v3179 = vadd.f32 %v3078, %v3147
  %v3180 = vadd.f32 %v3079, %v3148
  %v3181 = vld [vmem:[#allocation2 + $0x2] sm:$0xff]
  %v3182 = vld [vmem:[#allocation2 + $0xa] sm:$0xff]
  %v3183 = vld [vmem:[#allocation2 + $0x1a] sm:$0xff]
  %v3184 = vld [vmem:[#allocation2 + $0x22] sm:$0xff]
  %v3185 = vld [vmem:[#allocation2 + $0x32] sm:$0xff]
  %v3186 = vld [vmem:[#allocation2 + $0x3a] sm:$0xff]
  %v3187 = vld [vmem:[#allocation2 + $0x4a] sm:$0xff]
  %v3188 = vld [vmem:[#allocation2 + $0x52] sm:$0xff]
  %v3189 = vld [vmem:[#allocation2 + $0x62] sm:$0xff]
  %v3190 = vld [vmem:[#allocation2 + $0x6a] sm:$0xff]
  %v3191 = vld [vmem:[#allocation2 + $0x7a] sm:$0xff]
  %v3192 = vld [vmem:[#allocation2 + $0x82] sm:$0xff]
  %v3193 = vld [vmem:[#allocation2 + $0x92] sm:$0xff]
  %v3194 = vld [vmem:[#allocation2 + $0x9a] sm:$0xff]
  %v3195 = vld [vmem:[#allocation2 + $0xaa] sm:$0xff]
  %v3196 = vld [vmem:[#allocation2 + $0xb2] sm:$0xff]
  %v3197 = vld [vmem:[#allocation2 + $0xc2] sm:$0xff]
  %v3198 = vld [vmem:[#allocation2 + $0xca] sm:$0xff]
  %v3199 = vld [vmem:[#allocation2 + $0xda] sm:$0xff]
  %v3200 = vld [vmem:[#allocation2 + $0xe2] sm:$0xff]
  %v3201 = vld [vmem:[#allocation2 + $0xf2] sm:$0xff]
  %v3202 = vld [vmem:[#allocation2 + $0xfa] sm:$0xff]
  %v3203 = vld [vmem:[#allocation2 + $0x10a] sm:$0xff]
  %v3204 = vld [vmem:[#allocation2 + $0x112] sm:$0xff]
  %v3205 = vld [vmem:[#allocation2 + $0x122] sm:$0xff]
  %v3206 = vld [vmem:[#allocation2 + $0x12a] sm:$0xff]
  %v3207 = vld [vmem:[#allocation2 + $0x13a] sm:$0xff]
  %v3208 = vld [vmem:[#allocation2 + $0x142] sm:$0xff]
  %v3209 = vld [vmem:[#allocation2 + $0x152] sm:$0xff]
  %v3210 = vld [vmem:[#allocation2 + $0x15a] sm:$0xff]
  %v3211 = vld [vmem:[#allocation2 + $0x16a] sm:$0xff]
  %v3212 = vld [vmem:[#allocation2 + $0x172] sm:$0xff]
  %v3213 = vld [vmem:[%s3 + $0x2] sm:$0x1]
  %v3214 = vlaneseq
  %v3215 = vshrl.u32 %v3214, 7
  %v3216 = vsub.s32 0, %v3215
  %v3217 = vrot.slane %v3213, %v3216
  %v3218 = vmul.f32 %v3181, %v3217
  %v3219 = vmul.f32 %v3182, %v3217
  %v3220 = vmul.f32 %v3183, %v3217
  %v3221 = vmul.f32 %v3184, %v3217
  %v3222 = vmul.f32 %v3185, %v3217
  %v3223 = vmul.f32 %v3186, %v3217
  %v3224 = vmul.f32 %v3187, %v3217
  %v3225 = vmul.f32 %v3188, %v3217
  %v3226 = vmul.f32 %v3189, %v3217
  %v3227 = vmul.f32 %v3190, %v3217
  %v3228 = vmul.f32 %v3191, %v3217
  %v3229 = vmul.f32 %v3192, %v3217
  %v3230 = vmul.f32 %v3193, %v3217
  %v3231 = vmul.f32 %v3194, %v3217
  %v3232 = vmul.f32 %v3195, %v3217
  %v3233 = vmul.f32 %v3196, %v3217
  %v3234 = vmul.f32 %v3197, %v3217
  %v3235 = vmul.f32 %v3198, %v3217
  %v3236 = vmul.f32 %v3199, %v3217
  %v3237 = vmul.f32 %v3200, %v3217
  %v3238 = vmul.f32 %v3201, %v3217
  %v3239 = vmul.f32 %v3202, %v3217
  %v3240 = vmul.f32 %v3203, %v3217
  %v3241 = vmul.f32 %v3204, %v3217
  %v3242 = vmul.f32 %v3205, %v3217
  %v3243 = vmul.f32 %v3206, %v3217
  %v3244 = vmul.f32 %v3207, %v3217
  %v3245 = vmul.f32 %v3208, %v3217
  %v3246 = vmul.f32 %v3209, %v3217
  %v3247 = vmul.f32 %v3210, %v3217
  %v3248 = vmul.f32 %v3211, %v3217
  %v3249 = vmul.f32 %v3212, %v3217
  %v3250 = vadd.f32 %v3149, %v3218
  %v3251 = vadd.f32 %v3150, %v3219
  %v3252 = vadd.f32 %v3151, %v3220
  %v3253 = vadd.f32 %v3152, %v3221
  %v3254 = vadd.f32 %v3153, %v3222
  %v3255 = vadd.f32 %v3154, %v3223
  %v3256 = vadd.f32 %v3155, %v3224
  %v3257 = vadd.f32 %v3156, %v3225
  %v3258 = vadd.f32 %v3157, %v3226
  %v3259 = vadd.f32 %v3158, %v3227
  %v3260 = vadd.f32 %v3159, %v3228
  %v3261 = vadd.f32 %v3160, %v3229
  %v3262 = vadd.f32 %v3161, %v3230
  %v3263 = vadd.f32 %v3162, %v3231
  %v3264 = vadd.f32 %v3163, %v3232
  %v3265 = vadd.f32 %v3164, %v3233
  %v3266 = vadd.f32 %v3165, %v3234
  %v3267 = vadd.f32 %v3166, %v3235
  %v3268 = vadd.f32 %v3167, %v3236
  %v3269 = vadd.f32 %v3168, %v3237
  %v3270 = vadd.f32 %v3169, %v3238
  %v3271 = vadd.f32 %v3170, %v3239
  %v3272 = vadd.f32 %v3171, %v3240
  %v3273 = vadd.f32 %v3172, %v3241
  %v3274 = vadd.f32 %v3173, %v3242
  %v3275 = vadd.f32 %v3174, %v3243
  %v3276 = vadd.f32 %v3175, %v3244
  %v3277 = vadd.f32 %v3176, %v3245
  %v3278 = vadd.f32 %v3177, %v3246
  %v3279 = vadd.f32 %v3178, %v3247
  %v3280 = vadd.f32 %v3179, %v3248
  %v3281 = vadd.f32 %v3180, %v3249
  %v3282 = vld [vmem:[%s620] sm:$0xff]
  %v3283 = vld [vmem:[%s620 + $0x8] sm:$0xff]
  %v3284 = vld [vmem:[%s620 + $0x18] sm:$0xff]
  %v3285 = vld [vmem:[%s620 + $0x20] sm:$0xff]
  %v3286 = vld [vmem:[%s620 + $0x30] sm:$0xff]
  %v3287 = vld [vmem:[%s620 + $0x38] sm:$0xff]
  %v3288 = vld [vmem:[%s620 + $0x48] sm:$0xff]
  %v3289 = vld [vmem:[%s620 + $0x50] sm:$0xff]
  %v3290 = vld [vmem:[%s620 + $0x60] sm:$0xff]
  %v3291 = vld [vmem:[%s620 + $0x68] sm:$0xff]
  %v3292 = vld [vmem:[%s620 + $0x78] sm:$0xff]
  %v3293 = vld [vmem:[%s620 + $0x80] sm:$0xff]
  %v3294 = vld [vmem:[%s620 + $0x90] sm:$0xff]
  %v3295 = vld [vmem:[%s620 + $0x98] sm:$0xff]
  %v3296 = vld [vmem:[%s620 + $0xa8] sm:$0xff]
  %v3297 = vld [vmem:[%s620 + $0xb0] sm:$0xff]
  %v3298 = vld [vmem:[%s620 + $0xc0] sm:$0xff]
  %v3299 = vld [vmem:[%s620 + $0xc8] sm:$0xff]
  %v3300 = vld [vmem:[%s620 + $0xd8] sm:$0xff]
  %v3301 = vld [vmem:[%s620 + $0xe0] sm:$0xff]
  %v3302 = vld [vmem:[%s620 + $0xf0] sm:$0xff]
  %v3303 = vld [vmem:[%s620 + $0xf8] sm:$0xff]
  %v3304 = vld [vmem:[%s620 + $0x108] sm:$0xff]
  %v3305 = vld [vmem:[%s620 + $0x110] sm:$0xff]
  %v3306 = vld [vmem:[%s620 + $0x120] sm:$0xff]
  %v3307 = vld [vmem:[%s620 + $0x128] sm:$0xff]
  %v3308 = vld [vmem:[%s620 + $0x138] sm:$0xff]
  %v3309 = vld [vmem:[%s620 + $0x140] sm:$0xff]
  %v3310 = vld [vmem:[%s620 + $0x150] sm:$0xff]
  %v3311 = vld [vmem:[%s620 + $0x158] sm:$0xff]
  %v3312 = vld [vmem:[%s620 + $0x168] sm:$0xff]
  %v3313 = vld [vmem:[%s620 + $0x170] sm:$0xff]
  %v3314 = vld [vmem:[%s3 + $0x3] sm:$0x1]
  %v3315 = vlaneseq
  %v3316 = vshrl.u32 %v3315, 7
  %v3317 = vsub.s32 0, %v3316
  %v3318 = vrot.slane %v3314, %v3317
  %v3319 = vmul.f32 %v3282, %v3318
  %v3320 = vmul.f32 %v3283, %v3318
  %v3321 = vmul.f32 %v3284, %v3318
  %v3322 = vmul.f32 %v3285, %v3318
  %v3323 = vmul.f32 %v3286, %v3318
  %v3324 = vmul.f32 %v3287, %v3318
  %v3325 = vmul.f32 %v3288, %v3318
  %v3326 = vmul.f32 %v3289, %v3318
  %v3327 = vmul.f32 %v3290, %v3318
  %v3328 = vmul.f32 %v3291, %v3318
  %v3329 = vmul.f32 %v3292, %v3318
  %v3330 = vmul.f32 %v3293, %v3318
  %v3331 = vmul.f32 %v3294, %v3318
  %v3332 = vmul.f32 %v3295, %v3318
  %v3333 = vmul.f32 %v3296, %v3318
  %v3334 = vmul.f32 %v3297, %v3318
  %v3335 = vmul.f32 %v3298, %v3318
  %v3336 = vmul.f32 %v3299, %v3318
  %v3337 = vmul.f32 %v3300, %v3318
  %v3338 = vmul.f32 %v3301, %v3318
  %v3339 = vmul.f32 %v3302, %v3318
  %v3340 = vmul.f32 %v3303, %v3318
  %v3341 = vmul.f32 %v3304, %v3318
  %v3342 = vmul.f32 %v3305, %v3318
  %v3343 = vmul.f32 %v3306, %v3318
  %v3344 = vmul.f32 %v3307, %v3318
  %v3345 = vmul.f32 %v3308, %v3318
  %v3346 = vmul.f32 %v3309, %v3318
  %v3347 = vmul.f32 %v3310, %v3318
  %v3348 = vmul.f32 %v3311, %v3318
  %v3349 = vmul.f32 %v3312, %v3318
  %v3350 = vmul.f32 %v3313, %v3318
  %v3351 = vadd.f32 %v3250, %v3319
  %v3352 = vadd.f32 %v3251, %v3320
  %v3353 = vadd.f32 %v3252, %v3321
  %v3354 = vadd.f32 %v3253, %v3322
  %v3355 = vadd.f32 %v3254, %v3323
  %v3356 = vadd.f32 %v3255, %v3324
  %v3357 = vadd.f32 %v3256, %v3325
  %v3358 = vadd.f32 %v3257, %v3326
  %v3359 = vadd.f32 %v3258, %v3327
  %v3360 = vadd.f32 %v3259, %v3328
  %v3361 = vadd.f32 %v3260, %v3329
  %v3362 = vadd.f32 %v3261, %v3330
  %v3363 = vadd.f32 %v3262, %v3331
  %v3364 = vadd.f32 %v3263, %v3332
  %v3365 = vadd.f32 %v3264, %v3333
  %v3366 = vadd.f32 %v3265, %v3334
  %v3367 = vadd.f32 %v3266, %v3335
  %v3368 = vadd.f32 %v3267, %v3336
  %v3369 = vadd.f32 %v3268, %v3337
  %v3370 = vadd.f32 %v3269, %v3338
  %v3371 = vadd.f32 %v3270, %v3339
  %v3372 = vadd.f32 %v3271, %v3340
  %v3373 = vadd.f32 %v3272, %v3341
  %v3374 = vadd.f32 %v3273, %v3342
  %v3375 = vadd.f32 %v3274, %v3343
  %v3376 = vadd.f32 %v3275, %v3344
  %v3377 = vadd.f32 %v3276, %v3345
  %v3378 = vadd.f32 %v3277, %v3346
  %v3379 = vadd.f32 %v3278, %v3347
  %v3380 = vadd.f32 %v3279, %v3348
  %v3381 = vadd.f32 %v3280, %v3349
  %v3382 = vadd.f32 %v3281, %v3350
  %v3383 = vld [vmem:[%s620 + $0x1] sm:$0xff]
  %v3384 = vld [vmem:[%s620 + $0x9] sm:$0xff]
  %v3385 = vld [vmem:[%s620 + $0x19] sm:$0xff]
  %v3386 = vld [vmem:[%s620 + $0x21] sm:$0xff]
  %v3387 = vld [vmem:[%s620 + $0x31] sm:$0xff]
  %v3388 = vld [vmem:[%s620 + $0x39] sm:$0xff]
  %v3389 = vld [vmem:[%s620 + $0x49] sm:$0xff]
  %v3390 = vld [vmem:[%s620 + $0x51] sm:$0xff]
  %v3391 = vld [vmem:[%s620 + $0x61] sm:$0xff]
  %v3392 = vld [vmem:[%s620 + $0x69] sm:$0xff]
  %v3393 = vld [vmem:[%s620 + $0x79] sm:$0xff]
  %v3394 = vld [vmem:[%s620 + $0x81] sm:$0xff]
  %v3395 = vld [vmem:[%s620 + $0x91] sm:$0xff]
  %v3396 = vld [vmem:[%s620 + $0x99] sm:$0xff]
  %v3397 = vld [vmem:[%s620 + $0xa9] sm:$0xff]
  %v3398 = vld [vmem:[%s620 + $0xb1] sm:$0xff]
  %v3399 = vld [vmem:[%s620 + $0xc1] sm:$0xff]
  %v3400 = vld [vmem:[%s620 + $0xc9] sm:$0xff]
  %v3401 = vld [vmem:[%s620 + $0xd9] sm:$0xff]
  %v3402 = vld [vmem:[%s620 + $0xe1] sm:$0xff]
  %v3403 = vld [vmem:[%s620 + $0xf1] sm:$0xff]
  %v3404 = vld [vmem:[%s620 + $0xf9] sm:$0xff]
  %v3405 = vld [vmem:[%s620 + $0x109] sm:$0xff]
  %v3406 = vld [vmem:[%s620 + $0x111] sm:$0xff]
  %v3407 = vld [vmem:[%s620 + $0x121] sm:$0xff]
  %v3408 = vld [vmem:[%s620 + $0x129] sm:$0xff]
  %v3409 = vld [vmem:[%s620 + $0x139] sm:$0xff]
  %v3410 = vld [vmem:[%s620 + $0x141] sm:$0xff]
  %v3411 = vld [vmem:[%s620 + $0x151] sm:$0xff]
  %v3412 = vld [vmem:[%s620 + $0x159] sm:$0xff]
  %v3413 = vld [vmem:[%s620 + $0x169] sm:$0xff]
  %v3414 = vld [vmem:[%s620 + $0x171] sm:$0xff]
  %v3415 = vld [vmem:[%s3 + $0x4] sm:$0x1]
  %v3416 = vlaneseq
  %v3417 = vshrl.u32 %v3416, 7
  %v3418 = vsub.s32 0, %v3417
  %v3419 = vrot.slane %v3415, %v3418
  %v3420 = vmul.f32 %v3383, %v3419
  %v3421 = vmul.f32 %v3384, %v3419
  %v3422 = vmul.f32 %v3385, %v3419
  %v3423 = vmul.f32 %v3386, %v3419
  %v3424 = vmul.f32 %v3387, %v3419
  %v3425 = vmul.f32 %v3388, %v3419
  %v3426 = vmul.f32 %v3389, %v3419
  %v3427 = vmul.f32 %v3390, %v3419
  %v3428 = vmul.f32 %v3391, %v3419
  %v3429 = vmul.f32 %v3392, %v3419
  %v3430 = vmul.f32 %v3393, %v3419
  %v3431 = vmul.f32 %v3394, %v3419
  %v3432 = vmul.f32 %v3395, %v3419
  %v3433 = vmul.f32 %v3396, %v3419
  %v3434 = vmul.f32 %v3397, %v3419
  %v3435 = vmul.f32 %v3398, %v3419
  %v3436 = vmul.f32 %v3399, %v3419
  %v3437 = vmul.f32 %v3400, %v3419
  %v3438 = vmul.f32 %v3401, %v3419
  %v3439 = vmul.f32 %v3402, %v3419
  %v3440 = vmul.f32 %v3403, %v3419
  %v3441 = vmul.f32 %v3404, %v3419
  %v3442 = vmul.f32 %v3405, %v3419
  %v3443 = vmul.f32 %v3406, %v3419
  %v3444 = vmul.f32 %v3407, %v3419
  %v3445 = vmul.f32 %v3408, %v3419
  %v3446 = vmul.f32 %v3409, %v3419
  %v3447 = vmul.f32 %v3410, %v3419
  %v3448 = vmul.f32 %v3411, %v3419
  %v3449 = vmul.f32 %v3412, %v3419
  %v3450 = vmul.f32 %v3413, %v3419
  %v3451 = vmul.f32 %v3414, %v3419
  %v3452 = vadd.f32 %v3351, %v3420
  %v3453 = vadd.f32 %v3352, %v3421
  %v3454 = vadd.f32 %v3353, %v3422
  %v3455 = vadd.f32 %v3354, %v3423
  %v3456 = vadd.f32 %v3355, %v3424
  %v3457 = vadd.f32 %v3356, %v3425
  %v3458 = vadd.f32 %v3357, %v3426
  %v3459 = vadd.f32 %v3358, %v3427
  %v3460 = vadd.f32 %v3359, %v3428
  %v3461 = vadd.f32 %v3360, %v3429
  %v3462 = vadd.f32 %v3361, %v3430
  %v3463 = vadd.f32 %v3362, %v3431
  %v3464 = vadd.f32 %v3363, %v3432
  %v3465 = vadd.f32 %v3364, %v3433
  %v3466 = vadd.f32 %v3365, %v3434
  %v3467 = vadd.f32 %v3366, %v3435
  %v3468 = vadd.f32 %v3367, %v3436
  %v3469 = vadd.f32 %v3368, %v3437
  %v3470 = vadd.f32 %v3369, %v3438
  %v3471 = vadd.f32 %v3370, %v3439
  %v3472 = vadd.f32 %v3371, %v3440
  %v3473 = vadd.f32 %v3372, %v3441
  %v3474 = vadd.f32 %v3373, %v3442
  %v3475 = vadd.f32 %v3374, %v3443
  %v3476 = vadd.f32 %v3375, %v3444
  %v3477 = vadd.f32 %v3376, %v3445
  %v3478 = vadd.f32 %v3377, %v3446
  %v3479 = vadd.f32 %v3378, %v3447
  %v3480 = vadd.f32 %v3379, %v3448
  %v3481 = vadd.f32 %v3380, %v3449
  %v3482 = vadd.f32 %v3381, %v3450
  %v3483 = vadd.f32 %v3382, %v3451
  %v3484 = vld [vmem:[%s620 + $0x2] sm:$0xff]
  %v3485 = vld [vmem:[%s620 + $0xa] sm:$0xff]
  %v3486 = vld [vmem:[%s620 + $0x1a] sm:$0xff]
  %v3487 = vld [vmem:[%s620 + $0x22] sm:$0xff]
  %v3488 = vld [vmem:[%s620 + $0x32] sm:$0xff]
  %v3489 = vld [vmem:[%s620 + $0x3a] sm:$0xff]
  %v3490 = vld [vmem:[%s620 + $0x4a] sm:$0xff]
  %v3491 = vld [vmem:[%s620 + $0x52] sm:$0xff]
  %v3492 = vld [vmem:[%s620 + $0x62] sm:$0xff]
  %v3493 = vld [vmem:[%s620 + $0x6a] sm:$0xff]
  %v3494 = vld [vmem:[%s620 + $0x7a] sm:$0xff]
  %v3495 = vld [vmem:[%s620 + $0x82] sm:$0xff]
  %v3496 = vld [vmem:[%s620 + $0x92] sm:$0xff]
  %v3497 = vld [vmem:[%s620 + $0x9a] sm:$0xff]
  %v3498 = vld [vmem:[%s620 + $0xaa] sm:$0xff]
  %v3499 = vld [vmem:[%s620 + $0xb2] sm:$0xff]
  %v3500 = vld [vmem:[%s620 + $0xc2] sm:$0xff]
  %v3501 = vld [vmem:[%s620 + $0xca] sm:$0xff]
  %v3502 = vld [vmem:[%s620 + $0xda] sm:$0xff]
  %v3503 = vld [vmem:[%s620 + $0xe2] sm:$0xff]
  %v3504 = vld [vmem:[%s620 + $0xf2] sm:$0xff]
  %v3505 = vld [vmem:[%s620 + $0xfa] sm:$0xff]
  %v3506 = vld [vmem:[%s620 + $0x10a] sm:$0xff]
  %v3507 = vld [vmem:[%s620 + $0x112] sm:$0xff]
  %v3508 = vld [vmem:[%s620 + $0x122] sm:$0xff]
  %v3509 = vld [vmem:[%s620 + $0x12a] sm:$0xff]
  %v3510 = vld [vmem:[%s620 + $0x13a] sm:$0xff]
  %v3511 = vld [vmem:[%s620 + $0x142] sm:$0xff]
  %v3512 = vld [vmem:[%s620 + $0x152] sm:$0xff]
  %v3513 = vld [vmem:[%s620 + $0x15a] sm:$0xff]
  %v3514 = vld [vmem:[%s620 + $0x16a] sm:$0xff]
  %v3515 = vld [vmem:[%s620 + $0x172] sm:$0xff]
  %v3516 = vld [vmem:[%s3 + $0x5] sm:$0x1]
  %v3517 = vlaneseq
  %v3518 = vshrl.u32 %v3517, 7
  %v3519 = vsub.s32 0, %v3518
  %v3520 = vrot.slane %v3516, %v3519
  %v3521 = vmul.f32 %v3484, %v3520
  %v3522 = vmul.f32 %v3485, %v3520
  %v3523 = vmul.f32 %v3486, %v3520
  %v3524 = vmul.f32 %v3487, %v3520
  %v3525 = vmul.f32 %v3488, %v3520
  %v3526 = vmul.f32 %v3489, %v3520
  %v3527 = vmul.f32 %v3490, %v3520
  %v3528 = vmul.f32 %v3491, %v3520
  %v3529 = vmul.f32 %v3492, %v3520
  %v3530 = vmul.f32 %v3493, %v3520
  %v3531 = vmul.f32 %v3494, %v3520
  %v3532 = vmul.f32 %v3495, %v3520
  %v3533 = vmul.f32 %v3496, %v3520
  %v3534 = vmul.f32 %v3497, %v3520
  %v3535 = vmul.f32 %v3498, %v3520
  %v3536 = vmul.f32 %v3499, %v3520
  %v3537 = vmul.f32 %v3500, %v3520
  %v3538 = vmul.f32 %v3501, %v3520
  %v3539 = vmul.f32 %v3502, %v3520
  %v3540 = vmul.f32 %v3503, %v3520
  %v3541 = vmul.f32 %v3504, %v3520
  %v3542 = vmul.f32 %v3505, %v3520
  %v3543 = vmul.f32 %v3506, %v3520
  %v3544 = vmul.f32 %v3507, %v3520
  %v3545 = vmul.f32 %v3508, %v3520
  %v3546 = vmul.f32 %v3509, %v3520
  %v3547 = vmul.f32 %v3510, %v3520
  %v3548 = vmul.f32 %v3511, %v3520
  %v3549 = vmul.f32 %v3512, %v3520
  %v3550 = vmul.f32 %v3513, %v3520
  %v3551 = vmul.f32 %v3514, %v3520
  %v3552 = vmul.f32 %v3515, %v3520
  %v3553 = vadd.f32 %v3452, %v3521
  %v3554 = vadd.f32 %v3453, %v3522
  %v3555 = vadd.f32 %v3454, %v3523
  %v3556 = vadd.f32 %v3455, %v3524
  %v3557 = vadd.f32 %v3456, %v3525
  %v3558 = vadd.f32 %v3457, %v3526
  %v3559 = vadd.f32 %v3458, %v3527
  %v3560 = vadd.f32 %v3459, %v3528
  %v3561 = vadd.f32 %v3460, %v3529
  %v3562 = vadd.f32 %v3461, %v3530
  %v3563 = vadd.f32 %v3462, %v3531
  %v3564 = vadd.f32 %v3463, %v3532
  %v3565 = vadd.f32 %v3464, %v3533
  %v3566 = vadd.f32 %v3465, %v3534
  %v3567 = vadd.f32 %v3466, %v3535
  %v3568 = vadd.f32 %v3467, %v3536
  %v3569 = vadd.f32 %v3468, %v3537
  %v3570 = vadd.f32 %v3469, %v3538
  %v3571 = vadd.f32 %v3470, %v3539
  %v3572 = vadd.f32 %v3471, %v3540
  %v3573 = vadd.f32 %v3472, %v3541
  %v3574 = vadd.f32 %v3473, %v3542
  %v3575 = vadd.f32 %v3474, %v3543
  %v3576 = vadd.f32 %v3475, %v3544
  %v3577 = vadd.f32 %v3476, %v3545
  %v3578 = vadd.f32 %v3477, %v3546
  %v3579 = vadd.f32 %v3478, %v3547
  %v3580 = vadd.f32 %v3479, %v3548
  %v3581 = vadd.f32 %v3480, %v3549
  %v3582 = vadd.f32 %v3481, %v3550
  %v3583 = vadd.f32 %v3482, %v3551
  %v3584 = vadd.f32 %v3483, %v3552
  %v3585 = vld [vmem:[%s1259] sm:$0xff]
  %v3586 = vld [vmem:[%s1259 + $0x8] sm:$0xff]
  %v3587 = vld [vmem:[%s1259 + $0x18] sm:$0xff]
  %v3588 = vld [vmem:[%s1259 + $0x20] sm:$0xff]
  %v3589 = vld [vmem:[%s1259 + $0x30] sm:$0xff]
  %v3590 = vld [vmem:[%s1259 + $0x38] sm:$0xff]
  %v3591 = vld [vmem:[%s1259 + $0x48] sm:$0xff]
  %v3592 = vld [vmem:[%s1259 + $0x50] sm:$0xff]
  %v3593 = vld [vmem:[%s1259 + $0x60] sm:$0xff]
  %v3594 = vld [vmem:[%s1259 + $0x68] sm:$0xff]
  %v3595 = vld [vmem:[%s1259 + $0x78] sm:$0xff]
  %v3596 = vld [vmem:[%s1259 + $0x80] sm:$0xff]
  %v3597 = vld [vmem:[%s1259 + $0x90] sm:$0xff]
  %v3598 = vld [vmem:[%s1259 + $0x98] sm:$0xff]
  %v3599 = vld [vmem:[%s1259 + $0xa8] sm:$0xff]
  %v3600 = vld [vmem:[%s1259 + $0xb0] sm:$0xff]
  %v3601 = vld [vmem:[%s1259 + $0xc0] sm:$0xff]
  %v3602 = vld [vmem:[%s1259 + $0xc8] sm:$0xff]
  %v3603 = vld [vmem:[%s1259 + $0xd8] sm:$0xff]
  %v3604 = vld [vmem:[%s1259 + $0xe0] sm:$0xff]
  %v3605 = vld [vmem:[%s1259 + $0xf0] sm:$0xff]
  %v3606 = vld [vmem:[%s1259 + $0xf8] sm:$0xff]
  %v3607 = vld [vmem:[%s1259 + $0x108] sm:$0xff]
  %v3608 = vld [vmem:[%s1259 + $0x110] sm:$0xff]
  %v3609 = vld [vmem:[%s1259 + $0x120] sm:$0xff]
  %v3610 = vld [vmem:[%s1259 + $0x128] sm:$0xff]
  %v3611 = vld [vmem:[%s1259 + $0x138] sm:$0xff]
  %v3612 = vld [vmem:[%s1259 + $0x140] sm:$0xff]
  %v3613 = vld [vmem:[%s1259 + $0x150] sm:$0xff]
  %v3614 = vld [vmem:[%s1259 + $0x158] sm:$0xff]
  %v3615 = vld [vmem:[%s1259 + $0x168] sm:$0xff]
  %v3616 = vld [vmem:[%s1259 + $0x170] sm:$0xff]
  %v3617 = vld [vmem:[%s3 + $0x6] sm:$0x1]
  %v3618 = vlaneseq
  %v3619 = vshrl.u32 %v3618, 7
  %v3620 = vsub.s32 0, %v3619
  %v3621 = vrot.slane %v3617, %v3620
  %v3622 = vmul.f32 %v3585, %v3621
  %v3623 = vmul.f32 %v3586, %v3621
  %v3624 = vmul.f32 %v3587, %v3621
  %v3625 = vmul.f32 %v3588, %v3621
  %v3626 = vmul.f32 %v3589, %v3621
  %v3627 = vmul.f32 %v3590, %v3621
  %v3628 = vmul.f32 %v3591, %v3621
  %v3629 = vmul.f32 %v3592, %v3621
  %v3630 = vmul.f32 %v3593, %v3621
  %v3631 = vmul.f32 %v3594, %v3621
  %v3632 = vmul.f32 %v3595, %v3621
  %v3633 = vmul.f32 %v3596, %v3621
  %v3634 = vmul.f32 %v3597, %v3621
  %v3635 = vmul.f32 %v3598, %v3621
  %v3636 = vmul.f32 %v3599, %v3621
  %v3637 = vmul.f32 %v3600, %v3621
  %v3638 = vmul.f32 %v3601, %v3621
  %v3639 = vmul.f32 %v3602, %v3621
  %v3640 = vmul.f32 %v3603, %v3621
  %v3641 = vmul.f32 %v3604, %v3621
  %v3642 = vmul.f32 %v3605, %v3621
  %v3643 = vmul.f32 %v3606, %v3621
  %v3644 = vmul.f32 %v3607, %v3621
  %v3645 = vmul.f32 %v3608, %v3621
  %v3646 = vmul.f32 %v3609, %v3621
  %v3647 = vmul.f32 %v3610, %v3621
  %v3648 = vmul.f32 %v3611, %v3621
  %v3649 = vmul.f32 %v3612, %v3621
  %v3650 = vmul.f32 %v3613, %v3621
  %v3651 = vmul.f32 %v3614, %v3621
  %v3652 = vmul.f32 %v3615, %v3621
  %v3653 = vmul.f32 %v3616, %v3621
  %v3654 = vadd.f32 %v3553, %v3622
  %v3655 = vadd.f32 %v3554, %v3623
  %v3656 = vadd.f32 %v3555, %v3624
  %v3657 = vadd.f32 %v3556, %v3625
  %v3658 = vadd.f32 %v3557, %v3626
  %v3659 = vadd.f32 %v3558, %v3627
  %v3660 = vadd.f32 %v3559, %v3628
  %v3661 = vadd.f32 %v3560, %v3629
  %v3662 = vadd.f32 %v3561, %v3630
  %v3663 = vadd.f32 %v3562, %v3631
  %v3664 = vadd.f32 %v3563, %v3632
  %v3665 = vadd.f32 %v3564, %v3633
  %v3666 = vadd.f32 %v3565, %v3634
  %v3667 = vadd.f32 %v3566, %v3635
  %v3668 = vadd.f32 %v3567, %v3636
  %v3669 = vadd.f32 %v3568, %v3637
  %v3670 = vadd.f32 %v3569, %v3638
  %v3671 = vadd.f32 %v3570, %v3639
  %v3672 = vadd.f32 %v3571, %v3640
  %v3673 = vadd.f32 %v3572, %v3641
  %v3674 = vadd.f32 %v3573, %v3642
  %v3675 = vadd.f32 %v3574, %v3643
  %v3676 = vadd.f32 %v3575, %v3644
  %v3677 = vadd.f32 %v3576, %v3645
  %v3678 = vadd.f32 %v3577, %v3646
  %v3679 = vadd.f32 %v3578, %v3647
  %v3680 = vadd.f32 %v3579, %v3648
  %v3681 = vadd.f32 %v3580, %v3649
  %v3682 = vadd.f32 %v3581, %v3650
  %v3683 = vadd.f32 %v3582, %v3651
  %v3684 = vadd.f32 %v3583, %v3652
  %v3685 = vadd.f32 %v3584, %v3653
  %v3686 = vld [vmem:[%s1259 + $0x1] sm:$0xff]
  %v3687 = vld [vmem:[%s1259 + $0x9] sm:$0xff]
  %v3688 = vld [vmem:[%s1259 + $0x19] sm:$0xff]
  %v3689 = vld [vmem:[%s1259 + $0x21] sm:$0xff]
  %v3690 = vld [vmem:[%s1259 + $0x31] sm:$0xff]
  %v3691 = vld [vmem:[%s1259 + $0x39] sm:$0xff]
  %v3692 = vld [vmem:[%s1259 + $0x49] sm:$0xff]
  %v3693 = vld [vmem:[%s1259 + $0x51] sm:$0xff]
  %v3694 = vld [vmem:[%s1259 + $0x61] sm:$0xff]
  %v3695 = vld [vmem:[%s1259 + $0x69] sm:$0xff]
  %v3696 = vld [vmem:[%s1259 + $0x79] sm:$0xff]
  %v3697 = vld [vmem:[%s1259 + $0x81] sm:$0xff]
  %v3698 = vld [vmem:[%s1259 + $0x91] sm:$0xff]
  %v3699 = vld [vmem:[%s1259 + $0x99] sm:$0xff]
  %v3700 = vld [vmem:[%s1259 + $0xa9] sm:$0xff]
  %v3701 = vld [vmem:[%s1259 + $0xb1] sm:$0xff]
  %v3702 = vld [vmem:[%s1259 + $0xc1] sm:$0xff]
  %v3703 = vld [vmem:[%s1259 + $0xc9] sm:$0xff]
  %v3704 = vld [vmem:[%s1259 + $0xd9] sm:$0xff]
  %v3705 = vld [vmem:[%s1259 + $0xe1] sm:$0xff]
  %v3706 = vld [vmem:[%s1259 + $0xf1] sm:$0xff]
  %v3707 = vld [vmem:[%s1259 + $0xf9] sm:$0xff]
  %v3708 = vld [vmem:[%s1259 + $0x109] sm:$0xff]
  %v3709 = vld [vmem:[%s1259 + $0x111] sm:$0xff]
  %v3710 = vld [vmem:[%s1259 + $0x121] sm:$0xff]
  %v3711 = vld [vmem:[%s1259 + $0x129] sm:$0xff]
  %v3712 = vld [vmem:[%s1259 + $0x139] sm:$0xff]
  %v3713 = vld [vmem:[%s1259 + $0x141] sm:$0xff]
  %v3714 = vld [vmem:[%s1259 + $0x151] sm:$0xff]
  %v3715 = vld [vmem:[%s1259 + $0x159] sm:$0xff]
  %v3716 = vld [vmem:[%s1259 + $0x169] sm:$0xff]
  %v3717 = vld [vmem:[%s1259 + $0x171] sm:$0xff]
  %v3718 = vld [vmem:[%s3 + $0x7] sm:$0x1]
  %v3719 = vlaneseq
  %v3720 = vshrl.u32 %v3719, 7
  %v3721 = vsub.s32 0, %v3720
  %v3722 = vrot.slane %v3718, %v3721
  %v3723 = vmul.f32 %v3686, %v3722
  %v3724 = vmul.f32 %v3687, %v3722
  %v3725 = vmul.f32 %v3688, %v3722
  %v3726 = vmul.f32 %v3689, %v3722
  %v3727 = vmul.f32 %v3690, %v3722
  %v3728 = vmul.f32 %v3691, %v3722
  %v3729 = vmul.f32 %v3692, %v3722
  %v3730 = vmul.f32 %v3693, %v3722
  %v3731 = vmul.f32 %v3694, %v3722
  %v3732 = vmul.f32 %v3695, %v3722
  %v3733 = vmul.f32 %v3696, %v3722
  %v3734 = vmul.f32 %v3697, %v3722
  %v3735 = vmul.f32 %v3698, %v3722
  %v3736 = vmul.f32 %v3699, %v3722
  %v3737 = vmul.f32 %v3700, %v3722
  %v3738 = vmul.f32 %v3701, %v3722
  %v3739 = vmul.f32 %v3702, %v3722
  %v3740 = vmul.f32 %v3703, %v3722
  %v3741 = vmul.f32 %v3704, %v3722
  %v3742 = vmul.f32 %v3705, %v3722
  %v3743 = vmul.f32 %v3706, %v3722
  %v3744 = vmul.f32 %v3707, %v3722
  %v3745 = vmul.f32 %v3708, %v3722
  %v3746 = vmul.f32 %v3709, %v3722
  %v3747 = vmul.f32 %v3710, %v3722
  %v3748 = vmul.f32 %v3711, %v3722
  %v3749 = vmul.f32 %v3712, %v3722
  %v3750 = vmul.f32 %v3713, %v3722
  %v3751 = vmul.f32 %v3714, %v3722
  %v3752 = vmul.f32 %v3715, %v3722
  %v3753 = vmul.f32 %v3716, %v3722
  %v3754 = vmul.f32 %v3717, %v3722
  %v3755 = vadd.f32 %v3654, %v3723
  %v3756 = vadd.f32 %v3655, %v3724
  %v3757 = vadd.f32 %v3656, %v3725
  %v3758 = vadd.f32 %v3657, %v3726
  %v3759 = vadd.f32 %v3658, %v3727
  %v3760 = vadd.f32 %v3659, %v3728
  %v3761 = vadd.f32 %v3660, %v3729
  %v3762 = vadd.f32 %v3661, %v3730
  %v3763 = vadd.f32 %v3662, %v3731
  %v3764 = vadd.f32 %v3663, %v3732
  %v3765 = vadd.f32 %v3664, %v3733
  %v3766 = vadd.f32 %v3665, %v3734
  %v3767 = vadd.f32 %v3666, %v3735
  %v3768 = vadd.f32 %v3667, %v3736
  %v3769 = vadd.f32 %v3668, %v3737
  %v3770 = vadd.f32 %v3669, %v3738
  %v3771 = vadd.f32 %v3670, %v3739
  %v3772 = vadd.f32 %v3671, %v3740
  %v3773 = vadd.f32 %v3672, %v3741
  %v3774 = vadd.f32 %v3673, %v3742
  %v3775 = vadd.f32 %v3674, %v3743
  %v3776 = vadd.f32 %v3675, %v3744
  %v3777 = vadd.f32 %v3676, %v3745
  %v3778 = vadd.f32 %v3677, %v3746
  %v3779 = vadd.f32 %v3678, %v3747
  %v3780 = vadd.f32 %v3679, %v3748
  %v3781 = vadd.f32 %v3680, %v3749
  %v3782 = vadd.f32 %v3681, %v3750
  %v3783 = vadd.f32 %v3682, %v3751
  %v3784 = vadd.f32 %v3683, %v3752
  %v3785 = vadd.f32 %v3684, %v3753
  %v3786 = vadd.f32 %v3685, %v3754
  %v3787 = vld [vmem:[%s1259 + $0x2] sm:$0xff]
  %v3788 = vld [vmem:[%s1259 + $0xa] sm:$0xff]
  %v3789 = vld [vmem:[%s1259 + $0x1a] sm:$0xff]
  %v3790 = vld [vmem:[%s1259 + $0x22] sm:$0xff]
  %v3791 = vld [vmem:[%s1259 + $0x32] sm:$0xff]
  %v3792 = vld [vmem:[%s1259 + $0x3a] sm:$0xff]
  %v3793 = vld [vmem:[%s1259 + $0x4a] sm:$0xff]
  %v3794 = vld [vmem:[%s1259 + $0x52] sm:$0xff]
  %v3795 = vld [vmem:[%s1259 + $0x62] sm:$0xff]
  %v3796 = vld [vmem:[%s1259 + $0x6a] sm:$0xff]
  %v3797 = vld [vmem:[%s1259 + $0x7a] sm:$0xff]
  %v3798 = vld [vmem:[%s1259 + $0x82] sm:$0xff]
  %v3799 = vld [vmem:[%s1259 + $0x92] sm:$0xff]
  %v3800 = vld [vmem:[%s1259 + $0x9a] sm:$0xff]
  %v3801 = vld [vmem:[%s1259 + $0xaa] sm:$0xff]
  %v3802 = vld [vmem:[%s1259 + $0xb2] sm:$0xff]
  %v3803 = vld [vmem:[%s1259 + $0xc2] sm:$0xff]
  %v3804 = vld [vmem:[%s1259 + $0xca] sm:$0xff]
  %v3805 = vld [vmem:[%s1259 + $0xda] sm:$0xff]
  %v3806 = vld [vmem:[%s1259 + $0xe2] sm:$0xff]
  %v3807 = vld [vmem:[%s1259 + $0xf2] sm:$0xff]
  %v3808 = vld [vmem:[%s1259 + $0xfa] sm:$0xff]
  %v3809 = vld [vmem:[%s1259 + $0x10a] sm:$0xff]
  %v3810 = vld [vmem:[%s1259 + $0x112] sm:$0xff]
  %v3811 = vld [vmem:[%s1259 + $0x122] sm:$0xff]
  %v3812 = vld [vmem:[%s1259 + $0x12a] sm:$0xff]
  %v3813 = vld [vmem:[%s1259 + $0x13a] sm:$0xff]
  %v3814 = vld [vmem:[%s1259 + $0x142] sm:$0xff]
  %v3815 = vld [vmem:[%s1259 + $0x152] sm:$0xff]
  %v3816 = vld [vmem:[%s1259 + $0x15a] sm:$0xff]
  %v3817 = vld [vmem:[%s1259 + $0x16a] sm:$0xff]
  %v3818 = vld [vmem:[%s1259 + $0x172] sm:$0xff]
  %v3819 = vld [vmem:[%s3 + $0x8] sm:$0x1]
  %v3820 = vlaneseq
  %v3821 = vshrl.u32 %v3820, 7
  %v3822 = vsub.s32 0, %v3821
  %v3823 = vrot.slane %v3819, %v3822
  %v3824 = vmul.f32 %v3787, %v3823
  %v3825 = vmul.f32 %v3788, %v3823
  %v3826 = vmul.f32 %v3789, %v3823
  %v3827 = vmul.f32 %v3790, %v3823
  %v3828 = vmul.f32 %v3791, %v3823
  %v3829 = vmul.f32 %v3792, %v3823
  %v3830 = vmul.f32 %v3793, %v3823
  %v3831 = vmul.f32 %v3794, %v3823
  %v3832 = vmul.f32 %v3795, %v3823
  %v3833 = vmul.f32 %v3796, %v3823
  %v3834 = vmul.f32 %v3797, %v3823
  %v3835 = vmul.f32 %v3798, %v3823
  %v3836 = vmul.f32 %v3799, %v3823
  %v3837 = vmul.f32 %v3800, %v3823
  %v3838 = vmul.f32 %v3801, %v3823
  %v3839 = vmul.f32 %v3802, %v3823
  %v3840 = vmul.f32 %v3803, %v3823
  %v3841 = vmul.f32 %v3804, %v3823
  %v3842 = vmul.f32 %v3805, %v3823
  %v3843 = vmul.f32 %v3806, %v3823
  %v3844 = vmul.f32 %v3807, %v3823
  %v3845 = vmul.f32 %v3808, %v3823
  %v3846 = vmul.f32 %v3809, %v3823
  %v3847 = vmul.f32 %v3810, %v3823
  %v3848 = vmul.f32 %v3811, %v3823
  %v3849 = vmul.f32 %v3812, %v3823
  %v3850 = vmul.f32 %v3813, %v3823
  %v3851 = vmul.f32 %v3814, %v3823
  %v3852 = vmul.f32 %v3815, %v3823
  %v3853 = vmul.f32 %v3816, %v3823
  %v3854 = vmul.f32 %v3817, %v3823
  %v3855 = vmul.f32 %v3818, %v3823
  %v3856 = vadd.f32 %v3755, %v3824
  %v3857 = vadd.f32 %v3756, %v3825
  %v3858 = vadd.f32 %v3757, %v3826
  %v3859 = vadd.f32 %v3758, %v3827
  %v3860 = vadd.f32 %v3759, %v3828
  %v3861 = vadd.f32 %v3760, %v3829
  %v3862 = vadd.f32 %v3761, %v3830
  %v3863 = vadd.f32 %v3762, %v3831
  %v3864 = vadd.f32 %v3763, %v3832
  %v3865 = vadd.f32 %v3764, %v3833
  %v3866 = vadd.f32 %v3765, %v3834
  %v3867 = vadd.f32 %v3766, %v3835
  %v3868 = vadd.f32 %v3767, %v3836
  %v3869 = vadd.f32 %v3768, %v3837
  %v3870 = vadd.f32 %v3769, %v3838
  %v3871 = vadd.f32 %v3770, %v3839
  %v3872 = vadd.f32 %v3771, %v3840
  %v3873 = vadd.f32 %v3772, %v3841
  %v3874 = vadd.f32 %v3773, %v3842
  %v3875 = vadd.f32 %v3774, %v3843
  %v3876 = vadd.f32 %v3775, %v3844
  %v3877 = vadd.f32 %v3776, %v3845
  %v3878 = vadd.f32 %v3777, %v3846
  %v3879 = vadd.f32 %v3778, %v3847
  %v3880 = vadd.f32 %v3779, %v3848
  %v3881 = vadd.f32 %v3780, %v3849
  %v3882 = vadd.f32 %v3781, %v3850
  %v3883 = vadd.f32 %v3782, %v3851
  %v3884 = vadd.f32 %v3783, %v3852
  %v3885 = vadd.f32 %v3784, %v3853
  %v3886 = vadd.f32 %v3785, %v3854
  %v3887 = vadd.f32 %v3786, %v3855
  %v3888 = vld [vmem:[%s4] sm:$0x1]
  %v3890 = vlaneseq
  %v3891 = vshrl.u32 %v3890, 7
  %v3892 = vsub.s32 0, %v3891
  %v3893 = vrot.slane %v3888, %v3892
  %v3895 = vadd.f32 %v3856, %v3893
  %v3896 = vadd.f32 %v3857, %v3893
  %v3897 = vadd.f32 %v3858, %v3893
  %v3898 = vadd.f32 %v3859, %v3893
  %v3899 = vadd.f32 %v3860, %v3893
  %v3900 = vadd.f32 %v3861, %v3893
  %v3901 = vadd.f32 %v3862, %v3893
  %v3902 = vadd.f32 %v3863, %v3893
  %v3903 = vadd.f32 %v3864, %v3893
  %v3904 = vadd.f32 %v3865, %v3893
  %v3905 = vadd.f32 %v3866, %v3893
  %v3906 = vadd.f32 %v3867, %v3893
  %v3907 = vadd.f32 %v3868, %v3893
  %v3908 = vadd.f32 %v3869, %v3893
  %v3909 = vadd.f32 %v3870, %v3893
  %v3910 = vadd.f32 %v3871, %v3893
  %v3911 = vadd.f32 %v3872, %v3893
  %v3912 = vadd.f32 %v3873, %v3893
  %v3913 = vadd.f32 %v3874, %v3893
  %v3914 = vadd.f32 %v3875, %v3893
  %v3915 = vadd.f32 %v3876, %v3893
  %v3916 = vadd.f32 %v3877, %v3893
  %v3917 = vadd.f32 %v3878, %v3893
  %v3918 = vadd.f32 %v3879, %v3893
  %v3919 = vadd.f32 %v3880, %v3893
  %v3920 = vadd.f32 %v3881, %v3893
  %v3921 = vadd.f32 %v3882, %v3893
  %v3922 = vadd.f32 %v3883, %v3893
  %v3923 = vadd.f32 %v3884, %v3893
  %v3924 = vadd.f32 %v3885, %v3893
  %v3925 = vadd.f32 %v3886, %v3893
  %v3926 = vadd.f32 %v3887, %v3893
  %v3927 = vsel %vm38, %v3895, 0.0
  %v3928 = vsel %vm38, %v3896, 0.0
  %v3929 = vadd.f32 %v3927, %v3928
  %v3930 = vsel %vm38, %v3897, 0.0
  %v3931 = vadd.f32 %v3929, %v3930
  %v3932 = vsel %vm38, %v3898, 0.0
  %v3933 = vadd.f32 %v3931, %v3932
  %v3934 = vsel %vm38, %v3899, 0.0
  %v3935 = vadd.f32 %v3933, %v3934
  %v3936 = vsel %vm38, %v3900, 0.0
  %v3937 = vadd.f32 %v3935, %v3936
  %v3938 = vsel %vm38, %v3901, 0.0
  %v3939 = vadd.f32 %v3937, %v3938
  %v3940 = vsel %vm38, %v3902, 0.0
  %v3941 = vadd.f32 %v3939, %v3940
  %v3942 = vsel %vm38, %v3903, 0.0
  %v3943 = vadd.f32 %v3941, %v3942
  %v3944 = vsel %vm38, %v3904, 0.0
  %v3945 = vadd.f32 %v3943, %v3944
  %v3946 = vsel %vm38, %v3905, 0.0
  %v3947 = vadd.f32 %v3945, %v3946
  %v3948 = vsel %vm38, %v3906, 0.0
  %v3949 = vadd.f32 %v3947, %v3948
  %v3950 = vsel %vm38, %v3907, 0.0
  %v3951 = vadd.f32 %v3949, %v3950
  %v3952 = vsel %vm38, %v3908, 0.0
  %v3953 = vadd.f32 %v3951, %v3952
  %v3954 = vsel %vm38, %v3909, 0.0
  %v3955 = vadd.f32 %v3953, %v3954
  %v3956 = vsel %vm38, %v3910, 0.0
  %v3957 = vadd.f32 %v3955, %v3956
  %v3958 = vsel %vm38, %v3911, 0.0
  %v3959 = vadd.f32 %v3957, %v3958
  %v3960 = vsel %vm38, %v3912, 0.0
  %v3961 = vadd.f32 %v3959, %v3960
  %v3962 = vsel %vm38, %v3913, 0.0
  %v3963 = vadd.f32 %v3961, %v3962
  %v3964 = vsel %vm38, %v3914, 0.0
  %v3965 = vadd.f32 %v3963, %v3964
  %v3966 = vsel %vm38, %v3915, 0.0
  %v3967 = vadd.f32 %v3965, %v3966
  %v3968 = vsel %vm38, %v3916, 0.0
  %v3969 = vadd.f32 %v3967, %v3968
  %v3970 = vsel %vm38, %v3917, 0.0
  %v3971 = vadd.f32 %v3969, %v3970
  %v3972 = vsel %vm38, %v3918, 0.0
  %v3973 = vadd.f32 %v3971, %v3972
  %v3974 = vsel %vm38, %v3919, 0.0
  %v3975 = vadd.f32 %v3973, %v3974
  %v3976 = vsel %vm38, %v3920, 0.0
  %v3977 = vadd.f32 %v3975, %v3976
  %v3978 = vsel %vm38, %v3921, 0.0
  %v3979 = vadd.f32 %v3977, %v3978
  %v3980 = vsel %vm38, %v3922, 0.0
  %v3981 = vadd.f32 %v3979, %v3980
  %v3982 = vsel %vm38, %v3923, 0.0
  %v3983 = vadd.f32 %v3981, %v3982
  %v3984 = vsel %vm38, %v3924, 0.0
  %v3985 = vadd.f32 %v3983, %v3984
  %v3986 = vsel %vm38, %v3925, 0.0
  %v3987 = vadd.f32 %v3985, %v3986
  %v3988 = vsel %vm38, %v3926, 0.0
  %v3989 = vadd.f32 %v3987, %v3988
  %v3990 = vrot.slane %v3989, 4
  %v3991 = vadd.f32 %v3989, %v3990
  %v3992 = vrot.slane %v3991, 2
  %v3993 = vadd.f32 %v3991, %v3992
  %v3994 = vrot.slane %v3993, 1
  %v3995 = vadd.f32 %v3993, %v3994
  %v3996 = vmul.f32 %v3995, %v1671
  %v3997 = vld [vmem:[%s5] sm:$0xff]
  %v3998 = vld [vmem:[%s6] sm:$0x1]
  %v4000 = vsel %vm38, %v3996, 0
  %4002 = vmatprep.subr.mxu0 0.0
  %4003 = vmatpush1.msra.mxu0 %v3997
  %4004 = vmatprep.subr.mxu0 0.0
  %4005 = vmatpush1.msra.mxu0 0.0
  %4006 = vmatprep.subr.mxu0 0.0
  %4007 = vmatpush1.msra.mxu0 0.0
  %4008 = vmatprep.subr.mxu0 0.0
  %4009 = vmatpush1.msra.mxu0 0.0
  %4010 = vmatprep.subr.mxu0 0.0
  %4011 = vmatpush1.msra.mxu0 0.0
  %4012 = vmatprep.subr.mxu0 0.0
  %4013 = vmatpush1.msra.mxu0 0.0
  %4014 = vmatprep.subr.mxu0 0.0
  %4015 = vmatpush1.msra.mxu0 0.0
  %4016 = vmatprep.subr.mxu0 0.0
  %4017 = vmatpush1.msra.mxu0 0.0
  %4018 = vmatprep.subr.mxu0 0.0
  %4019 = vmatpush1.msra.mxu0 0.0
  %4020 = vmatprep.subr.mxu0 0.0
  %4021 = vmatpush1.msra.mxu0 0.0
  %4022 = vmatprep.subr.mxu0 0.0
  %4023 = vmatpush1.msra.mxu0 0.0
  %4024 = vmatprep.subr.mxu0 0.0
  %4025 = vmatpush1.msra.mxu0 0.0
  %4026 = vmatprep.subr.mxu0 0.0
  %4027 = vmatpush1.msra.mxu0 0.0
  %4028 = vmatprep.subr.mxu0 0.0
  %4029 = vmatpush1.msra.mxu0 0.0
  %4030 = vmatprep.subr.mxu0 0.0
  %4031 = vmatpush1.msra.mxu0 0.0
  %4032 = vmatprep.subr.mxu0 0.0
  %4033 = vmatpush1.msra.mxu0 0.0
  %4034 = vmatprep.subr.mxu0 0.0
  %4035 = vmatpush1.msra.mxu0 0.0
  %4036 = vmatprep.subr.mxu0 0.0
  %4037 = vmatpush1.msra.mxu0 0.0
  %4038 = vmatprep.subr.mxu0 0.0
  %4039 = vmatpush1.msra.mxu0 0.0
  %4040 = vmatprep.subr.mxu0 0.0
  %4041 = vmatpush1.msra.mxu0 0.0
  %4042 = vmatprep.subr.mxu0 0.0
  %4043 = vmatpush1.msra.mxu0 0.0
  %4044 = vmatprep.subr.mxu0 0.0
  %4045 = vmatpush1.msra.mxu0 0.0
  %4046 = vmatprep.subr.mxu0 0.0
  %4047 = vmatpush1.msra.mxu0 0.0
  %4048 = vmatprep.subr.mxu0 0.0
  %4049 = vmatpush1.msra.mxu0 0.0
  %4050 = vmatprep.subr.mxu0 0.0
  %4051 = vmatpush1.msra.mxu0 0.0
  %4052 = vmatprep.subr.mxu0 0.0
  %4053 = vmatpush1.msra.mxu0 0.0
  %4054 = vmatprep.subr.mxu0 0.0
  %4055 = vmatpush1.msra.mxu0 0.0
  %4056 = vmatprep.subr.mxu0 0.0
  %4057 = vmatpush1.msra.mxu0 0.0
  %4058 = vmatprep.subr.mxu0 0.0
  %4059 = vmatpush1.msra.mxu0 0.0
  %4060 = vmatprep.subr.mxu0 0.0
  %4061 = vmatpush1.msra.mxu0 0.0
  %4062 = vmatprep.subr.mxu0 0.0
  %4063 = vmatpush1.msra.mxu0 0.0
  %4064 = vmatprep.subr.mxu0 0.0
  %4065 = vmatpush1.msra.mxu0 0.0
  %4066 = vmatprep.mubr.f32.mxu0 0.0
  %4067 = vmatmul.mubr.f32.gmra.mrb[0].mxu0 %v4000
  %v4068 = vpop.f32.mrb[0].mxu0
  %v4069 = vadd.f32 %v3998, %v4068
  %v4070 = vpop.f32.mrb[0].mxu0
  %4071 = vdwg.mxu0
  %v4072 = vmax.f32 %v4069, 0.0
  %v4073 = vld [vmem:[%s7] sm:$0x3]
  %v4074 = vld [vmem:[%s8] sm:$0x1]
  %v4076 = vsel %vm1751, %v4072, 0
  %v4079 = vsel %vm1755, %v4073, 0
  %4081 = vmatprep.subr.mxu0 0.0
  %4082 = vmatpush1.msra.mxu0 %v4079
  %4083 = vmatprep.subr.mxu0 0.0
  %4084 = vmatpush1.msra.mxu0 0.0
  %4085 = vmatprep.subr.mxu0 0.0
  %4086 = vmatpush1.msra.mxu0 0.0
  %4087 = vmatprep.subr.mxu0 0.0
  %4088 = vmatpush1.msra.mxu0 0.0
  %4089 = vmatprep.subr.mxu0 0.0
  %4090 = vmatpush1.msra.mxu0 0.0
  %4091 = vmatprep.subr.mxu0 0.0
  %4092 = vmatpush1.msra.mxu0 0.0
  %4093 = vmatprep.subr.mxu0 0.0
  %4094 = vmatpush1.msra.mxu0 0.0
  %4095 = vmatprep.subr.mxu0 0.0
  %4096 = vmatpush1.msra.mxu0 0.0
  %4097 = vmatprep.subr.mxu0 0.0
  %4098 = vmatpush1.msra.mxu0 0.0
  %4099 = vmatprep.subr.mxu0 0.0
  %4100 = vmatpush1.msra.mxu0 0.0
  %4101 = vmatprep.subr.mxu0 0.0
  %4102 = vmatpush1.msra.mxu0 0.0
  %4103 = vmatprep.subr.mxu0 0.0
  %4104 = vmatpush1.msra.mxu0 0.0
  %4105 = vmatprep.subr.mxu0 0.0
  %4106 = vmatpush1.msra.mxu0 0.0
  %4107 = vmatprep.subr.mxu0 0.0
  %4108 = vmatpush1.msra.mxu0 0.0
  %4109 = vmatprep.subr.mxu0 0.0
  %4110 = vmatpush1.msra.mxu0 0.0
  %4111 = vmatprep.subr.mxu0 0.0
  %4112 = vmatpush1.msra.mxu0 0.0
  %4113 = vmatprep.subr.mxu0 0.0
  %4114 = vmatpush1.msra.mxu0 0.0
  %4115 = vmatprep.subr.mxu0 0.0
  %4116 = vmatpush1.msra.mxu0 0.0
  %4117 = vmatprep.subr.mxu0 0.0
  %4118 = vmatpush1.msra.mxu0 0.0
  %4119 = vmatprep.subr.mxu0 0.0
  %4120 = vmatpush1.msra.mxu0 0.0
  %4121 = vmatprep.subr.mxu0 0.0
  %4122 = vmatpush1.msra.mxu0 0.0
  %4123 = vmatprep.subr.mxu0 0.0
  %4124 = vmatpush1.msra.mxu0 0.0
  %4125 = vmatprep.subr.mxu0 0.0
  %4126 = vmatpush1.msra.mxu0 0.0
  %4127 = vmatprep.subr.mxu0 0.0
  %4128 = vmatpush1.msra.mxu0 0.0
  %4129 = vmatprep.subr.mxu0 0.0
  %4130 = vmatpush1.msra.mxu0 0.0
  %4131 = vmatprep.subr.mxu0 0.0
  %4132 = vmatpush1.msra.mxu0 0.0
  %4133 = vmatprep.subr.mxu0 0.0
  %4134 = vmatpush1.msra.mxu0 0.0
  %4135 = vmatprep.subr.mxu0 0.0
  %4136 = vmatpush1.msra.mxu0 0.0
  %4137 = vmatprep.subr.mxu0 0.0
  %4138 = vmatpush1.msra.mxu0 0.0
  %4139 = vmatprep.subr.mxu0 0.0
  %4140 = vmatpush1.msra.mxu0 0.0
  %4141 = vmatprep.subr.mxu0 0.0
  %4142 = vmatpush1.msra.mxu0 0.0
  %4143 = vmatprep.subr.mxu0 0.0
  %4144 = vmatpush1.msra.mxu0 0.0
  %4145 = vmatprep.mubr.f32.mxu0 0.0
  %4146 = vmatmul.mubr.f32.gmra.mrb[0].mxu0 %v4076
  %v4147 = vpop.f32.mrb[0].mxu0
  %v4148 = vadd.f32 %v4074, %v4147
  %v4149 = vpop.f32.mrb[0].mxu0
  %4150 = vdwg.mxu0
  %v4151 = vadd.f32 %v4148, 3.0
  %v4152 = vmax.f32 %v4151, 0.0
  %v4153 = vmin.f32 %v4152, 6.0
  %v4154 = vmul.f32 %v4153, 0.16666667
  %v4155 = vlaneseq
  %v4156 = vshrl.u32 %v4155, 7
  %v4157 = vsub.s32 0, %v4156
  %v4158 = vrot.slane %v4154, %v4157
  %v4159 = vmul.f32 %v3895, %v4158
  %v4160 = vmul.f32 %v3896, %v4158
  %v4161 = vmul.f32 %v3897, %v4158
  %v4162 = vmul.f32 %v3898, %v4158
  %v4163 = vmul.f32 %v3899, %v4158
  %v4164 = vmul.f32 %v3900, %v4158
  %v4165 = vmul.f32 %v3901, %v4158
  %v4166 = vmul.f32 %v3902, %v4158
  %v4167 = vmul.f32 %v3903, %v4158
  %v4168 = vmul.f32 %v3904, %v4158
  %v4169 = vmul.f32 %v3905, %v4158
  %v4170 = vmul.f32 %v3906, %v4158
  %v4171 = vmul.f32 %v3907, %v4158
  %v4172 = vmul.f32 %v3908, %v4158
  %v4173 = vmul.f32 %v3909, %v4158
  %v4174 = vmul.f32 %v3910, %v4158
  %v4175 = vmul.f32 %v3911, %v4158
  %v4176 = vmul.f32 %v3912, %v4158
  %v4177 = vmul.f32 %v3913, %v4158
  %v4178 = vmul.f32 %v3914, %v4158
  %v4179 = vmul.f32 %v3915, %v4158
  %v4180 = vmul.f32 %v3916, %v4158
  %v4181 = vmul.f32 %v3917, %v4158
  %v4182 = vmul.f32 %v3918, %v4158
  %v4183 = vmul.f32 %v3919, %v4158
  %v4184 = vmul.f32 %v3920, %v4158
  %v4185 = vmul.f32 %v3921, %v4158
  %v4186 = vmul.f32 %v3922, %v4158
  %v4187 = vmul.f32 %v3923, %v4158
  %v4188 = vmul.f32 %v3924, %v4158
  %v4189 = vmul.f32 %v3925, %v4158
  %v4190 = vmul.f32 %v3926, %v4158
  %v4191 = vadd.f32 %v4159, 3.0
  %v4192 = vadd.f32 %v4160, 3.0
  %v4193 = vadd.f32 %v4161, 3.0
  %v4194 = vadd.f32 %v4162, 3.0
  %v4195 = vadd.f32 %v4163, 3.0
  %v4196 = vadd.f32 %v4164, 3.0
  %v4197 = vadd.f32 %v4165, 3.0
  %v4198 = vadd.f32 %v4166, 3.0
  %v4199 = vadd.f32 %v4167, 3.0
  %v4200 = vadd.f32 %v4168, 3.0
  %v4201 = vadd.f32 %v4169, 3.0
  %v4202 = vadd.f32 %v4170, 3.0
  %v4203 = vadd.f32 %v4171, 3.0
  %v4204 = vadd.f32 %v4172, 3.0
  %v4205 = vadd.f32 %v4173, 3.0
  %v4206 = vadd.f32 %v4174, 3.0
  %v4207 = vadd.f32 %v4175, 3.0
  %v4208 = vadd.f32 %v4176, 3.0
  %v4209 = vadd.f32 %v4177, 3.0
  %v4210 = vadd.f32 %v4178, 3.0
  %v4211 = vadd.f32 %v4179, 3.0
  %v4212 = vadd.f32 %v4180, 3.0
  %v4213 = vadd.f32 %v4181, 3.0
  %v4214 = vadd.f32 %v4182, 3.0
  %v4215 = vadd.f32 %v4183, 3.0
  %v4216 = vadd.f32 %v4184, 3.0
  %v4217 = vadd.f32 %v4185, 3.0
  %v4218 = vadd.f32 %v4186, 3.0
  %v4219 = vadd.f32 %v4187, 3.0
  %v4220 = vadd.f32 %v4188, 3.0
  %v4221 = vadd.f32 %v4189, 3.0
  %v4222 = vadd.f32 %v4190, 3.0
  %v4223 = vmax.f32 %v4191, 0.0
  %v4224 = vmax.f32 %v4192, 0.0
  %v4225 = vmax.f32 %v4193, 0.0
  %v4226 = vmax.f32 %v4194, 0.0
  %v4227 = vmax.f32 %v4195, 0.0
  %v4228 = vmax.f32 %v4196, 0.0
  %v4229 = vmax.f32 %v4197, 0.0
  %v4230 = vmax.f32 %v4198, 0.0
  %v4231 = vmax.f32 %v4199, 0.0
  %v4232 = vmax.f32 %v4200, 0.0
  %v4233 = vmax.f32 %v4201, 0.0
  %v4234 = vmax.f32 %v4202, 0.0
  %v4235 = vmax.f32 %v4203, 0.0
  %v4236 = vmax.f32 %v4204, 0.0
  %v4237 = vmax.f32 %v4205, 0.0
  %v4238 = vmax.f32 %v4206, 0.0
  %v4239 = vmax.f32 %v4207, 0.0
  %v4240 = vmax.f32 %v4208, 0.0
  %v4241 = vmax.f32 %v4209, 0.0
  %v4242 = vmax.f32 %v4210, 0.0
  %v4243 = vmax.f32 %v4211, 0.0
  %v4244 = vmax.f32 %v4212, 0.0
  %v4245 = vmax.f32 %v4213, 0.0
  %v4246 = vmax.f32 %v4214, 0.0
  %v4247 = vmax.f32 %v4215, 0.0
  %v4248 = vmax.f32 %v4216, 0.0
  %v4249 = vmax.f32 %v4217, 0.0
  %v4250 = vmax.f32 %v4218, 0.0
  %v4251 = vmax.f32 %v4219, 0.0
  %v4252 = vmax.f32 %v4220, 0.0
  %v4253 = vmax.f32 %v4221, 0.0
  %v4254 = vmax.f32 %v4222, 0.0
  %v4255 = vmin.f32 %v4223, 6.0
  %v4256 = vmin.f32 %v4224, 6.0
  %v4257 = vmin.f32 %v4225, 6.0
  %v4258 = vmin.f32 %v4226, 6.0
  %v4259 = vmin.f32 %v4227, 6.0
  %v4260 = vmin.f32 %v4228, 6.0
  %v4261 = vmin.f32 %v4229, 6.0
  %v4262 = vmin.f32 %v4230, 6.0
  %v4263 = vmin.f32 %v4231, 6.0
  %v4264 = vmin.f32 %v4232, 6.0
  %v4265 = vmin.f32 %v4233, 6.0
  %v4266 = vmin.f32 %v4234, 6.0
  %v4267 = vmin.f32 %v4235, 6.0
  %v4268 = vmin.f32 %v4236, 6.0
  %v4269 = vmin.f32 %v4237, 6.0
  %v4270 = vmin.f32 %v4238, 6.0
  %v4271 = vmin.f32 %v4239, 6.0
  %v4272 = vmin.f32 %v4240, 6.0
  %v4273 = vmin.f32 %v4241, 6.0
  %v4274 = vmin.f32 %v4242, 6.0
  %v4275 = vmin.f32 %v4243, 6.0
  %v4276 = vmin.f32 %v4244, 6.0
  %v4277 = vmin.f32 %v4245, 6.0
  %v4278 = vmin.f32 %v4246, 6.0
  %v4279 = vmin.f32 %v4247, 6.0
  %v4280 = vmin.f32 %v4248, 6.0
  %v4281 = vmin.f32 %v4249, 6.0
  %v4282 = vmin.f32 %v4250, 6.0
  %v4283 = vmin.f32 %v4251, 6.0
  %v4284 = vmin.f32 %v4252, 6.0
  %v4285 = vmin.f32 %v4253, 6.0
  %v4286 = vmin.f32 %v4254, 6.0
  %v4287 = vmul.f32 %v4255, 0.16666667
  %v4288 = vmul.f32 %v4256, 0.16666667
  %v4289 = vmul.f32 %v4257, 0.16666667
  %v4290 = vmul.f32 %v4258, 0.16666667
  %v4291 = vmul.f32 %v4259, 0.16666667
  %v4292 = vmul.f32 %v4260, 0.16666667
  %v4293 = vmul.f32 %v4261, 0.16666667
  %v4294 = vmul.f32 %v4262, 0.16666667
  %v4295 = vmul.f32 %v4263, 0.16666667
  %v4296 = vmul.f32 %v4264, 0.16666667
  %v4297 = vmul.f32 %v4265, 0.16666667
  %v4298 = vmul.f32 %v4266, 0.16666667
  %v4299 = vmul.f32 %v4267, 0.16666667
  %v4300 = vmul.f32 %v4268, 0.16666667
  %v4301 = vmul.f32 %v4269, 0.16666667
  %v4302 = vmul.f32 %v4270, 0.16666667
  %v4303 = vmul.f32 %v4271, 0.16666667
  %v4304 = vmul.f32 %v4272, 0.16666667
  %v4305 = vmul.f32 %v4273, 0.16666667
  %v4306 = vmul.f32 %v4274, 0.16666667
  %v4307 = vmul.f32 %v4275, 0.16666667
  %v4308 = vmul.f32 %v4276, 0.16666667
  %v4309 = vmul.f32 %v4277, 0.16666667
  %v4310 = vmul.f32 %v4278, 0.16666667
  %v4311 = vmul.f32 %v4279, 0.16666667
  %v4312 = vmul.f32 %v4280, 0.16666667
  %v4313 = vmul.f32 %v4281, 0.16666667
  %v4314 = vmul.f32 %v4282, 0.16666667
  %v4315 = vmul.f32 %v4283, 0.16666667
  %v4316 = vmul.f32 %v4284, 0.16666667
  %v4317 = vmul.f32 %v4285, 0.16666667
  %v4318 = vmul.f32 %v4286, 0.16666667
  %v4319 = vmul.f32 %v4159, %v4287
  %v4320 = vmul.f32 %v4160, %v4288
  %v4321 = vmul.f32 %v4161, %v4289
  %v4322 = vmul.f32 %v4162, %v4290
  %v4323 = vmul.f32 %v4163, %v4291
  %v4324 = vmul.f32 %v4164, %v4292
  %v4325 = vmul.f32 %v4165, %v4293
  %v4326 = vmul.f32 %v4166, %v4294
  %v4327 = vmul.f32 %v4167, %v4295
  %v4328 = vmul.f32 %v4168, %v4296
  %v4329 = vmul.f32 %v4169, %v4297
  %v4330 = vmul.f32 %v4170, %v4298
  %v4331 = vmul.f32 %v4171, %v4299
  %v4332 = vmul.f32 %v4172, %v4300
  %v4333 = vmul.f32 %v4173, %v4301
  %v4334 = vmul.f32 %v4174, %v4302
  %v4335 = vmul.f32 %v4175, %v4303
  %v4336 = vmul.f32 %v4176, %v4304
  %v4337 = vmul.f32 %v4177, %v4305
  %v4338 = vmul.f32 %v4178, %v4306
  %v4339 = vmul.f32 %v4179, %v4307
  %v4340 = vmul.f32 %v4180, %v4308
  %v4341 = vmul.f32 %v4181, %v4309
  %v4342 = vmul.f32 %v4182, %v4310
  %v4343 = vmul.f32 %v4183, %v4311
  %v4344 = vmul.f32 %v4184, %v4312
  %v4345 = vmul.f32 %v4185, %v4313
  %v4346 = vmul.f32 %v4186, %v4314
  %v4347 = vmul.f32 %v4187, %v4315
  %v4348 = vmul.f32 %v4188, %v4316
  %v4349 = vmul.f32 %v4189, %v4317
  %v4350 = vmul.f32 %v4190, %v4318
  %v4351 = vld [vmem:[%s9] sm:$0xff]
  %v4352 = vld [vmem:[%s10] sm:$0x1]
  %v4354 = vlaneseq
  %v4355 = vshrl.u32 %v4354, 7
  %v4356 = vsub.s32 0, %v4355
  %v4357 = vrot.slane %v4352, %v4356
  %v4360 = vsel %vm38, %v4319, 0
  %v4363 = vsel %vm38, %v4320, 0
  %v4366 = vsel %vm38, %v4321, 0
  %v4369 = vsel %vm38, %v4322, 0
  %v4372 = vsel %vm38, %v4323, 0
  %v4375 = vsel %vm38, %v4324, 0
  %v4378 = vsel %vm38, %v4325, 0
  %v4381 = vsel %vm38, %v4326, 0
  %v4384 = vsel %vm38, %v4327, 0
  %v4387 = vsel %vm38, %v4328, 0
  %v4390 = vsel %vm38, %v4329, 0
  %v4393 = vsel %vm38, %v4330, 0
  %v4396 = vsel %vm38, %v4331, 0
  %v4399 = vsel %vm38, %v4332, 0
  %v4402 = vsel %vm38, %v4333, 0
  %v4405 = vsel %vm38, %v4334, 0
  %v4408 = vsel %vm38, %v4335, 0
  %v4411 = vsel %vm38, %v4336, 0
  %v4414 = vsel %vm38, %v4337, 0
  %v4417 = vsel %vm38, %v4338, 0
  %v4420 = vsel %vm38, %v4339, 0
  %v4423 = vsel %vm38, %v4340, 0
  %v4426 = vsel %vm38, %v4341, 0
  %v4429 = vsel %vm38, %v4342, 0
  %v4432 = vsel %vm38, %v4343, 0
  %v4435 = vsel %vm38, %v4344, 0
  %v4438 = vsel %vm38, %v4345, 0
  %v4441 = vsel %vm38, %v4346, 0
  %v4444 = vsel %vm38, %v4347, 0
  %v4447 = vsel %vm38, %v4348, 0
  %v4450 = vsel %vm38, %v4349, 0
  %v4453 = vsel %vm38, %v4350, 0
  %4455 = vmatprep.subr.mxu0 0.0
  %4456 = vmatpush1.msra.mxu0 %v4351
  %4457 = vmatprep.subr.mxu0 0.0
  %4458 = vmatpush1.msra.mxu0 0.0
  %4459 = vmatprep.subr.mxu0 0.0
  %4460 = vmatpush1.msra.mxu0 0.0
  %4461 = vmatprep.subr.mxu0 0.0
  %4462 = vmatpush1.msra.mxu0 0.0
  %4463 = vmatprep.subr.mxu0 0.0
  %4464 = vmatpush1.msra.mxu0 0.0
  %4465 = vmatprep.subr.mxu0 0.0
  %4466 = vmatpush1.msra.mxu0 0.0
  %4467 = vmatprep.subr.mxu0 0.0
  %4468 = vmatpush1.msra.mxu0 0.0
  %4469 = vmatprep.subr.mxu0 0.0
  %4470 = vmatpush1.msra.mxu0 0.0
  %4471 = vmatprep.subr.mxu0 0.0
  %4472 = vmatpush1.msra.mxu0 0.0
  %4473 = vmatprep.subr.mxu0 0.0
  %4474 = vmatpush1.msra.mxu0 0.0
  %4475 = vmatprep.subr.mxu0 0.0
  %4476 = vmatpush1.msra.mxu0 0.0
  %4477 = vmatprep.subr.mxu0 0.0
  %4478 = vmatpush1.msra.mxu0 0.0
  %4479 = vmatprep.subr.mxu0 0.0
  %4480 = vmatpush1.msra.mxu0 0.0
  %4481 = vmatprep.subr.mxu0 0.0
  %4482 = vmatpush1.msra.mxu0 0.0
  %4483 = vmatprep.subr.mxu0 0.0
  %4484 = vmatpush1.msra.mxu0 0.0
  %4485 = vmatprep.subr.mxu0 0.0
  %4486 = vmatpush1.msra.mxu0 0.0
  %4487 = vmatprep.subr.mxu0 0.0
  %4488 = vmatpush1.msra.mxu0 0.0
  %4489 = vmatprep.subr.mxu0 0.0
  %4490 = vmatpush1.msra.mxu0 0.0
  %4491 = vmatprep.subr.mxu0 0.0
  %4492 = vmatpush1.msra.mxu0 0.0
  %4493 = vmatprep.subr.mxu0 0.0
  %4494 = vmatpush1.msra.mxu0 0.0
  %4495 = vmatprep.subr.mxu0 0.0
  %4496 = vmatpush1.msra.mxu0 0.0
  %4497 = vmatprep.subr.mxu0 0.0
  %4498 = vmatpush1.msra.mxu0 0.0
  %4499 = vmatprep.subr.mxu0 0.0
  %4500 = vmatpush1.msra.mxu0 0.0
  %4501 = vmatprep.subr.mxu0 0.0
  %4502 = vmatpush1.msra.mxu0 0.0
  %4503 = vmatprep.subr.mxu0 0.0
  %4504 = vmatpush1.msra.mxu0 0.0
  %4505 = vmatprep.subr.mxu0 0.0
  %4506 = vmatpush1.msra.mxu0 0.0
  %4507 = vmatprep.subr.mxu0 0.0
  %4508 = vmatpush1.msra.mxu0 0.0
  %4509 = vmatprep.subr.mxu0 0.0
  %4510 = vmatpush1.msra.mxu0 0.0
  %4511 = vmatprep.subr.mxu0 0.0
  %4512 = vmatpush1.msra.mxu0 0.0
  %4513 = vmatprep.subr.mxu0 0.0
  %4514 = vmatpush1.msra.mxu0 0.0
  %4515 = vmatprep.subr.mxu0 0.0
  %4516 = vmatpush1.msra.mxu0 0.0
  %4517 = vmatprep.subr.mxu0 0.0
  %4518 = vmatpush1.msra.mxu0 0.0
  %4519 = vmatprep.mubr.f32.mxu0 0.0
  %4520 = vmatmul.mubr.f32.gmra.mrb[0].mxu0 %v4360
  %v4521 = vpop.f32.mrb[0].mxu0
  %v4522 = vadd.f32 %v4357, %v4521
  %v4523 = vpop.f32.mrb[0].mxu0
  %4524 = vmatprep.mubr.f32.mxu0 0.0
  %4525 = vmatmul.mubr.f32.gmra.mrb[0].mxu0 %v4363
  %v4526 = vpop.f32.mrb[0].mxu0
  %v4527 = vadd.f32 %v4357, %v4526
  %v4528 = vpop.f32.mrb[0].mxu0
  %4529 = vmatprep.mubr.f32.mxu0 0.0
  %4530 = vmatmul.mubr.f32.gmra.mrb[0].mxu0 %v4366
  %v4531 = vpop.f32.mrb[0].mxu0
  %v4532 = vadd.f32 %v4357, %v4531
  %v4533 = vpop.f32.mrb[0].mxu0
  %4534 = vmatprep.mubr.f32.mxu0 0.0
  %4535 = vmatmul.mubr.f32.gmra.mrb[0].mxu0 %v4369
  %v4536 = vpop.f32.mrb[0].mxu0
  %v4537 = vadd.f32 %v4357, %v4536
  %v4538 = vpop.f32.mrb[0].mxu0
  %4539 = vmatprep.mubr.f32.mxu0 0.0
  %4540 = vmatmul.mubr.f32.gmra.mrb[0].mxu0 %v4372
  %v4541 = vpop.f32.mrb[0].mxu0
  %v4542 = vadd.f32 %v4357, %v4541
  %v4543 = vpop.f32.mrb[0].mxu0
  %4544 = vmatprep.mubr.f32.mxu0 0.0
  %4545 = vmatmul.mubr.f32.gmra.mrb[0].mxu0 %v4375
  %v4546 = vpop.f32.mrb[0].mxu0
  %v4547 = vadd.f32 %v4357, %v4546
  %v4548 = vpop.f32.mrb[0].mxu0
  %4549 = vmatprep.mubr.f32.mxu0 0.0
  %4550 = vmatmul.mubr.f32.gmra.mrb[0].mxu0 %v4378
  %v4551 = vpop.f32.mrb[0].mxu0
  %v4552 = vadd.f32 %v4357, %v4551
  %v4553 = vpop.f32.mrb[0].mxu0
  %4554 = vmatprep.mubr.f32.mxu0 0.0
  %4555 = vmatmul.mubr.f32.gmra.mrb[0].mxu0 %v4381
  %v4556 = vpop.f32.mrb[0].mxu0
  %v4557 = vadd.f32 %v4357, %v4556
  %v4558 = vpop.f32.mrb[0].mxu0
  %4559 = vmatprep.mubr.f32.mxu0 0.0
  %4560 = vmatmul.mubr.f32.gmra.mrb[0].mxu0 %v4384
  %v4561 = vpop.f32.mrb[0].mxu0
  %v4562 = vadd.f32 %v4357, %v4561
  %v4563 = vpop.f32.mrb[0].mxu0
  %4564 = vmatprep.mubr.f32.mxu0 0.0
  %4565 = vmatmul.mubr.f32.gmra.mrb[0].mxu0 %v4387
  %v4566 = vpop.f32.mrb[0].mxu0
  %v4567 = vadd.f32 %v4357, %v4566
  %v4568 = vpop.f32.mrb[0].mxu0
  %4569 = vmatprep.mubr.f32.mxu0 0.0
  %4570 = vmatmul.mubr.f32.gmra.mrb[0].mxu0 %v4390
  %v4571 = vpop.f32.mrb[0].mxu0
  %v4572 = vadd.f32 %v4357, %v4571
  %v4573 = vpop.f32.mrb[0].mxu0
  %4574 = vmatprep.mubr.f32.mxu0 0.0
  %4575 = vmatmul.mubr.f32.gmra.mrb[0].mxu0 %v4393
  %v4576 = vpop.f32.mrb[0].mxu0
  %v4577 = vadd.f32 %v4357, %v4576
  %v4578 = vpop.f32.mrb[0].mxu0
  %4579 = vmatprep.mubr.f32.mxu0 0.0
  %4580 = vmatmul.mubr.f32.gmra.mrb[0].mxu0 %v4396
  %v4581 = vpop.f32.mrb[0].mxu0
  %v4582 = vadd.f32 %v4357, %v4581
  %v4583 = vpop.f32.mrb[0].mxu0
  %4584 = vmatprep.mubr.f32.mxu0 0.0
  %4585 = vmatmul.mubr.f32.gmra.mrb[0].mxu0 %v4399
  %v4586 = vpop.f32.mrb[0].mxu0
  %v4587 = vadd.f32 %v4357, %v4586
  %v4588 = vpop.f32.mrb[0].mxu0
  %4589 = vmatprep.mubr.f32.mxu0 0.0
  %4590 = vmatmul.mubr.f32.gmra.mrb[0].mxu0 %v4402
  %v4591 = vpop.f32.mrb[0].mxu0
  %v4592 = vadd.f32 %v4357, %v4591
  %v4593 = vpop.f32.mrb[0].mxu0
  %4594 = vmatprep.mubr.f32.mxu0 0.0
  %4595 = vmatmul.mubr.f32.gmra.mrb[0].mxu0 %v4405
  %v4596 = vpop.f32.mrb[0].mxu0
  %v4597 = vadd.f32 %v4357, %v4596
  %v4598 = vpop.f32.mrb[0].mxu0
  %4599 = vmatprep.mubr.f32.mxu0 0.0
  %4600 = vmatmul.mubr.f32.gmra.mrb[0].mxu0 %v4408
  %v4601 = vpop.f32.mrb[0].mxu0
  %v4602 = vadd.f32 %v4357, %v4601
  %v4603 = vpop.f32.mrb[0].mxu0
  %4604 = vmatprep.mubr.f32.mxu0 0.0
  %4605 = vmatmul.mubr.f32.gmra.mrb[0].mxu0 %v4411
  %v4606 = vpop.f32.mrb[0].mxu0
  %v4607 = vadd.f32 %v4357, %v4606
  %v4608 = vpop.f32.mrb[0].mxu0
  %4609 = vmatprep.mubr.f32.mxu0 0.0
  %4610 = vmatmul.mubr.f32.gmra.mrb[0].mxu0 %v4414
  %v4611 = vpop.f32.mrb[0].mxu0
  %v4612 = vadd.f32 %v4357, %v4611
  %v4613 = vpop.f32.mrb[0].mxu0
  %4614 = vmatprep.mubr.f32.mxu0 0.0
  %4615 = vmatmul.mubr.f32.gmra.mrb[0].mxu0 %v4417
  %v4616 = vpop.f32.mrb[0].mxu0
  %v4617 = vadd.f32 %v4357, %v4616
  %v4618 = vpop.f32.mrb[0].mxu0
  %4619 = vmatprep.mubr.f32.mxu0 0.0
  %4620 = vmatmul.mubr.f32.gmra.mrb[0].mxu0 %v4420
  %v4621 = vpop.f32.mrb[0].mxu0
  %v4622 = vadd.f32 %v4357, %v4621
  %v4623 = vpop.f32.mrb[0].mxu0
  %4624 = vmatprep.mubr.f32.mxu0 0.0
  %4625 = vmatmul.mubr.f32.gmra.mrb[0].mxu0 %v4423
  %v4626 = vpop.f32.mrb[0].mxu0
  %v4627 = vadd.f32 %v4357, %v4626
  %v4628 = vpop.f32.mrb[0].mxu0
  %4629 = vmatprep.mubr.f32.mxu0 0.0
  %4630 = vmatmul.mubr.f32.gmra.mrb[0].mxu0 %v4426
  %v4631 = vpop.f32.mrb[0].mxu0
  %v4632 = vadd.f32 %v4357, %v4631
  %v4633 = vpop.f32.mrb[0].mxu0
  %4634 = vmatprep.mubr.f32.mxu0 0.0
  %4635 = vmatmul.mubr.f32.gmra.mrb[0].mxu0 %v4429
  %v4636 = vpop.f32.mrb[0].mxu0
  %v4637 = vadd.f32 %v4357, %v4636
  %v4638 = vpop.f32.mrb[0].mxu0
  %4639 = vmatprep.mubr.f32.mxu0 0.0
  %4640 = vmatmul.mubr.f32.gmra.mrb[0].mxu0 %v4432
  %v4641 = vpop.f32.mrb[0].mxu0
  %v4642 = vadd.f32 %v4357, %v4641
  %v4643 = vpop.f32.mrb[0].mxu0
  %4644 = vmatprep.mubr.f32.mxu0 0.0
  %4645 = vmatmul.mubr.f32.gmra.mrb[0].mxu0 %v4435
  %v4646 = vpop.f32.mrb[0].mxu0
  %v4647 = vadd.f32 %v4357, %v4646
  %v4648 = vpop.f32.mrb[0].mxu0
  %4649 = vmatprep.mubr.f32.mxu0 0.0
  %4650 = vmatmul.mubr.f32.gmra.mrb[0].mxu0 %v4438
  %v4651 = vpop.f32.mrb[0].mxu0
  %v4652 = vadd.f32 %v4357, %v4651
  %v4653 = vpop.f32.mrb[0].mxu0
  %4654 = vmatprep.mubr.f32.mxu0 0.0
  %4655 = vmatmul.mubr.f32.gmra.mrb[0].mxu0 %v4441
  %v4656 = vpop.f32.mrb[0].mxu0
  %v4657 = vadd.f32 %v4357, %v4656
  %v4658 = vpop.f32.mrb[0].mxu0
  %4659 = vmatprep.mubr.f32.mxu0 0.0
  %4660 = vmatmul.mubr.f32.gmra.mrb[0].mxu0 %v4444
  %v4661 = vpop.f32.mrb[0].mxu0
  %v4662 = vadd.f32 %v4357, %v4661
  %v4663 = vpop.f32.mrb[0].mxu0
  %4664 = vmatprep.mubr.f32.mxu0 0.0
  %4665 = vmatmul.mubr.f32.gmra.mrb[0].mxu0 %v4447
  %v4666 = vpop.f32.mrb[0].mxu0
  %v4667 = vadd.f32 %v4357, %v4666
  %v4668 = vpop.f32.mrb[0].mxu0
  %4669 = vmatprep.mubr.f32.mxu0 0.0
  %4670 = vmatmul.mubr.f32.gmra.mrb[0].mxu0 %v4450
  %v4671 = vpop.f32.mrb[0].mxu0
  %v4672 = vadd.f32 %v4357, %v4671
  %v4673 = vpop.f32.mrb[0].mxu0
  %4674 = vmatprep.mubr.f32.mxu0 0.0
  %4675 = vmatmul.mubr.f32.gmra.mrb[0].mxu0 %v4453
  %v4676 = vpop.f32.mrb[0].mxu0
  %v4677 = vadd.f32 %v4357, %v4676
  %v4678 = vpop.f32.mrb[0].mxu0
  %4679 = vdwg.mxu0
  %v4680 = vadd.f32 %v4522, %v2423
  %v4681 = vadd.f32 %v4527, %v2424
  %v4682 = vadd.f32 %v4532, %v2425
  %v4683 = vadd.f32 %v4537, %v2426
  %v4684 = vadd.f32 %v4542, %v2427
  %v4685 = vadd.f32 %v4547, %v2428
  %v4686 = vadd.f32 %v4552, %v2429
  %v4687 = vadd.f32 %v4557, %v2430
  %v4688 = vadd.f32 %v4562, %v2431
  %v4689 = vadd.f32 %v4567, %v2432
  %v4690 = vadd.f32 %v4572, %v2433
  %v4691 = vadd.f32 %v4577, %v2434
  %v4692 = vadd.f32 %v4582, %v2435
  %v4693 = vadd.f32 %v4587, %v2436
  %v4694 = vadd.f32 %v4592, %v2437
  %v4695 = vadd.f32 %v4597, %v2438
  %v4696 = vadd.f32 %v4602, %v2439
  %v4697 = vadd.f32 %v4607, %v2440
  %v4698 = vadd.f32 %v4612, %v2441
  %v4699 = vadd.f32 %v4617, %v2442
  %v4700 = vadd.f32 %v4622, %v2443
  %v4701 = vadd.f32 %v4627, %v2444
  %v4702 = vadd.f32 %v4632, %v2445
  %v4703 = vadd.f32 %v4637, %v2446
  %v4704 = vadd.f32 %v4642, %v2447
  %v4705 = vadd.f32 %v4647, %v2448
  %v4706 = vadd.f32 %v4652, %v2449
  %v4707 = vadd.f32 %v4657, %v2450
  %v4708 = vadd.f32 %v4662, %v2451
  %v4709 = vadd.f32 %v4667, %v2452
  %v4710 = vadd.f32 %v4672, %v2453
  %v4711 = vadd.f32 %v4677, %v2454
  %s4712 = scalar_lea.vmem %s11, 256
  %4713 = vst.msk [vmem:[%s4712] sm:$0xff] %vm134, %v4680
  %4714 = vst.msk [vmem:[%s4712 + $0x8] sm:$0xff] %vm134, %v4681
  %4715 = vst.msk [vmem:[%s4712 + $0x10] sm:$0xff] %vm134, %v4682
  %4716 = vst.msk [vmem:[%s4712 + $0x18] sm:$0xff] %vm134, %v4683
  %4717 = vst.msk [vmem:[%s4712 + $0x20] sm:$0xff] %vm134, %v4684
  %4718 = vst.msk [vmem:[%s4712 + $0x28] sm:$0xff] %vm134, %v4685
  %4719 = vst.msk [vmem:[%s4712 + $0x30] sm:$0xff] %vm134, %v4686
  %4720 = vst.msk [vmem:[%s4712 + $0x38] sm:$0xff] %vm134, %v4687
  %4721 = vst.msk [vmem:[%s4712 + $0x40] sm:$0xff] %vm134, %v4688
  %4722 = vst.msk [vmem:[%s4712 + $0x48] sm:$0xff] %vm134, %v4689
  %4723 = vst.msk [vmem:[%s4712 + $0x50] sm:$0xff] %vm134, %v4690
  %4724 = vst.msk [vmem:[%s4712 + $0x58] sm:$0xff] %vm134, %v4691
  %4725 = vst.msk [vmem:[%s4712 + $0x60] sm:$0xff] %vm134, %v4692
  %4726 = vst.msk [vmem:[%s4712 + $0x68] sm:$0xff] %vm134, %v4693
  %4727 = vst.msk [vmem:[%s4712 + $0x70] sm:$0xff] %vm134, %v4694
  %4728 = vst.msk [vmem:[%s4712 + $0x78] sm:$0xff] %vm134, %v4695
  %4729 = vst.msk [vmem:[%s4712 + $0x80] sm:$0xff] %vm134, %v4696
  %4730 = vst.msk [vmem:[%s4712 + $0x88] sm:$0xff] %vm134, %v4697
  %4731 = vst.msk [vmem:[%s4712 + $0x90] sm:$0xff] %vm134, %v4698
  %4732 = vst.msk [vmem:[%s4712 + $0x98] sm:$0xff] %vm134, %v4699
  %4733 = vst.msk [vmem:[%s4712 + $0xa0] sm:$0xff] %vm134, %v4700
  %4734 = vst.msk [vmem:[%s4712 + $0xa8] sm:$0xff] %vm134, %v4701
  %4735 = vst.msk [vmem:[%s4712 + $0xb0] sm:$0xff] %vm134, %v4702
  %4736 = vst.msk [vmem:[%s4712 + $0xb8] sm:$0xff] %vm134, %v4703
  %4737 = vst.msk [vmem:[%s4712 + $0xc0] sm:$0xff] %vm134, %v4704
  %4738 = vst.msk [vmem:[%s4712 + $0xc8] sm:$0xff] %vm134, %v4705
  %4739 = vst.msk [vmem:[%s4712 + $0xd0] sm:$0xff] %vm134, %v4706
  %4740 = vst.msk [vmem:[%s4712 + $0xd8] sm:$0xff] %vm134, %v4707
  %4741 = vst.msk [vmem:[%s4712 + $0xe0] sm:$0xff] %vm134, %v4708
  %4742 = vst.msk [vmem:[%s4712 + $0xe8] sm:$0xff] %vm134, %v4709
  %4743 = vst.msk [vmem:[%s4712 + $0xf0] sm:$0xff] %vm134, %v4710
  %4744 = vst.msk [vmem:[%s4712 + $0xf8] sm:$0xff] %vm134, %v4711
  // Predicated region
  $region46: #{tpu_custom_call.1} parent=0 // pred_check
    _
  $region47: #{tpu_custom_call.1} parent=0 // pred_check_branch
    %4746 = sbr.rel (0) target = $region49
  $region48: #{tpu_custom_call.1} parent=0 // pred_region
    _
  $region49: #{tpu_custom_call.1} parent=0 // pred_fallthru
    _
  // Predicated region
  $region50: #{tpu_custom_call.1} parent=0 // pred_check
    _
  $region51: #{tpu_custom_call.1} parent=0 // pred_check_branch
    %4748 = sbr.rel (0) target = $region53
  $region52: #{tpu_custom_call.1} parent=0 // pred_region
    _
  $region53: #{tpu_custom_call.1} parent=0 // pred_fallthru
    _

</llo_original>
